<compile_context>
chip_gen: v5e
topology: v5e:2x2
jax: 0.10.0
libtpu: 0.0.40
codegen_flags: <defaults>
</compile_context>

<pallas_src>
import jax
import jax.numpy as jnp
from jax.experimental import pallas as pl
from jax.experimental.pallas import tpu as pltpu


def _rup128(c):
    return ((c + 127) // 128) * 128


def _cdiv(a, b):
    return -(-a // b)


# --------------------------------------------------------------------------
# Kernel (G graphs of N points per grid step; block-diagonal adjacency)
# --------------------------------------------------------------------------
def _make_gcn_kernel(G, N):
    rows = G * N
    bf16 = jnp.bfloat16
    f32 = jnp.float32

    def kernel(x_ref, adj_ref,
               w1_ref, c1_ref,
               w2a_ref, w2b_ref, c2_ref,
               w3a_ref, w3b_ref, c3_ref,
               w4a_ref, w4b_ref, c4_ref,
               f1a_ref, f1b_ref, cf1_ref,
               f2_ref, cf2_ref,
               f3_ref, b3_ref,
               out_ref):
        adj = adj_ref[...]                     # (rows, rows) bf16, block-diagonal

        def agg_bn_relu(support_f32, c_ref):
            # adj @ support (bf16 MXU, f32 acc) + folded-BN shift, ReLU;
            # activations stored as bf16 between layers.
            agg = jnp.dot(adj, support_f32.astype(bf16),
                          preferred_element_type=f32)
            return jnp.maximum(agg + c_ref[...], 0.0).astype(bf16)

        # gc1 + bn1 + relu
        s1 = jnp.dot(x_ref[...], w1_ref[...], preferred_element_type=f32)
        h1 = agg_bn_relu(s1, c1_ref)           # (rows, P1) bf16

        def gc_block(h, wa_ref, wb_ref, c_ref):
            # cat_feat(h, max_over_points(h)) folded into split weights:
            #   support = h @ W_self + max_per_graph(h) @ W_max
            # max is per graph -> (G, Cin); its matmul result is broadcast back
            # over the N rows of each graph (no concat materialized).
            cin = h.shape[1]
            hmax = jnp.max(h.reshape(G, N, cin), axis=1)                    # (G, Cin)
            s_self = jnp.dot(h, wa_ref[...], preferred_element_type=f32)    # (rows, Cout)
            s_max = jnp.dot(hmax, wb_ref[...], preferred_element_type=f32)  # (G, Cout)
            cout = s_self.shape[1]
            s = (s_self.reshape(G, N, cout)
                 + s_max[:, None, :]).reshape(rows, cout)
            return agg_bn_relu(s, c_ref)

        h2 = gc_block(h1, w2a_ref, w2b_ref, c2_ref)        # (rows, P2)
        h3 = gc_block(h2, w3a_ref, w3b_ref, c3_ref)        # (rows, P3)
        h4 = gc_block(h3, w4a_ref, w4b_ref, c4_ref)        # (rows, P4)

        # readout(mean=True): per-graph [mean || max] -> fc1 (split weights)
        p4 = h4.shape[1]
        h4g = h4.reshape(G, N, p4)
        h4_mean = (jnp.sum(h4g.astype(f32), axis=1) / N).astype(bf16)       # (G, P4)
        h4_max = jnp.max(h4g, axis=1)                                       # (G, P4)

        g1 = jnp.maximum(
            jnp.dot(h4_mean, f1a_ref[...], preferred_element_type=f32)
            + jnp.dot(h4_max, f1b_ref[...], preferred_element_type=f32)
            + cf1_ref[...], 0.0).astype(bf16)                               # (G, Pf1)
        g2 = jnp.maximum(
            jnp.dot(g1, f2_ref[...], preferred_element_type=f32)
            + cf2_ref[...], 0.0).astype(bf16)                               # (G, Pf2)
        z = (jnp.dot(g2, f3_ref[...], preferred_element_type=f32)
             + b3_ref[...])                                                 # (G, Pc) f32

        # log_softmax over classes; padded class lanes carry a -1e9 bias so
        # exp(z - m) underflows to exactly 0 there.
        m = jnp.max(z, axis=1, keepdims=True)
        lse = jnp.log(jnp.sum(jnp.exp(z - m), axis=1, keepdims=True)) + m
        out_ref[...] = z - lse

    return kernel


# --------------------------------------------------------------------------
# Host-side parameter folding / lane padding
# --------------------------------------------------------------------------
def make_params(key, nfeat, nhid, nclass):
    """Synthetic, deterministic eval-mode params, BN already folded.

    Returns the unpadded folded tuple consumed by both the reference and the
    kernel packer:
      (w1,c1, w2a,w2b,c2, w3a,w3b,c3, w4a,w4b,c4, f1a,f1b,cf1, f2,cf2, f3,b3)
    Weights are stored (in, out); shifts are (1, out) rows.
    """
    H = nhid

    def dense(k, cin, cout):
        kw, kb = jax.random.split(k)
        w = (1.0 / (cin ** 0.5)) * jax.random.normal(kw, (cin, cout), jnp.float32)
        b = 0.1 * jax.random.normal(kb, (cout,), jnp.float32)
        return w, b

    def fold_bn(k, w, b, eps=1e-5):
        cout = w.shape[1]
        kg, kb_, km, kv = jax.random.split(k, 4)
        gamma = 1.0 + 0.1 * jax.random.normal(kg, (cout,), jnp.float32)
        beta = 0.1 * jax.random.normal(kb_, (cout,), jnp.float32)
        mean = 0.1 * jax.random.normal(km, (cout,), jnp.float32)
        var = jnp.abs(jax.random.normal(kv, (cout,), jnp.float32)) + 0.5
        scale = gamma / jnp.sqrt(var + eps)
        shift = beta - mean * scale
        # bn(adj @ (x@W) + b) == adj @ (x @ (W*scale)) + (b*scale + shift)
        return w * scale[None, :], (b * scale + shift)[None, :]

    ks = jax.random.split(key, 13)
    w1, bg1 = dense(ks[0], nfeat, H)
    w1, c1 = fold_bn(ks[1], w1, bg1)

    w2, bg2 = dense(ks[2], 2 * H, 2 * H)
    w2, c2 = fold_bn(ks[3], w2, bg2)
    w2a, w2b = w2[:H], w2[H:]                 # [h || max(h)] split

    w3, bg3 = dense(ks[4], 4 * H, 4 * H)
    w3, c3 = fold_bn(ks[5], w3, bg3)
    w3a, w3b = w3[:2 * H], w3[2 * H:]

    w4, bg4 = dense(ks[6], 8 * H, 8 * H)
    w4, c4 = fold_bn(ks[7], w4, bg4)
    w4a, w4b = w4[:4 * H], w4[4 * H:]

    f1, bf1 = dense(ks[8], 16 * H, 4 * H)     # fc1 on [mean || max]
    f1, cf1 = fold_bn(ks[9], f1, bf1)
    f1a, f1b = f1[:8 * H], f1[8 * H:]

    f2, bf2 = dense(ks[10], 4 * H, 2 * H)
    f2, cf2 = fold_bn(ks[11], f2, bf2)

    f3, bf3 = dense(ks[12], 2 * H, nclass)
    b3 = bf3[None, :]

    return (w1, c1, w2a, w2b, c2, w3a, w3b, c3, w4a, w4b, c4,
            f1a, f1b, cf1, f2, cf2, f3, b3)


def pad_params_for_kernel(folded, nfeat, nhid, nclass):
    """Zero-pad every channel dim to a multiple of 128 lanes; weights -> bf16.

    Padded output channels carry a zero shift, so they stay exactly 0 through
    relu / max / mean, and the next layer's padded input rows are zero, so the
    padding is exact.
    # TODO(synk): on v6e/v7x pad contraction dims whose real width is > 128 to
    # multiples of 256 for better MXU K-fill (at nhid=32 every padded dim is
    # already 128 or 256, so _rup128 is kept).
    """
    (w1, c1, w2a, w2b, c2, w3a, w3b, c3, w4a, w4b, c4,
     f1a, f1b, cf1, f2, cf2, f3, b3) = folded
    H = nhid
    Fp = _rup128(nfeat)
    P1, P2, P3, P4 = (_rup128(H), _rup128(2 * H),
                      _rup128(4 * H), _rup128(8 * H))
    Pf1, Pf2, Pc = _rup128(4 * H), _rup128(2 * H), _rup128(nclass)

    def w_pad(w, rp, cp):
        out = jnp.zeros((rp, cp), jnp.float32)
        out = out.at[:w.shape[0], :w.shape[1]].set(w)
        return out.astype(jnp.bfloat16)

    def c_pad(c, cp, fill=0.0):
        out = jnp.full((1, cp), fill, jnp.float32)
        return out.at[:, :c.shape[1]].set(c)

    kp = (
        w_pad(w1, Fp, P1), c_pad(c1, P1),
        w_pad(w2a, P1, P2), w_pad(w2b, P1, P2), c_pad(c2, P2),
        w_pad(w3a, P2, P3), w_pad(w3b, P2, P3), c_pad(c3, P3),
        w_pad(w4a, P3, P4), w_pad(w4b, P3, P4), c_pad(c4, P4),
        w_pad(f1a, P4, Pf1), w_pad(f1b, P4, Pf1), c_pad(cf1, Pf1),
        w_pad(f2, Pf1, Pf2), c_pad(cf2, Pf2),
        w_pad(f3, Pf2, Pc), c_pad(b3, Pc, fill=-1e9),
    )
    dims = dict(Fp=Fp, P1=P1, P2=P2, P3=P3, P4=P4, Pf1=Pf1, Pf2=Pf2, Pc=Pc)
    return kp, dims


# --------------------------------------------------------------------------
# Wrapper
# --------------------------------------------------------------------------
def _choose_group_size(B, N, target_rows=256):
    """Graphs per grid step: fill ~target_rows MXU rows, keep >= 2 grid steps
    so dimension_semantics=('parallel',) can shard across v7x's two cores."""
    if B <= 1:
        return 1
    g = max(1, min(B, target_rows // max(N, 1)))
    if _cdiv(B, g) < 2:
        g = _cdiv(B, 2)
    return max(1, g)


def gcn_forward(x, adj, folded_params, nhid, nclass, group_size=None):
    """x: (B, N, nfeat) f32, adj: (B, N, N) f32 (normalized adjacency)."""
    B, N, nfeat = x.shape
    kp, d = pad_params_for_kernel(folded_params, nfeat, nhid, nclass)
    Fp, Pc = d["Fp"], d["Pc"]
    P1, P2, P3, P4 = d["P1"], d["P2"], d["P3"], d["P4"]
    Pf1, Pf2 = d["Pf1"], d["Pf2"]

    G = group_size or _choose_group_size(B, N)
    steps = _cdiv(B, G)
    Bp = steps * G
    rows = G * N

    # Stack G graphs per grid step (node rows concatenated) so every weight
    # matmul LHS is (rows, C).  Zero-pad the batch to a whole number of groups;
    # padded graphs stay isolated via the block-diagonal adjacency and their
    # outputs are sliced off.
    xp = jnp.zeros((Bp, N, Fp), jnp.bfloat16)
    xp = xp.at[:B, :, :nfeat].set(x.astype(jnp.bfloat16))
    xp = xp.reshape(steps, rows, Fp)

    adj_p = jnp.zeros((Bp, N, N), jnp.float32).at[:B].set(adj)
    adj_g = adj_p.reshape(steps, G, N, N)
    eye = jnp.eye(G, dtype=jnp.float32)
    # Block-diagonal per-step adjacency: one (rows, rows) MXU matmul replaces
    # G tiny (N, N) aggregations while keeping graphs exactly decoupled.
    # TODO(synk): for large N, row-block this aggregation instead of a dense
    # block-diagonal slab so the adj tile stays within VMEM headroom.
    adj_bd = jnp.einsum("sgij,gh->sgihj", adj_g, eye)
    adj_bd = adj_bd.reshape(steps, rows, rows).astype(jnp.bfloat16)

    x_spec = pl.BlockSpec((None, rows, Fp), lambda s: (s, 0, 0))
    adj_spec = pl.BlockSpec((None, rows, rows), lambda s: (s, 0, 0))
    out_spec = pl.BlockSpec((None, G, Pc), lambda s: (s, 0, 0))

    def weight_specs(single_buffer):
        # Constant index_map -> VMEM-resident across the whole grid; single-
        # buffer them so the default 2-deep pipeline doesn't double their VMEM.
        if single_buffer:
            return [pl.BlockSpec(p.shape, lambda s: (0, 0),
                                 pipeline_mode=pl.Buffered(1)) for p in kp]
        return [pl.BlockSpec(p.shape, lambda s: (0, 0)) for p in kp]

    # VMEM budget derived from actual sizes (re-derived for v7x's 64 MiB/TC):
    # cover double-buffered weights too so the fallback path also fits.
    weight_bytes = sum(int(p.size) * p.dtype.itemsize for p in kp)
    stream_bytes = 2 * (rows * Fp * 2 + rows * rows * 2 + G * Pc * 4)
    act_bytes = rows * (P1 + 2 * (P2 + P3 + P4)) * 2 + rows * max(P1, P2, P3, P4) * 4
    vmem_limit = int(1.5 * (2 * weight_bytes + stream_bytes + act_bytes)) + (8 << 20)
    vmem_limit = max(32 << 20, min(vmem_limit, 56 << 20))

    # Rough scheduler hint.
    flops = 2 * steps * (
        rows * (Fp * P1 + P1 * P2 + P2 * P3 + P3 * P4)
        + rows * rows * (P1 + P2 + P3 + P4)
        + G * (P1 * P2 + P2 * P3 + P3 * P4 + 2 * P4 * Pf1 + Pf1 * Pf2 + Pf2 * Pc))
    bytes_accessed = (weight_bytes + int(xp.size) * 2 + int(adj_bd.size) * 2
                      + Bp * Pc * 4)
    cost = pl.CostEstimate(flops=flops, transcendentals=Bp * Pc,
                           bytes_accessed=bytes_accessed)

    kernel = _make_gcn_kernel(G, N)

    def run(single_buffer):
        return pl.pallas_call(
            kernel,
            out_shape=jax.ShapeDtypeStruct((steps, G, Pc), jnp.float32),
            grid=(steps,),
            in_specs=[x_spec, adj_spec] + weight_specs(single_buffer),
            out_specs=out_spec,
            compiler_params=pltpu.CompilerParams(
                dimension_semantics=("parallel",),
                vmem_limit_bytes=vmem_limit),
            cost_estimate=cost,
        )(xp, adj_bd, *kp)

    try:
        out = run(True)
    except Exception:
        # Fallback for jax builds that reject single-buffered weight specs.
        out = run(False)

    return out.reshape(Bp, Pc)[:B, :nclass]   # lane-dense store, slice outside


# --------------------------------------------------------------------------
# Pure-JAX reference (same folded params, same bf16-activation / f32-acc numerics)
# --------------------------------------------------------------------------
def _reference(x, adj, folded):
    (w1, c1, w2a, w2b, c2, w3a, w3b, c3, w4a, w4b, c4,
     f1a, f1b, cf1, f2, cf2, f3, b3) = folded
    bf16 = jnp.bfloat16
    N = x.shape[1]

    def mm(a, b):
        return jnp.matmul(a.astype(bf16), b.astype(bf16),
                          preferred_element_type=jnp.float32)

    def act(v):
        # ReLU then bf16 activation storage (matches the kernel).
        return jnp.maximum(v, 0.0).astype(bf16)

    h1 = act(mm(adj, mm(x, w1)) + c1)

    def gc_cat(h, wa, wb, c):
        hmax = jnp.max(h, axis=1, keepdims=True)
        s = mm(h, wa) + mm(hmax, wb)
        return act(mm(adj, s) + c)

    h2 = gc_cat(h1, w2a, w2b, c2)
    h3 = gc_cat(h2, w3a, w3b, c3)
    h4 = gc_cat(h3, w4a, w4b, c4)

    h4_mean = (jnp.sum(h4.astype(jnp.float32), axis=1) / N).astype(bf16)
    h4_max = jnp.max(h4, axis=1)
    g = act(mm(h4_mean, f1a) + mm(h4_max, f1b) + cf1)
    g = act(mm(g, f2) + cf2)
    z = mm(g, f3) + b3
    m = jnp.max(z, axis=1, keepdims=True)
    lse = jnp.log(jnp.sum(jnp.exp(z - m), axis=1, keepdims=True)) + m
    return z - lse


if __name__ == "__main__":
    key = jax.random.PRNGKey(0)
    B, N, nfeat, nhid, nclass = 8, 16, 4, 32, 10

    kx, ka, kparam = jax.random.split(key, 3)
    x = jax.random.normal(kx, (B, N, nfeat), jnp.float32)

    # Symmetric adjacency with self-loops, row-normalized (typical GCN input).
    a = jax.random.uniform(ka, (B, N, N), jnp.float32)
    a = 0.5 * (a + jnp.transpose(a, (0, 2, 1))) + jnp.eye(N, dtype=jnp.float32)
    adj = a / jnp.sum(a, axis=-1, keepdims=True)

    folded = make_params(kparam, nfeat, nhid, nclass)

    out = gcn_forward(x, adj, folded, nhid, nclass)
    out = jax.block_until_ready(out)

    ref = _reference(x, adj, folded)
    assert out.shape == (B, nclass)
    max_diff = float(jnp.max(jnp.abs(out - ref)))
    assert jnp.allclose(out, ref, atol=2e-3, rtol=2e-3), max_diff

    print("KERNEL_OK")
</pallas_src>

<mosaic_0001>
module attributes {stable_mosaic.version = 11 : i64} {
  func.func @kernel(%arg0: i32, %arg1: memref<1x64x128xbf16, #tpu.memory_space<vmem>>, %arg2: memref<1x64x64xbf16, #tpu.memory_space<vmem>>, %arg3: memref<128x128xbf16, #tpu.memory_space<vmem>>, %arg4: memref<1x128xf32, #tpu.memory_space<vmem>>, %arg5: memref<128x128xbf16, #tpu.memory_space<vmem>>, %arg6: memref<128x128xbf16, #tpu.memory_space<vmem>>, %arg7: memref<1x128xf32, #tpu.memory_space<vmem>>, %arg8: memref<128x128xbf16, #tpu.memory_space<vmem>>, %arg9: memref<128x128xbf16, #tpu.memory_space<vmem>>, %arg10: memref<1x128xf32, #tpu.memory_space<vmem>>, %arg11: memref<128x256xbf16, #tpu.memory_space<vmem>>, %arg12: memref<128x256xbf16, #tpu.memory_space<vmem>>, %arg13: memref<1x256xf32, #tpu.memory_space<vmem>>, %arg14: memref<256x128xbf16, #tpu.memory_space<vmem>>, %arg15: memref<256x128xbf16, #tpu.memory_space<vmem>>, %arg16: memref<1x128xf32, #tpu.memory_space<vmem>>, %arg17: memref<128x128xbf16, #tpu.memory_space<vmem>>, %arg18: memref<1x128xf32, #tpu.memory_space<vmem>>, %arg19: memref<128x128xbf16, #tpu.memory_space<vmem>>, %arg20: memref<1x128xf32, #tpu.memory_space<vmem>>, %arg21: memref<1x4x128xf32, #tpu.memory_space<vmem>>) attributes {dimension_semantics = [#tpu.dimension_semantics<parallel>], iteration_bounds = array<i64: 2>, scalar_prefetch = 0 : i64, scratch_operands = 0 : i64, tpu.core_type = #tpu.core_type<tc>, window_params = [{transform_indices = @transform_0, window_bounds = array<i64: 1, 64, 128>}, {transform_indices = @transform_1, window_bounds = array<i64: 1, 64, 64>}, {pipeline_mode = #tpu.pipeline_mode<synchronous>, transform_indices = @transform_2, window_bounds = array<i64: 128, 128>}, {pipeline_mode = #tpu.pipeline_mode<synchronous>, transform_indices = @transform_3, window_bounds = array<i64: 1, 128>}, {pipeline_mode = #tpu.pipeline_mode<synchronous>, transform_indices = @transform_4, window_bounds = array<i64: 128, 128>}, {pipeline_mode = #tpu.pipeline_mode<synchronous>, transform_indices = @transform_5, window_bounds = array<i64: 128, 128>}, {pipeline_mode = #tpu.pipeline_mode<synchronous>, transform_indices = @transform_6, window_bounds = array<i64: 1, 128>}, {pipeline_mode = #tpu.pipeline_mode<synchronous>, transform_indices = @transform_7, window_bounds = array<i64: 128, 128>}, {pipeline_mode = #tpu.pipeline_mode<synchronous>, transform_indices = @transform_8, window_bounds = array<i64: 128, 128>}, {pipeline_mode = #tpu.pipeline_mode<synchronous>, transform_indices = @transform_9, window_bounds = array<i64: 1, 128>}, {pipeline_mode = #tpu.pipeline_mode<synchronous>, transform_indices = @transform_10, window_bounds = array<i64: 128, 256>}, {pipeline_mode = #tpu.pipeline_mode<synchronous>, transform_indices = @transform_11, window_bounds = array<i64: 128, 256>}, {pipeline_mode = #tpu.pipeline_mode<synchronous>, transform_indices = @transform_12, window_bounds = array<i64: 1, 256>}, {pipeline_mode = #tpu.pipeline_mode<synchronous>, transform_indices = @transform_13, window_bounds = array<i64: 256, 128>}, {pipeline_mode = #tpu.pipeline_mode<synchronous>, transform_indices = @transform_14, window_bounds = array<i64: 256, 128>}, {pipeline_mode = #tpu.pipeline_mode<synchronous>, transform_indices = @transform_15, window_bounds = array<i64: 1, 128>}, {pipeline_mode = #tpu.pipeline_mode<synchronous>, transform_indices = @transform_16, window_bounds = array<i64: 128, 128>}, {pipeline_mode = #tpu.pipeline_mode<synchronous>, transform_indices = @transform_17, window_bounds = array<i64: 1, 128>}, {pipeline_mode = #tpu.pipeline_mode<synchronous>, transform_indices = @transform_18, window_bounds = array<i64: 128, 128>}, {pipeline_mode = #tpu.pipeline_mode<synchronous>, transform_indices = @transform_19, window_bounds = array<i64: 1, 128>}, {transform_indices = @transform_20, window_bounds = array<i64: 1, 4, 128>}]} {
    %c0 = arith.constant 0 : index
    %c0_0 = arith.constant 0 : index
    %c0_1 = arith.constant 0 : index
    %0 = vector.load %arg2[%c0, %c0_0, %c0_1] : memref<1x64x64xbf16, #tpu.memory_space<vmem>>, vector<1x64x64xbf16>
    %1 = vector.shape_cast %0 : vector<1x64x64xbf16> to vector<64x64xbf16>
    %c0_2 = arith.constant 0 : index
    %c0_3 = arith.constant 0 : index
    %c0_4 = arith.constant 0 : index
    %2 = vector.load %arg1[%c0_2, %c0_3, %c0_4] : memref<1x64x128xbf16, #tpu.memory_space<vmem>>, vector<1x64x128xbf16>
    %3 = vector.shape_cast %2 : vector<1x64x128xbf16> to vector<64x128xbf16>
    %c0_5 = arith.constant 0 : index
    %c0_6 = arith.constant 0 : index
    %4 = vector.load %arg3[%c0_5, %c0_6] : memref<128x128xbf16, #tpu.memory_space<vmem>>, vector<128x128xbf16>
    %cst = arith.constant dense<0.000000e+00> : vector<64x128xf32>
    %5 = tpu.matmul %3, %4, %cst {dimension_numbers = #tpu.dot_dimension_numbers<[1], [0], [0], [1], [0, 0, 1, 1], [], []>} : vector<64x128xbf16>, vector<128x128xbf16>, vector<64x128xf32> -> vector<64x128xf32>
    %6 = arith.truncf %5 : vector<64x128xf32> to vector<64x128xbf16>
    %cst_7 = arith.constant dense<0.000000e+00> : vector<64x128xf32>
    %7 = tpu.matmul %1, %6, %cst_7 {dimension_numbers = #tpu.dot_dimension_numbers<[1], [0], [0], [1], [0, 0, 1, 1], [], []>} : vector<64x64xbf16>, vector<64x128xbf16>, vector<64x128xf32> -> vector<64x128xf32>
    %c0_8 = arith.constant 0 : index
    %c0_9 = arith.constant 0 : index
    %8 = vector.load %arg4[%c0_8, %c0_9] : memref<1x128xf32, #tpu.memory_space<vmem>>, vector<1x128xf32>
    %9 = vector.broadcast %8 : vector<1x128xf32> to vector<64x128xf32>
    %10 = arith.addf %7, %9 : vector<64x128xf32>
    %cst_10 = arith.constant 0.000000e+00 : f32
    %11 = vector.broadcast %cst_10 : f32 to vector<64x128xf32>
    %12 = arith.maximumf %10, %11 : vector<64x128xf32>
    %13 = arith.truncf %12 : vector<64x128xf32> to vector<64x128xbf16>
    %14 = vector.shape_cast %13 : vector<64x128xbf16> to vector<4x16x128xbf16>
    %cst_11 = arith.constant dense<0xFF80> : vector<4x128xbf16>
    %15 = vector.multi_reduction <maximumf>, %14, %cst_11 [1] : vector<4x16x128xbf16> to vector<4x128xbf16>
    %c0_12 = arith.constant 0 : index
    %c0_13 = arith.constant 0 : index
    %16 = vector.load %arg5[%c0_12, %c0_13] : memref<128x128xbf16, #tpu.memory_space<vmem>>, vector<128x128xbf16>
    %cst_14 = arith.constant dense<0.000000e+00> : vector<64x128xf32>
    %17 = tpu.matmul %13, %16, %cst_14 {dimension_numbers = #tpu.dot_dimension_numbers<[1], [0], [0], [1], [0, 0, 1, 1], [], []>} : vector<64x128xbf16>, vector<128x128xbf16>, vector<64x128xf32> -> vector<64x128xf32>
    %c0_15 = arith.constant 0 : index
    %c0_16 = arith.constant 0 : index
    %18 = vector.load %arg6[%c0_15, %c0_16] : memref<128x128xbf16, #tpu.memory_space<vmem>>, vector<128x128xbf16>
    %cst_17 = arith.constant dense<0.000000e+00> : vector<4x128xf32>
    %19 = tpu.matmul %15, %18, %cst_17 {dimension_numbers = #tpu.dot_dimension_numbers<[1], [0], [0], [1], [0, 0, 1, 1], [], []>} : vector<4x128xbf16>, vector<128x128xbf16>, vector<4x128xf32> -> vector<4x128xf32>
    %20 = vector.shape_cast %17 : vector<64x128xf32> to vector<4x16x128xf32>
    %21 = vector.shape_cast %19 : vector<4x128xf32> to vector<4x1x128xf32>
    %22 = vector.broadcast %21 : vector<4x1x128xf32> to vector<4x16x128xf32>
    %23 = arith.addf %20, %22 : vector<4x16x128xf32>
    %24 = vector.shape_cast %23 : vector<4x16x128xf32> to vector<64x128xf32>
    %25 = arith.truncf %24 : vector<64x128xf32> to vector<64x128xbf16>
    %cst_18 = arith.constant dense<0.000000e+00> : vector<64x128xf32>
    %26 = tpu.matmul %1, %25, %cst_18 {dimension_numbers = #tpu.dot_dimension_numbers<[1], [0], [0], [1], [0, 0, 1, 1], [], []>} : vector<64x64xbf16>, vector<64x128xbf16>, vector<64x128xf32> -> vector<64x128xf32>
    %c0_19 = arith.constant 0 : index
    %c0_20 = arith.constant 0 : index
    %27 = vector.load %arg7[%c0_19, %c0_20] : memref<1x128xf32, #tpu.memory_space<vmem>>, vector<1x128xf32>
    %28 = vector.broadcast %27 : vector<1x128xf32> to vector<64x128xf32>
    %29 = arith.addf %26, %28 : vector<64x128xf32>
    %cst_21 = arith.constant 0.000000e+00 : f32
    %30 = vector.broadcast %cst_21 : f32 to vector<64x128xf32>
    %31 = arith.maximumf %29, %30 : vector<64x128xf32>
    %32 = arith.truncf %31 : vector<64x128xf32> to vector<64x128xbf16>
    %33 = vector.shape_cast %32 : vector<64x128xbf16> to vector<4x16x128xbf16>
    %cst_22 = arith.constant dense<0xFF80> : vector<4x128xbf16>
    %34 = vector.multi_reduction <maximumf>, %33, %cst_22 [1] : vector<4x16x128xbf16> to vector<4x128xbf16>
    %c0_23 = arith.constant 0 : index
    %c0_24 = arith.constant 0 : index
    %35 = vector.load %arg8[%c0_23, %c0_24] : memref<128x128xbf16, #tpu.memory_space<vmem>>, vector<128x128xbf16>
    %cst_25 = arith.constant dense<0.000000e+00> : vector<64x128xf32>
    %36 = tpu.matmul %32, %35, %cst_25 {dimension_numbers = #tpu.dot_dimension_numbers<[1], [0], [0], [1], [0, 0, 1, 1], [], []>} : vector<64x128xbf16>, vector<128x128xbf16>, vector<64x128xf32> -> vector<64x128xf32>
    %c0_26 = arith.constant 0 : index
    %c0_27 = arith.constant 0 : index
    %37 = vector.load %arg9[%c0_26, %c0_27] : memref<128x128xbf16, #tpu.memory_space<vmem>>, vector<128x128xbf16>
    %cst_28 = arith.constant dense<0.000000e+00> : vector<4x128xf32>
    %38 = tpu.matmul %34, %37, %cst_28 {dimension_numbers = #tpu.dot_dimension_numbers<[1], [0], [0], [1], [0, 0, 1, 1], [], []>} : vector<4x128xbf16>, vector<128x128xbf16>, vector<4x128xf32> -> vector<4x128xf32>
    %39 = vector.shape_cast %36 : vector<64x128xf32> to vector<4x16x128xf32>
    %40 = vector.shape_cast %38 : vector<4x128xf32> to vector<4x1x128xf32>
    %41 = vector.broadcast %40 : vector<4x1x128xf32> to vector<4x16x128xf32>
    %42 = arith.addf %39, %41 : vector<4x16x128xf32>
    %43 = vector.shape_cast %42 : vector<4x16x128xf32> to vector<64x128xf32>
    %44 = arith.truncf %43 : vector<64x128xf32> to vector<64x128xbf16>
    %cst_29 = arith.constant dense<0.000000e+00> : vector<64x128xf32>
    %45 = tpu.matmul %1, %44, %cst_29 {dimension_numbers = #tpu.dot_dimension_numbers<[1], [0], [0], [1], [0, 0, 1, 1], [], []>} : vector<64x64xbf16>, vector<64x128xbf16>, vector<64x128xf32> -> vector<64x128xf32>
    %c0_30 = arith.constant 0 : index
    %c0_31 = arith.constant 0 : index
    %46 = vector.load %arg10[%c0_30, %c0_31] : memref<1x128xf32, #tpu.memory_space<vmem>>, vector<1x128xf32>
    %47 = vector.broadcast %46 : vector<1x128xf32> to vector<64x128xf32>
    %48 = arith.addf %45, %47 : vector<64x128xf32>
    %cst_32 = arith.constant 0.000000e+00 : f32
    %49 = vector.broadcast %cst_32 : f32 to vector<64x128xf32>
    %50 = arith.maximumf %48, %49 : vector<64x128xf32>
    %51 = arith.truncf %50 : vector<64x128xf32> to vector<64x128xbf16>
    %52 = vector.shape_cast %51 : vector<64x128xbf16> to vector<4x16x128xbf16>
    %cst_33 = arith.constant dense<0xFF80> : vector<4x128xbf16>
    %53 = vector.multi_reduction <maximumf>, %52, %cst_33 [1] : vector<4x16x128xbf16> to vector<4x128xbf16>
    %c0_34 = arith.constant 0 : index
    %c0_35 = arith.constant 0 : index
    %54 = vector.load %arg11[%c0_34, %c0_35] : memref<128x256xbf16, #tpu.memory_space<vmem>>, vector<128x256xbf16>
    %cst_36 = arith.constant dense<0.000000e+00> : vector<64x256xf32>
    %55 = tpu.matmul %51, %54, %cst_36 {dimension_numbers = #tpu.dot_dimension_numbers<[1], [0], [0], [1], [0, 0, 1, 1], [], []>} : vector<64x128xbf16>, vector<128x256xbf16>, vector<64x256xf32> -> vector<64x256xf32>
    %c0_37 = arith.constant 0 : index
    %c0_38 = arith.constant 0 : index
    %56 = vector.load %arg12[%c0_37, %c0_38] : memref<128x256xbf16, #tpu.memory_space<vmem>>, vector<128x256xbf16>
    %cst_39 = arith.constant dense<0.000000e+00> : vector<4x256xf32>
    %57 = tpu.matmul %53, %56, %cst_39 {dimension_numbers = #tpu.dot_dimension_numbers<[1], [0], [0], [1], [0, 0, 1, 1], [], []>} : vector<4x128xbf16>, vector<128x256xbf16>, vector<4x256xf32> -> vector<4x256xf32>
    %58 = vector.shape_cast %55 : vector<64x256xf32> to vector<4x16x256xf32>
    %59 = vector.shape_cast %57 : vector<4x256xf32> to vector<4x1x256xf32>
    %60 = vector.broadcast %59 : vector<4x1x256xf32> to vector<4x16x256xf32>
    %61 = arith.addf %58, %60 : vector<4x16x256xf32>
    %62 = vector.shape_cast %61 : vector<4x16x256xf32> to vector<64x256xf32>
    %63 = arith.truncf %62 : vector<64x256xf32> to vector<64x256xbf16>
    %cst_40 = arith.constant dense<0.000000e+00> : vector<64x256xf32>
    %64 = tpu.matmul %1, %63, %cst_40 {dimension_numbers = #tpu.dot_dimension_numbers<[1], [0], [0], [1], [0, 0, 1, 1], [], []>} : vector<64x64xbf16>, vector<64x256xbf16>, vector<64x256xf32> -> vector<64x256xf32>
    %c0_41 = arith.constant 0 : index
    %c0_42 = arith.constant 0 : index
    %65 = vector.load %arg13[%c0_41, %c0_42] : memref<1x256xf32, #tpu.memory_space<vmem>>, vector<1x256xf32>
    %66 = vector.broadcast %65 : vector<1x256xf32> to vector<64x256xf32>
    %67 = arith.addf %64, %66 : vector<64x256xf32>
    %cst_43 = arith.constant 0.000000e+00 : f32
    %68 = vector.broadcast %cst_43 : f32 to vector<64x256xf32>
    %69 = arith.maximumf %67, %68 : vector<64x256xf32>
    %70 = arith.truncf %69 : vector<64x256xf32> to vector<64x256xbf16>
    %71 = vector.shape_cast %70 : vector<64x256xbf16> to vector<4x16x256xbf16>
    %72 = arith.extf %71 : vector<4x16x256xbf16> to vector<4x16x256xf32>
    %cst_44 = arith.constant dense<0.000000e+00> : vector<4x256xf32>
    %73 = vector.multi_reduction <add>, %72, %cst_44 [1] : vector<4x16x256xf32> to vector<4x256xf32>
    %cst_45 = arith.constant 1.600000e+01 : f32
    %74 = vector.broadcast %cst_45 : f32 to vector<4x256xf32>
    %75 = arith.divf %73, %74 : vector<4x256xf32>
    %76 = arith.truncf %75 : vector<4x256xf32> to vector<4x256xbf16>
    %cst_46 = arith.constant dense<0xFF80> : vector<4x256xbf16>
    %77 = vector.multi_reduction <maximumf>, %71, %cst_46 [1] : vector<4x16x256xbf16> to vector<4x256xbf16>
    %c0_47 = arith.constant 0 : index
    %c0_48 = arith.constant 0 : index
    %78 = vector.load %arg14[%c0_47, %c0_48] : memref<256x128xbf16, #tpu.memory_space<vmem>>, vector<256x128xbf16>
    %cst_49 = arith.constant dense<0.000000e+00> : vector<4x128xf32>
    %79 = tpu.matmul %76, %78, %cst_49 {dimension_numbers = #tpu.dot_dimension_numbers<[1], [0], [0], [1], [0, 0, 1, 1], [], []>} : vector<4x256xbf16>, vector<256x128xbf16>, vector<4x128xf32> -> vector<4x128xf32>
    %c0_50 = arith.constant 0 : index
    %c0_51 = arith.constant 0 : index
    %80 = vector.load %arg15[%c0_50, %c0_51] : memref<256x128xbf16, #tpu.memory_space<vmem>>, vector<256x128xbf16>
    %cst_52 = arith.constant dense<0.000000e+00> : vector<4x128xf32>
    %81 = tpu.matmul %77, %80, %cst_52 {dimension_numbers = #tpu.dot_dimension_numbers<[1], [0], [0], [1], [0, 0, 1, 1], [], []>} : vector<4x256xbf16>, vector<256x128xbf16>, vector<4x128xf32> -> vector<4x128xf32>
    %82 = arith.addf %79, %81 : vector<4x128xf32>
    %c0_53 = arith.constant 0 : index
    %c0_54 = arith.constant 0 : index
    %83 = vector.load %arg16[%c0_53, %c0_54] : memref<1x128xf32, #tpu.memory_space<vmem>>, vector<1x128xf32>
    %84 = vector.broadcast %83 : vector<1x128xf32> to vector<4x128xf32>
    %85 = arith.addf %82, %84 : vector<4x128xf32>
    %cst_55 = arith.constant 0.000000e+00 : f32
    %86 = vector.broadcast %cst_55 : f32 to vector<4x128xf32>
    %87 = arith.maximumf %85, %86 : vector<4x128xf32>
    %88 = arith.truncf %87 : vector<4x128xf32> to vector<4x128xbf16>
    %c0_56 = arith.constant 0 : index
    %c0_57 = arith.constant 0 : index
    %89 = vector.load %arg17[%c0_56, %c0_57] : memref<128x128xbf16, #tpu.memory_space<vmem>>, vector<128x128xbf16>
    %cst_58 = arith.constant dense<0.000000e+00> : vector<4x128xf32>
    %90 = tpu.matmul %88, %89, %cst_58 {dimension_numbers = #tpu.dot_dimension_numbers<[1], [0], [0], [1], [0, 0, 1, 1], [], []>} : vector<4x128xbf16>, vector<128x128xbf16>, vector<4x128xf32> -> vector<4x128xf32>
    %c0_59 = arith.constant 0 : index
    %c0_60 = arith.constant 0 : index
    %91 = vector.load %arg18[%c0_59, %c0_60] : memref<1x128xf32, #tpu.memory_space<vmem>>, vector<1x128xf32>
    %92 = vector.broadcast %91 : vector<1x128xf32> to vector<4x128xf32>
    %93 = arith.addf %90, %92 : vector<4x128xf32>
    %cst_61 = arith.constant 0.000000e+00 : f32
    %94 = vector.broadcast %cst_61 : f32 to vector<4x128xf32>
    %95 = arith.maximumf %93, %94 : vector<4x128xf32>
    %96 = arith.truncf %95 : vector<4x128xf32> to vector<4x128xbf16>
    %c0_62 = arith.constant 0 : index
    %c0_63 = arith.constant 0 : index
    %97 = vector.load %arg19[%c0_62, %c0_63] : memref<128x128xbf16, #tpu.memory_space<vmem>>, vector<128x128xbf16>
    %cst_64 = arith.constant dense<0.000000e+00> : vector<4x128xf32>
    %98 = tpu.matmul %96, %97, %cst_64 {dimension_numbers = #tpu.dot_dimension_numbers<[1], [0], [0], [1], [0, 0, 1, 1], [], []>} : vector<4x128xbf16>, vector<128x128xbf16>, vector<4x128xf32> -> vector<4x128xf32>
    %c0_65 = arith.constant 0 : index
    %c0_66 = arith.constant 0 : index
    %99 = vector.load %arg20[%c0_65, %c0_66] : memref<1x128xf32, #tpu.memory_space<vmem>>, vector<1x128xf32>
    %100 = vector.broadcast %99 : vector<1x128xf32> to vector<4x128xf32>
    %101 = arith.addf %98, %100 : vector<4x128xf32>
    %cst_67 = arith.constant dense<0xFF800000> : vector<4xf32>
    %102 = vector.multi_reduction <maximumf>, %101, %cst_67 [1] : vector<4x128xf32> to vector<4xf32>
    %103 = vector.shape_cast %102 : vector<4xf32> to vector<4x1xf32>
    %104 = vector.broadcast %103 : vector<4x1xf32> to vector<4x128xf32>
    %105 = arith.subf %101, %104 : vector<4x128xf32>
    %106 = math.exp %105 : vector<4x128xf32>
    %cst_68 = arith.constant dense<0.000000e+00> : vector<4xf32>
    %107 = vector.multi_reduction <add>, %106, %cst_68 [1] : vector<4x128xf32> to vector<4xf32>
    %108 = vector.shape_cast %107 : vector<4xf32> to vector<4x1xf32>
    %109 = math.log %108 : vector<4x1xf32>
    %110 = arith.addf %109, %103 : vector<4x1xf32>
    %111 = vector.broadcast %110 : vector<4x1xf32> to vector<4x128xf32>
    %112 = arith.subf %101, %111 : vector<4x128xf32>
    %c0_69 = arith.constant 0 : index
    %c0_70 = arith.constant 0 : index
    %c0_71 = arith.constant 0 : index
    %113 = vector.load %arg21[%c0_69, %c0_70, %c0_71] : memref<1x4x128xf32, #tpu.memory_space<vmem>>, vector<1x4x128xf32>
    %114 = vector.shape_cast %113 : vector<1x4x128xf32> to vector<4x128xf32>
    %115 = vector.shape_cast %112 : vector<4x128xf32> to vector<1x4x128xf32>
    tpu.vector_store %arg21[%c0_69, %c0_70, %c0_71], %115 {strides = array<i32>} : memref<1x4x128xf32, #tpu.memory_space<vmem>>, vector<1x4x128xf32>,
    return
  }
  func.func @transform_0(%arg0: i32) -> (i32, i32, i32) {
    %c0_i32 = arith.constant 0 : i32
    %c0_i32_0 = arith.constant 0 : i32
    %c0_i32_1 = arith.constant 0 : i32
    return %arg0, %c0_i32, %c0_i32_0 : i32, i32, i32
  }
  func.func @transform_1(%arg0: i32) -> (i32, i32, i32) {
    %c0_i32 = arith.constant 0 : i32
    %c0_i32_0 = arith.constant 0 : i32
    %c0_i32_1 = arith.constant 0 : i32
    return %arg0, %c0_i32, %c0_i32_0 : i32, i32, i32
  }
  func.func @transform_2(%arg0: i32) -> (i32, i32) {
    %c0_i32 = arith.constant 0 : i32
    %c0_i32_0 = arith.constant 0 : i32
    %c0_i32_1 = arith.constant 0 : i32
    return %c0_i32, %c0_i32_0 : i32, i32
  }
  func.func @transform_3(%arg0: i32) -> (i32, i32) {
    %c0_i32 = arith.constant 0 : i32
    %c0_i32_0 = arith.constant 0 : i32
    %c0_i32_1 = arith.constant 0 : i32
    return %c0_i32, %c0_i32_0 : i32, i32
  }
  func.func @transform_4(%arg0: i32) -> (i32, i32) {
    %c0_i32 = arith.constant 0 : i32
    %c0_i32_0 = arith.constant 0 : i32
    %c0_i32_1 = arith.constant 0 : i32
    return %c0_i32, %c0_i32_0 : i32, i32
  }
  func.func @transform_5(%arg0: i32) -> (i32, i32) {
    %c0_i32 = arith.constant 0 : i32
    %c0_i32_0 = arith.constant 0 : i32
    %c0_i32_1 = arith.constant 0 : i32
    return %c0_i32, %c0_i32_0 : i32, i32
  }
  func.func @transform_6(%arg0: i32) -> (i32, i32) {
    %c0_i32 = arith.constant 0 : i32
    %c0_i32_0 = arith.constant 0 : i32
    %c0_i32_1 = arith.constant 0 : i32
    return %c0_i32, %c0_i32_0 : i32, i32
  }
  func.func @transform_7(%arg0: i32) -> (i32, i32) {
    %c0_i32 = arith.constant 0 : i32
    %c0_i32_0 = arith.constant 0 : i32
    %c0_i32_1 = arith.constant 0 : i32
    return %c0_i32, %c0_i32_0 : i32, i32
  }
  func.func @transform_8(%arg0: i32) -> (i32, i32) {
    %c0_i32 = arith.constant 0 : i32
    %c0_i32_0 = arith.constant 0 : i32
    %c0_i32_1 = arith.constant 0 : i32
    return %c0_i32, %c0_i32_0 : i32, i32
  }
  func.func @transform_9(%arg0: i32) -> (i32, i32) {
    %c0_i32 = arith.constant 0 : i32
    %c0_i32_0 = arith.constant 0 : i32
    %c0_i32_1 = arith.constant 0 : i32
    return %c0_i32, %c0_i32_0 : i32, i32
  }
  func.func @transform_10(%arg0: i32) -> (i32, i32) {
    %c0_i32 = arith.constant 0 : i32
    %c0_i32_0 = arith.constant 0 : i32
    %c0_i32_1 = arith.constant 0 : i32
    return %c0_i32, %c0_i32_0 : i32, i32
  }
  func.func @transform_11(%arg0: i32) -> (i32, i32) {
    %c0_i32 = arith.constant 0 : i32
    %c0_i32_0 = arith.constant 0 : i32
    %c0_i32_1 = arith.constant 0 : i32
    return %c0_i32, %c0_i32_0 : i32, i32
  }
  func.func @transform_12(%arg0: i32) -> (i32, i32) {
    %c0_i32 = arith.constant 0 : i32
    %c0_i32_0 = arith.constant 0 : i32
    %c0_i32_1 = arith.constant 0 : i32
    return %c0_i32, %c0_i32_0 : i32, i32
  }
  func.func @transform_13(%arg0: i32) -> (i32, i32) {
    %c0_i32 = arith.constant 0 : i32
    %c0_i32_0 = arith.constant 0 : i32
    %c0_i32_1 = arith.constant 0 : i32
    return %c0_i32, %c0_i32_0 : i32, i32
  }
  func.func @transform_14(%arg0: i32) -> (i32, i32) {
    %c0_i32 = arith.constant 0 : i32
    %c0_i32_0 = arith.constant 0 : i32
    %c0_i32_1 = arith.constant 0 : i32
    return %c0_i32, %c0_i32_0 : i32, i32
  }
  func.func @transform_15(%arg0: i32) -> (i32, i32) {
    %c0_i32 = arith.constant 0 : i32
    %c0_i32_0 = arith.constant 0 : i32
    %c0_i32_1 = arith.constant 0 : i32
    return %c0_i32, %c0_i32_0 : i32, i32
  }
  func.func @transform_16(%arg0: i32) -> (i32, i32) {
    %c0_i32 = arith.constant 0 : i32
    %c0_i32_0 = arith.constant 0 : i32
    %c0_i32_1 = arith.constant 0 : i32
    return %c0_i32, %c0_i32_0 : i32, i32
  }
  func.func @transform_17(%arg0: i32) -> (i32, i32) {
    %c0_i32 = arith.constant 0 : i32
    %c0_i32_0 = arith.constant 0 : i32
    %c0_i32_1 = arith.constant 0 : i32
    return %c0_i32, %c0_i32_0 : i32, i32
  }
  func.func @transform_18(%arg0: i32) -> (i32, i32) {
    %c0_i32 = arith.constant 0 : i32
    %c0_i32_0 = arith.constant 0 : i32
    %c0_i32_1 = arith.constant 0 : i32
    return %c0_i32, %c0_i32_0 : i32, i32
  }
  func.func @transform_19(%arg0: i32) -> (i32, i32) {
    %c0_i32 = arith.constant 0 : i32
    %c0_i32_0 = arith.constant 0 : i32
    %c0_i32_1 = arith.constant 0 : i32
    return %c0_i32, %c0_i32_0 : i32, i32
  }
  func.func @transform_20(%arg0: i32) -> (i32, i32, i32) {
    %c0_i32 = arith.constant 0 : i32
    %c0_i32_0 = arith.constant 0 : i32
    %c0_i32_1 = arith.constant 0 : i32
    return %arg0, %c0_i32, %c0_i32_0 : i32, i32, i32
  }
}

module attributes {stable_mosaic.version = 11 : i64} {
  func.func @kernel(%arg0: i32, %arg1: memref<1x64x128xbf16, #tpu.memory_space<vmem>>, %arg2: memref<1x64x64xbf16, #tpu.memory_space<vmem>>, %arg3: memref<128x128xbf16, #tpu.memory_space<vmem>>, %arg4: memref<1x128xf32, #tpu.memory_space<vmem>>, %arg5: memref<128x128xbf16, #tpu.memory_space<vmem>>, %arg6: memref<128x128xbf16, #tpu.memory_space<vmem>>, %arg7: memref<1x128xf32, #tpu.memory_space<vmem>>, %arg8: memref<128x128xbf16, #tpu.memory_space<vmem>>, %arg9: memref<128x128xbf16, #tpu.memory_space<vmem>>, %arg10: memref<1x128xf32, #tpu.memory_space<vmem>>, %arg11: memref<128x256xbf16, #tpu.memory_space<vmem>>, %arg12: memref<128x256xbf16, #tpu.memory_space<vmem>>, %arg13: memref<1x256xf32, #tpu.memory_space<vmem>>, %arg14: memref<256x128xbf16, #tpu.memory_space<vmem>>, %arg15: memref<256x128xbf16, #tpu.memory_space<vmem>>, %arg16: memref<1x128xf32, #tpu.memory_space<vmem>>, %arg17: memref<128x128xbf16, #tpu.memory_space<vmem>>, %arg18: memref<1x128xf32, #tpu.memory_space<vmem>>, %arg19: memref<128x128xbf16, #tpu.memory_space<vmem>>, %arg20: memref<1x128xf32, #tpu.memory_space<vmem>>, %arg21: memref<1x4x128xf32, #tpu.memory_space<vmem>>) attributes {dimension_semantics = [#tpu.dimension_semantics<parallel>], iteration_bounds = array<i64: 2>, scalar_prefetch = 0 : i64, scratch_operands = 0 : i64, tpu.core_type = #tpu.core_type<tc>, window_params = [{transform_indices = @transform_0, window_bounds = array<i64: 1, 64, 128>}, {transform_indices = @transform_1, window_bounds = array<i64: 1, 64, 64>}, {pipeline_mode = #tpu.pipeline_mode<synchronous>, transform_indices = @transform_2, window_bounds = array<i64: 128, 128>}, {pipeline_mode = #tpu.pipeline_mode<synchronous>, transform_indices = @transform_3, window_bounds = array<i64: 1, 128>}, {pipeline_mode = #tpu.pipeline_mode<synchronous>, transform_indices = @transform_4, window_bounds = array<i64: 128, 128>}, {pipeline_mode = #tpu.pipeline_mode<synchronous>, transform_indices = @transform_5, window_bounds = array<i64: 128, 128>}, {pipeline_mode = #tpu.pipeline_mode<synchronous>, transform_indices = @transform_6, window_bounds = array<i64: 1, 128>}, {pipeline_mode = #tpu.pipeline_mode<synchronous>, transform_indices = @transform_7, window_bounds = array<i64: 128, 128>}, {pipeline_mode = #tpu.pipeline_mode<synchronous>, transform_indices = @transform_8, window_bounds = array<i64: 128, 128>}, {pipeline_mode = #tpu.pipeline_mode<synchronous>, transform_indices = @transform_9, window_bounds = array<i64: 1, 128>}, {pipeline_mode = #tpu.pipeline_mode<synchronous>, transform_indices = @transform_10, window_bounds = array<i64: 128, 256>}, {pipeline_mode = #tpu.pipeline_mode<synchronous>, transform_indices = @transform_11, window_bounds = array<i64: 128, 256>}, {pipeline_mode = #tpu.pipeline_mode<synchronous>, transform_indices = @transform_12, window_bounds = array<i64: 1, 256>}, {pipeline_mode = #tpu.pipeline_mode<synchronous>, transform_indices = @transform_13, window_bounds = array<i64: 256, 128>}, {pipeline_mode = #tpu.pipeline_mode<synchronous>, transform_indices = @transform_14, window_bounds = array<i64: 256, 128>}, {pipeline_mode = #tpu.pipeline_mode<synchronous>, transform_indices = @transform_15, window_bounds = array<i64: 1, 128>}, {pipeline_mode = #tpu.pipeline_mode<synchronous>, transform_indices = @transform_16, window_bounds = array<i64: 128, 128>}, {pipeline_mode = #tpu.pipeline_mode<synchronous>, transform_indices = @transform_17, window_bounds = array<i64: 1, 128>}, {pipeline_mode = #tpu.pipeline_mode<synchronous>, transform_indices = @transform_18, window_bounds = array<i64: 128, 128>}, {pipeline_mode = #tpu.pipeline_mode<synchronous>, transform_indices = @transform_19, window_bounds = array<i64: 1, 128>}, {transform_indices = @transform_20, window_bounds = array<i64: 1, 4, 128>}]} {
    %c0 = arith.constant 0 : index
    %c0_0 = arith.constant 0 : index
    %c0_1 = arith.constant 0 : index
    %0 = vector.load %arg2[%c0, %c0_0, %c0_1] : memref<1x64x64xbf16, #tpu.memory_space<vmem>>, vector<1x64x64xbf16>
    %1 = vector.shape_cast %0 : vector<1x64x64xbf16> to vector<64x64xbf16>
    %c0_2 = arith.constant 0 : index
    %c0_3 = arith.constant 0 : index
    %c0_4 = arith.constant 0 : index
    %2 = vector.load %arg1[%c0_2, %c0_3, %c0_4] : memref<1x64x128xbf16, #tpu.memory_space<vmem>>, vector<1x64x128xbf16>
    %3 = vector.shape_cast %2 : vector<1x64x128xbf16> to vector<64x128xbf16>
    %c0_5 = arith.constant 0 : index
    %c0_6 = arith.constant 0 : index
    %4 = vector.load %arg3[%c0_5, %c0_6] : memref<128x128xbf16, #tpu.memory_space<vmem>>, vector<128x128xbf16>
    %cst = arith.constant dense<0.000000e+00> : vector<64x128xf32>
    %5 = tpu.matmul %3, %4, %cst {dimension_numbers = #tpu.dot_dimension_numbers<[1], [0], [0], [1], [0, 0, 1, 1], [], []>} : vector<64x128xbf16>, vector<128x128xbf16>, vector<64x128xf32> -> vector<64x128xf32>
    %6 = arith.truncf %5 : vector<64x128xf32> to vector<64x128xbf16>
    %cst_7 = arith.constant dense<0.000000e+00> : vector<64x128xf32>
    %7 = tpu.matmul %1, %6, %cst_7 {dimension_numbers = #tpu.dot_dimension_numbers<[1], [0], [0], [1], [0, 0, 1, 1], [], []>} : vector<64x64xbf16>, vector<64x128xbf16>, vector<64x128xf32> -> vector<64x128xf32>
    %c0_8 = arith.constant 0 : index
    %c0_9 = arith.constant 0 : index
    %8 = vector.load %arg4[%c0_8, %c0_9] : memref<1x128xf32, #tpu.memory_space<vmem>>, vector<1x128xf32>
    %9 = vector.broadcast %8 : vector<1x128xf32> to vector<64x128xf32>
    %10 = arith.addf %7, %9 : vector<64x128xf32>
    %cst_10 = arith.constant 0.000000e+00 : f32
    %11 = vector.broadcast %cst_10 : f32 to vector<64x128xf32>
    %12 = arith.maximumf %10, %11 : vector<64x128xf32>
    %13 = arith.truncf %12 : vector<64x128xf32> to vector<64x128xbf16>
    %14 = vector.shape_cast %13 : vector<64x128xbf16> to vector<4x16x128xbf16>
    %cst_11 = arith.constant dense<0xFF80> : vector<4x128xbf16>
    %15 = vector.multi_reduction <maximumf>, %14, %cst_11 [1] : vector<4x16x128xbf16> to vector<4x128xbf16>
    %c0_12 = arith.constant 0 : index
    %c0_13 = arith.constant 0 : index
    %16 = vector.load %arg5[%c0_12, %c0_13] : memref<128x128xbf16, #tpu.memory_space<vmem>>, vector<128x128xbf16>
    %cst_14 = arith.constant dense<0.000000e+00> : vector<64x128xf32>
    %17 = tpu.matmul %13, %16, %cst_14 {dimension_numbers = #tpu.dot_dimension_numbers<[1], [0], [0], [1], [0, 0, 1, 1], [], []>} : vector<64x128xbf16>, vector<128x128xbf16>, vector<64x128xf32> -> vector<64x128xf32>
    %c0_15 = arith.constant 0 : index
    %c0_16 = arith.constant 0 : index
    %18 = vector.load %arg6[%c0_15, %c0_16] : memref<128x128xbf16, #tpu.memory_space<vmem>>, vector<128x128xbf16>
    %cst_17 = arith.constant dense<0.000000e+00> : vector<4x128xf32>
    %19 = tpu.matmul %15, %18, %cst_17 {dimension_numbers = #tpu.dot_dimension_numbers<[1], [0], [0], [1], [0, 0, 1, 1], [], []>} : vector<4x128xbf16>, vector<128x128xbf16>, vector<4x128xf32> -> vector<4x128xf32>
    %20 = vector.shape_cast %17 : vector<64x128xf32> to vector<4x16x128xf32>
    %21 = vector.shape_cast %19 : vector<4x128xf32> to vector<4x1x128xf32>
    %22 = vector.broadcast %21 : vector<4x1x128xf32> to vector<4x16x128xf32>
    %23 = arith.addf %20, %22 : vector<4x16x128xf32>
    %24 = vector.shape_cast %23 : vector<4x16x128xf32> to vector<64x128xf32>
    %25 = arith.truncf %24 : vector<64x128xf32> to vector<64x128xbf16>
    %cst_18 = arith.constant dense<0.000000e+00> : vector<64x128xf32>
    %26 = tpu.matmul %1, %25, %cst_18 {dimension_numbers = #tpu.dot_dimension_numbers<[1], [0], [0], [1], [0, 0, 1, 1], [], []>} : vector<64x64xbf16>, vector<64x128xbf16>, vector<64x128xf32> -> vector<64x128xf32>
    %c0_19 = arith.constant 0 : index
    %c0_20 = arith.constant 0 : index
    %27 = vector.load %arg7[%c0_19, %c0_20] : memref<1x128xf32, #tpu.memory_space<vmem>>, vector<1x128xf32>
    %28 = vector.broadcast %27 : vector<1x128xf32> to vector<64x128xf32>
    %29 = arith.addf %26, %28 : vector<64x128xf32>
    %cst_21 = arith.constant 0.000000e+00 : f32
    %30 = vector.broadcast %cst_21 : f32 to vector<64x128xf32>
    %31 = arith.maximumf %29, %30 : vector<64x128xf32>
    %32 = arith.truncf %31 : vector<64x128xf32> to vector<64x128xbf16>
    %33 = vector.shape_cast %32 : vector<64x128xbf16> to vector<4x16x128xbf16>
    %cst_22 = arith.constant dense<0xFF80> : vector<4x128xbf16>
    %34 = vector.multi_reduction <maximumf>, %33, %cst_22 [1] : vector<4x16x128xbf16> to vector<4x128xbf16>
    %c0_23 = arith.constant 0 : index
    %c0_24 = arith.constant 0 : index
    %35 = vector.load %arg8[%c0_23, %c0_24] : memref<128x128xbf16, #tpu.memory_space<vmem>>, vector<128x128xbf16>
    %cst_25 = arith.constant dense<0.000000e+00> : vector<64x128xf32>
    %36 = tpu.matmul %32, %35, %cst_25 {dimension_numbers = #tpu.dot_dimension_numbers<[1], [0], [0], [1], [0, 0, 1, 1], [], []>} : vector<64x128xbf16>, vector<128x128xbf16>, vector<64x128xf32> -> vector<64x128xf32>
    %c0_26 = arith.constant 0 : index
    %c0_27 = arith.constant 0 : index
    %37 = vector.load %arg9[%c0_26, %c0_27] : memref<128x128xbf16, #tpu.memory_space<vmem>>, vector<128x128xbf16>
    %cst_28 = arith.constant dense<0.000000e+00> : vector<4x128xf32>
    %38 = tpu.matmul %34, %37, %cst_28 {dimension_numbers = #tpu.dot_dimension_numbers<[1], [0], [0], [1], [0, 0, 1, 1], [], []>} : vector<4x128xbf16>, vector<128x128xbf16>, vector<4x128xf32> -> vector<4x128xf32>
    %39 = vector.shape_cast %36 : vector<64x128xf32> to vector<4x16x128xf32>
    %40 = vector.shape_cast %38 : vector<4x128xf32> to vector<4x1x128xf32>
    %41 = vector.broadcast %40 : vector<4x1x128xf32> to vector<4x16x128xf32>
    %42 = arith.addf %39, %41 : vector<4x16x128xf32>
    %43 = vector.shape_cast %42 : vector<4x16x128xf32> to vector<64x128xf32>
    %44 = arith.truncf %43 : vector<64x128xf32> to vector<64x128xbf16>
    %cst_29 = arith.constant dense<0.000000e+00> : vector<64x128xf32>
    %45 = tpu.matmul %1, %44, %cst_29 {dimension_numbers = #tpu.dot_dimension_numbers<[1], [0], [0], [1], [0, 0, 1, 1], [], []>} : vector<64x64xbf16>, vector<64x128xbf16>, vector<64x128xf32> -> vector<64x128xf32>
    %c0_30 = arith.constant 0 : index
    %c0_31 = arith.constant 0 : index
    %46 = vector.load %arg10[%c0_30, %c0_31] : memref<1x128xf32, #tpu.memory_space<vmem>>, vector<1x128xf32>
    %47 = vector.broadcast %46 : vector<1x128xf32> to vector<64x128xf32>
    %48 = arith.addf %45, %47 : vector<64x128xf32>
    %cst_32 = arith.constant 0.000000e+00 : f32
    %49 = vector.broadcast %cst_32 : f32 to vector<64x128xf32>
    %50 = arith.maximumf %48, %49 : vector<64x128xf32>
    %51 = arith.truncf %50 : vector<64x128xf32> to vector<64x128xbf16>
    %52 = vector.shape_cast %51 : vector<64x128xbf16> to vector<4x16x128xbf16>
    %cst_33 = arith.constant dense<0xFF80> : vector<4x128xbf16>
    %53 = vector.multi_reduction <maximumf>, %52, %cst_33 [1] : vector<4x16x128xbf16> to vector<4x128xbf16>
    %c0_34 = arith.constant 0 : index
    %c0_35 = arith.constant 0 : index
    %54 = vector.load %arg11[%c0_34, %c0_35] : memref<128x256xbf16, #tpu.memory_space<vmem>>, vector<128x256xbf16>
    %cst_36 = arith.constant dense<0.000000e+00> : vector<64x256xf32>
    %55 = tpu.matmul %51, %54, %cst_36 {dimension_numbers = #tpu.dot_dimension_numbers<[1], [0], [0], [1], [0, 0, 1, 1], [], []>} : vector<64x128xbf16>, vector<128x256xbf16>, vector<64x256xf32> -> vector<64x256xf32>
    %c0_37 = arith.constant 0 : index
    %c0_38 = arith.constant 0 : index
    %56 = vector.load %arg12[%c0_37, %c0_38] : memref<128x256xbf16, #tpu.memory_space<vmem>>, vector<128x256xbf16>
    %cst_39 = arith.constant dense<0.000000e+00> : vector<4x256xf32>
    %57 = tpu.matmul %53, %56, %cst_39 {dimension_numbers = #tpu.dot_dimension_numbers<[1], [0], [0], [1], [0, 0, 1, 1], [], []>} : vector<4x128xbf16>, vector<128x256xbf16>, vector<4x256xf32> -> vector<4x256xf32>
    %58 = vector.shape_cast %55 : vector<64x256xf32> to vector<4x16x256xf32>
    %59 = vector.shape_cast %57 : vector<4x256xf32> to vector<4x1x256xf32>
    %60 = vector.broadcast %59 : vector<4x1x256xf32> to vector<4x16x256xf32>
    %61 = arith.addf %58, %60 : vector<4x16x256xf32>
    %62 = vector.shape_cast %61 : vector<4x16x256xf32> to vector<64x256xf32>
    %63 = arith.truncf %62 : vector<64x256xf32> to vector<64x256xbf16>
    %cst_40 = arith.constant dense<0.000000e+00> : vector<64x256xf32>
    %64 = tpu.matmul %1, %63, %cst_40 {dimension_numbers = #tpu.dot_dimension_numbers<[1], [0], [0], [1], [0, 0, 1, 1], [], []>} : vector<64x64xbf16>, vector<64x256xbf16>, vector<64x256xf32> -> vector<64x256xf32>
    %c0_41 = arith.constant 0 : index
    %c0_42 = arith.constant 0 : index
    %65 = vector.load %arg13[%c0_41, %c0_42] : memref<1x256xf32, #tpu.memory_space<vmem>>, vector<1x256xf32>
    %66 = vector.broadcast %65 : vector<1x256xf32> to vector<64x256xf32>
    %67 = arith.addf %64, %66 : vector<64x256xf32>
    %cst_43 = arith.constant 0.000000e+00 : f32
    %68 = vector.broadcast %cst_43 : f32 to vector<64x256xf32>
    %69 = arith.maximumf %67, %68 : vector<64x256xf32>
    %70 = arith.truncf %69 : vector<64x256xf32> to vector<64x256xbf16>
    %71 = vector.shape_cast %70 : vector<64x256xbf16> to vector<4x16x256xbf16>
    %72 = arith.extf %71 : vector<4x16x256xbf16> to vector<4x16x256xf32>
    %cst_44 = arith.constant dense<0.000000e+00> : vector<4x256xf32>
    %73 = vector.multi_reduction <add>, %72, %cst_44 [1] : vector<4x16x256xf32> to vector<4x256xf32>
    %cst_45 = arith.constant 1.600000e+01 : f32
    %74 = vector.broadcast %cst_45 : f32 to vector<4x256xf32>
    %75 = arith.divf %73, %74 : vector<4x256xf32>
    %76 = arith.truncf %75 : vector<4x256xf32> to vector<4x256xbf16>
    %cst_46 = arith.constant dense<0xFF80> : vector<4x256xbf16>
    %77 = vector.multi_reduction <maximumf>, %71, %cst_46 [1] : vector<4x16x256xbf16> to vector<4x256xbf16>
    %c0_47 = arith.constant 0 : index
    %c0_48 = arith.constant 0 : index
    %78 = vector.load %arg14[%c0_47, %c0_48] : memref<256x128xbf16, #tpu.memory_space<vmem>>, vector<256x128xbf16>
    %cst_49 = arith.constant dense<0.000000e+00> : vector<4x128xf32>
    %79 = tpu.matmul %76, %78, %cst_49 {dimension_numbers = #tpu.dot_dimension_numbers<[1], [0], [0], [1], [0, 0, 1, 1], [], []>} : vector<4x256xbf16>, vector<256x128xbf16>, vector<4x128xf32> -> vector<4x128xf32>
    %c0_50 = arith.constant 0 : index
    %c0_51 = arith.constant 0 : index
    %80 = vector.load %arg15[%c0_50, %c0_51] : memref<256x128xbf16, #tpu.memory_space<vmem>>, vector<256x128xbf16>
    %cst_52 = arith.constant dense<0.000000e+00> : vector<4x128xf32>
    %81 = tpu.matmul %77, %80, %cst_52 {dimension_numbers = #tpu.dot_dimension_numbers<[1], [0], [0], [1], [0, 0, 1, 1], [], []>} : vector<4x256xbf16>, vector<256x128xbf16>, vector<4x128xf32> -> vector<4x128xf32>
    %82 = arith.addf %79, %81 : vector<4x128xf32>
    %c0_53 = arith.constant 0 : index
    %c0_54 = arith.constant 0 : index
    %83 = vector.load %arg16[%c0_53, %c0_54] : memref<1x128xf32, #tpu.memory_space<vmem>>, vector<1x128xf32>
    %84 = vector.broadcast %83 : vector<1x128xf32> to vector<4x128xf32>
    %85 = arith.addf %82, %84 : vector<4x128xf32>
    %cst_55 = arith.constant 0.000000e+00 : f32
    %86 = vector.broadcast %cst_55 : f32 to vector<4x128xf32>
    %87 = arith.maximumf %85, %86 : vector<4x128xf32>
    %88 = arith.truncf %87 : vector<4x128xf32> to vector<4x128xbf16>
    %c0_56 = arith.constant 0 : index
    %c0_57 = arith.constant 0 : index
    %89 = vector.load %arg17[%c0_56, %c0_57] : memref<128x128xbf16, #tpu.memory_space<vmem>>, vector<128x128xbf16>
    %cst_58 = arith.constant dense<0.000000e+00> : vector<4x128xf32>
    %90 = tpu.matmul %88, %89, %cst_58 {dimension_numbers = #tpu.dot_dimension_numbers<[1], [0], [0], [1], [0, 0, 1, 1], [], []>} : vector<4x128xbf16>, vector<128x128xbf16>, vector<4x128xf32> -> vector<4x128xf32>
    %c0_59 = arith.constant 0 : index
    %c0_60 = arith.constant 0 : index
    %91 = vector.load %arg18[%c0_59, %c0_60] : memref<1x128xf32, #tpu.memory_space<vmem>>, vector<1x128xf32>
    %92 = vector.broadcast %91 : vector<1x128xf32> to vector<4x128xf32>
    %93 = arith.addf %90, %92 : vector<4x128xf32>
    %cst_61 = arith.constant 0.000000e+00 : f32
    %94 = vector.broadcast %cst_61 : f32 to vector<4x128xf32>
    %95 = arith.maximumf %93, %94 : vector<4x128xf32>
    %96 = arith.truncf %95 : vector<4x128xf32> to vector<4x128xbf16>
    %c0_62 = arith.constant 0 : index
    %c0_63 = arith.constant 0 : index
    %97 = vector.load %arg19[%c0_62, %c0_63] : memref<128x128xbf16, #tpu.memory_space<vmem>>, vector<128x128xbf16>
    %cst_64 = arith.constant dense<0.000000e+00> : vector<4x128xf32>
    %98 = tpu.matmul %96, %97, %cst_64 {dimension_numbers = #tpu.dot_dimension_numbers<[1], [0], [0], [1], [0, 0, 1, 1], [], []>} : vector<4x128xbf16>, vector<128x128xbf16>, vector<4x128xf32> -> vector<4x128xf32>
    %c0_65 = arith.constant 0 : index
    %c0_66 = arith.constant 0 : index
    %99 = vector.load %arg20[%c0_65, %c0_66] : memref<1x128xf32, #tpu.memory_space<vmem>>, vector<1x128xf32>
    %100 = vector.broadcast %99 : vector<1x128xf32> to vector<4x128xf32>
    %101 = arith.addf %98, %100 : vector<4x128xf32>
    %cst_67 = arith.constant dense<0xFF800000> : vector<4xf32>
    %102 = vector.multi_reduction <maximumf>, %101, %cst_67 [1] : vector<4x128xf32> to vector<4xf32>
    %103 = vector.shape_cast %102 : vector<4xf32> to vector<4x1xf32>
    %104 = vector.broadcast %103 : vector<4x1xf32> to vector<4x128xf32>
    %105 = arith.subf %101, %104 : vector<4x128xf32>
    %106 = math.exp %105 : vector<4x128xf32>
    %cst_68 = arith.constant dense<0.000000e+00> : vector<4xf32>
    %107 = vector.multi_reduction <add>, %106, %cst_68 [1] : vector<4x128xf32> to vector<4xf32>
    %108 = vector.shape_cast %107 : vector<4xf32> to vector<4x1xf32>
    %109 = math.log %108 : vector<4x1xf32>
    %110 = arith.addf %109, %103 : vector<4x1xf32>
    %111 = vector.broadcast %110 : vector<4x1xf32> to vector<4x128xf32>
    %112 = arith.subf %101, %111 : vector<4x128xf32>
    %c0_69 = arith.constant 0 : index
    %c0_70 = arith.constant 0 : index
    %c0_71 = arith.constant 0 : index
    %113 = vector.load %arg21[%c0_69, %c0_70, %c0_71] : memref<1x4x128xf32, #tpu.memory_space<vmem>>, vector<1x4x128xf32>
    %114 = vector.shape_cast %113 : vector<1x4x128xf32> to vector<4x128xf32>
    %115 = vector.shape_cast %112 : vector<4x128xf32> to vector<1x4x128xf32>
    tpu.vector_store %arg21[%c0_69, %c0_70, %c0_71], %115 {strides = array<i32>} : memref<1x4x128xf32, #tpu.memory_space<vmem>>, vector<1x4x128xf32>,
    return
  }
  func.func @transform_0(%arg0: i32) -> (i32, i32, i32) {
    %c0_i32 = arith.constant 0 : i32
    %c0_i32_0 = arith.constant 0 : i32
    %c0_i32_1 = arith.constant 0 : i32
    return %arg0, %c0_i32, %c0_i32_0 : i32, i32, i32
  }
  func.func @transform_1(%arg0: i32) -> (i32, i32, i32) {
    %c0_i32 = arith.constant 0 : i32
    %c0_i32_0 = arith.constant 0 : i32
    %c0_i32_1 = arith.constant 0 : i32
    return %arg0, %c0_i32, %c0_i32_0 : i32, i32, i32
  }
  func.func @transform_2(%arg0: i32) -> (i32, i32) {
    %c0_i32 = arith.constant 0 : i32
    %c0_i32_0 = arith.constant 0 : i32
    %c0_i32_1 = arith.constant 0 : i32
    return %c0_i32, %c0_i32_0 : i32, i32
  }
  func.func @transform_3(%arg0: i32) -> (i32, i32) {
    %c0_i32 = arith.constant 0 : i32
    %c0_i32_0 = arith.constant 0 : i32
    %c0_i32_1 = arith.constant 0 : i32
    return %c0_i32, %c0_i32_0 : i32, i32
  }
  func.func @transform_4(%arg0: i32) -> (i32, i32) {
    %c0_i32 = arith.constant 0 : i32
    %c0_i32_0 = arith.constant 0 : i32
    %c0_i32_1 = arith.constant 0 : i32
    return %c0_i32, %c0_i32_0 : i32, i32
  }
  func.func @transform_5(%arg0: i32) -> (i32, i32) {
    %c0_i32 = arith.constant 0 : i32
    %c0_i32_0 = arith.constant 0 : i32
    %c0_i32_1 = arith.constant 0 : i32
    return %c0_i32, %c0_i32_0 : i32, i32
  }
  func.func @transform_6(%arg0: i32) -> (i32, i32) {
    %c0_i32 = arith.constant 0 : i32
    %c0_i32_0 = arith.constant 0 : i32
    %c0_i32_1 = arith.constant 0 : i32
    return %c0_i32, %c0_i32_0 : i32, i32
  }
  func.func @transform_7(%arg0: i32) -> (i32, i32) {
    %c0_i32 = arith.constant 0 : i32
    %c0_i32_0 = arith.constant 0 : i32
    %c0_i32_1 = arith.constant 0 : i32
    return %c0_i32, %c0_i32_0 : i32, i32
  }
  func.func @transform_8(%arg0: i32) -> (i32, i32) {
    %c0_i32 = arith.constant 0 : i32
    %c0_i32_0 = arith.constant 0 : i32
    %c0_i32_1 = arith.constant 0 : i32
    return %c0_i32, %c0_i32_0 : i32, i32
  }
  func.func @transform_9(%arg0: i32) -> (i32, i32) {
    %c0_i32 = arith.constant 0 : i32
    %c0_i32_0 = arith.constant 0 : i32
    %c0_i32_1 = arith.constant 0 : i32
    return %c0_i32, %c0_i32_0 : i32, i32
  }
  func.func @transform_10(%arg0: i32) -> (i32, i32) {
    %c0_i32 = arith.constant 0 : i32
    %c0_i32_0 = arith.constant 0 : i32
    %c0_i32_1 = arith.constant 0 : i32
    return %c0_i32, %c0_i32_0 : i32, i32
  }
  func.func @transform_11(%arg0: i32) -> (i32, i32) {
    %c0_i32 = arith.constant 0 : i32
    %c0_i32_0 = arith.constant 0 : i32
    %c0_i32_1 = arith.constant 0 : i32
    return %c0_i32, %c0_i32_0 : i32, i32
  }
  func.func @transform_12(%arg0: i32) -> (i32, i32) {
    %c0_i32 = arith.constant 0 : i32
    %c0_i32_0 = arith.constant 0 : i32
    %c0_i32_1 = arith.constant 0 : i32
    return %c0_i32, %c0_i32_0 : i32, i32
  }
  func.func @transform_13(%arg0: i32) -> (i32, i32) {
    %c0_i32 = arith.constant 0 : i32
    %c0_i32_0 = arith.constant 0 : i32
    %c0_i32_1 = arith.constant 0 : i32
    return %c0_i32, %c0_i32_0 : i32, i32
  }
  func.func @transform_14(%arg0: i32) -> (i32, i32) {
    %c0_i32 = arith.constant 0 : i32
    %c0_i32_0 = arith.constant 0 : i32
    %c0_i32_1 = arith.constant 0 : i32
    return %c0_i32, %c0_i32_0 : i32, i32
  }
  func.func @transform_15(%arg0: i32) -> (i32, i32) {
    %c0_i32 = arith.constant 0 : i32
    %c0_i32_0 = arith.constant 0 : i32
    %c0_i32_1 = arith.constant 0 : i32
    return %c0_i32, %c0_i32_0 : i32, i32
  }
  func.func @transform_16(%arg0: i32) -> (i32, i32) {
    %c0_i32 = arith.constant 0 : i32
    %c0_i32_0 = arith.constant 0 : i32
    %c0_i32_1 = arith.constant 0 : i32
    return %c0_i32, %c0_i32_0 : i32, i32
  }
  func.func @transform_17(%arg0: i32) -> (i32, i32) {
    %c0_i32 = arith.constant 0 : i32
    %c0_i32_0 = arith.constant 0 : i32
    %c0_i32_1 = arith.constant 0 : i32
    return %c0_i32, %c0_i32_0 : i32, i32
  }
  func.func @transform_18(%arg0: i32) -> (i32, i32) {
    %c0_i32 = arith.constant 0 : i32
    %c0_i32_0 = arith.constant 0 : i32
    %c0_i32_1 = arith.constant 0 : i32
    return %c0_i32, %c0_i32_0 : i32, i32
  }
  func.func @transform_19(%arg0: i32) -> (i32, i32) {
    %c0_i32 = arith.constant 0 : i32
    %c0_i32_0 = arith.constant 0 : i32
    %c0_i32_1 = arith.constant 0 : i32
    return %c0_i32, %c0_i32_0 : i32, i32
  }
  func.func @transform_20(%arg0: i32) -> (i32, i32, i32) {
    %c0_i32 = arith.constant 0 : i32
    %c0_i32_0 = arith.constant 0 : i32
    %c0_i32_1 = arith.constant 0 : i32
    return %arg0, %c0_i32, %c0_i32_0 : i32, i32, i32
  }
}

</mosaic_0001>

<llo_original>
// kernel: tpu_custom_call.1
$region0: #{tpu_custom_call.1}
  #allocation0 [shape = 'u32[]', space=smem, size = 0x4, offset = 0x4, fixed_abs, tag = 'smem constant byte address 0x4 - core index']
  #allocation1 [shape = 'u32[72,128]{1,0:T(1,128)}', space=vmem, size = 0x9000, scoped, tag = 'internal scratch']
  %s0 = inlined_call_operand.hbm [shape: bf16[2,64,128], index: 0, kind: input, shape index: {}]
  %s1 = inlined_call_operand.hbm [shape: bf16[2,64,64], index: 1, kind: input, shape index: {}]
  %s2 = inlined_call_operand.hbm [shape: bf16[128,128], index: 2, kind: input, shape index: {}]
  %s3 = inlined_call_operand.vmem [shape: f32[1,128], index: 3, kind: input, shape index: {}]
  %s4 = inlined_call_operand.hbm [shape: bf16[128,128], index: 4, kind: input, shape index: {}]
  %s5 = inlined_call_operand.hbm [shape: bf16[128,128], index: 5, kind: input, shape index: {}]
  %s6 = inlined_call_operand.vmem [shape: f32[1,128], index: 6, kind: input, shape index: {}]
  %s7 = inlined_call_operand.hbm [shape: bf16[128,128], index: 7, kind: input, shape index: {}]
  %s8 = inlined_call_operand.hbm [shape: bf16[128,128], index: 8, kind: input, shape index: {}]
  %s9 = inlined_call_operand.vmem [shape: f32[1,128], index: 9, kind: input, shape index: {}]
  %s10 = inlined_call_operand.hbm [shape: bf16[128,256], index: 10, kind: input, shape index: {}]
  %s11 = inlined_call_operand.hbm [shape: bf16[128,256], index: 11, kind: input, shape index: {}]
  %s12 = inlined_call_operand.vmem [shape: f32[1,256], index: 12, kind: input, shape index: {}]
  %s13 = inlined_call_operand.hbm [shape: bf16[256,128], index: 13, kind: input, shape index: {}]
  %s14 = inlined_call_operand.hbm [shape: bf16[256,128], index: 14, kind: input, shape index: {}]
  %s15 = inlined_call_operand.vmem [shape: f32[1,128], index: 15, kind: input, shape index: {}]
  %s16 = inlined_call_operand.hbm [shape: bf16[128,128], index: 16, kind: input, shape index: {}]
  %s17 = inlined_call_operand.vmem [shape: f32[1,128], index: 17, kind: input, shape index: {}]
  %s18 = inlined_call_operand.hbm [shape: bf16[128,128], index: 18, kind: input, shape index: {}]
  %s19 = inlined_call_operand.vmem [shape: f32[1,128], index: 19, kind: input, shape index: {}]
  %s20 = inlined_call_operand.hbm [shape: f32[2,4,128], index: 20, kind: output, shape index: {}]
  %s21 = sld [smem:[#allocation0]]
  $region165: #{tpu_custom_call.1} parent=0
    _
  %s23 = ssub.s32 1, %s21
  %s24 = scalar_select 0, %s23, %s21
  $region1: #{tpu_custom_call.1} parent=0
    #allocation2 [shape = 'u8[32768]{0}', space=vmem, size = 0x8000, scoped, tag = 'input window, operand 0']
    #allocation3 [shape = 's32[2]{0}', space=sflag, size = 0x8, scoped, tag = 'scoped memory for tpu_custom_call.1']
    #allocation4 [shape = 's32[2]{0}', space=sflag, size = 0x8, scoped, tag = 'scoped memory for tpu_custom_call.1']
    #allocation5 [shape = 'u8[32768]{0}', space=vmem, size = 0x8000, scoped, tag = 'input window, operand 1']
    #allocation6 [shape = 's32[2]{0}', space=sflag, size = 0x8, scoped, tag = 'scoped memory for tpu_custom_call.1']
    #allocation7 [shape = 'u8[32768]{0}', space=vmem, size = 0x8000, scoped, tag = 'input window, operand 2, single buffered']
    #allocation8 [shape = 'u8[32768]{0}', space=vmem, size = 0x8000, scoped, tag = 'input window, operand 4, single buffered']
    #allocation9 [shape = 's32[1]{0}', space=sflag, size = 0x4, scoped, tag = 'scoped memory for tpu_custom_call.1']
    #allocation10 [shape = 'u8[32768]{0}', space=vmem, size = 0x8000, scoped, tag = 'input window, operand 5, single buffered']
    #allocation11 [shape = 'u8[32768]{0}', space=vmem, size = 0x8000, scoped, tag = 'input window, operand 7, single buffered']
    #allocation12 [shape = 's32[1]{0}', space=sflag, size = 0x4, scoped, tag = 'scoped memory for tpu_custom_call.1']
    #allocation13 [shape = 'u8[32768]{0}', space=vmem, size = 0x8000, scoped, tag = 'input window, operand 8, single buffered']
    #allocation14 [shape = 'u8[65536]{0}', space=vmem, size = 0x10000, scoped, tag = 'input window, operand 10, single buffered']
    #allocation15 [shape = 's32[1]{0}', space=sflag, size = 0x4, scoped, tag = 'scoped memory for tpu_custom_call.1']
    #allocation16 [shape = 'u8[65536]{0}', space=vmem, size = 0x10000, scoped, tag = 'input window, operand 11, single buffered']
    #allocation17 [shape = 'u8[65536]{0}', space=vmem, size = 0x10000, scoped, tag = 'input window, operand 13, single buffered']
    #allocation18 [shape = 's32[1]{0}', space=sflag, size = 0x4, scoped, tag = 'scoped memory for tpu_custom_call.1']
    #allocation19 [shape = 'u8[65536]{0}', space=vmem, size = 0x10000, scoped, tag = 'input window, operand 14, single buffered']
    #allocation20 [shape = 'u8[32768]{0}', space=vmem, size = 0x8000, scoped, tag = 'input window, operand 16, single buffered']
    #allocation21 [shape = 's32[1]{0}', space=sflag, size = 0x4, scoped, tag = 'scoped memory for tpu_custom_call.1']
    #allocation22 [shape = 'u8[32768]{0}', space=vmem, size = 0x8000, scoped, tag = 'input window, operand 18, single buffered']
    #allocation23 [shape = 'u8[4096]{0}', space=vmem, size = 0x1000, scoped, tag = 'output window, operand 0']
    %25 = vsyncpa [#allocation3], 0
    %s26 = scalar_lea.sflag [#allocation3], 1
    %27 = vsyncpa %s26, 0
    %28 = vsyncpa [#allocation6], 0
    %s29 = scalar_lea.sflag [#allocation6], 1
    %30 = vsyncpa %s29, 0
    %31 = vsyncpa [#allocation9], 0
    %32 = vsyncpa [#allocation12], 0
    %33 = vsyncpa [#allocation15], 0
    %34 = vsyncpa [#allocation18], 0
    %35 = vsyncpa [#allocation21], 0
    %36 = vsyncpa [#allocation4], 0
    %s37 = scalar_lea.sflag [#allocation4], 1
    %38 = vsyncpa %s37, 0
    loop: start=0, step=1, limit=4
    $region2: #{tpu_custom_call.1} parent=1 // loop_pre_header
      _
    $region3: #{tpu_custom_call.1} parent=1 // loop_header
      %s40 = sphi 0, %s44
      %p41 = scmp.ge.s32.totalorder %s40, 4
      %s50 = sphi 0, %s52
      %s53 = sphi 0, %s50
      %s54 = sphi 0, %s53
      %s70 = sphi 0, %s54
      %s76 = sphi 0, %s78
      %s79 = sphi 0, %s76
      %s80 = sphi 0, %s79
      %s96 = sphi 0, %s80
      %s100 = sphi 0, %s100
      %s102 = sphi 0, %s100
      %s103 = sphi 0, %s102
      %s117 = sphi 0, %s103
      %s121 = sphi 0, %s121
      %s123 = sphi 0, %s121
      %s124 = sphi 0, %s123
      %s138 = sphi 0, %s124
      %s142 = sphi 0, %s142
      %s144 = sphi 0, %s142
      %s145 = sphi 0, %s144
      %s159 = sphi 0, %s145
      %s163 = sphi 0, %s163
      %s165 = sphi 0, %s163
      %s166 = sphi 0, %s165
      %s180 = sphi 0, %s166
      %s184 = sphi 0, %s184
      %s186 = sphi 0, %s184
      %s187 = sphi 0, %s186
      %s201 = sphi 0, %s187
      %s205 = sphi 0, %s205
      %s207 = sphi 0, %s205
      %s208 = sphi 0, %s207
      %s222 = sphi 0, %s208
      %s226 = sphi 0, %s226
      %s228 = sphi 0, %s226
      %s229 = sphi 0, %s228
      %s243 = sphi 0, %s229
      %s247 = sphi 0, %s247
      %s249 = sphi 0, %s247
      %s250 = sphi 0, %s249
      %s264 = sphi 0, %s250
      %s268 = sphi 0, %s268
      %s270 = sphi 0, %s268
      %s271 = sphi 0, %s270
      %s285 = sphi 0, %s271
      %s289 = sphi 0, %s289
      %s291 = sphi 0, %s289
      %s292 = sphi 0, %s291
      %s306 = sphi 0, %s292
      %s310 = sphi 0, %s310
      %s312 = sphi 0, %s310
      %s313 = sphi 0, %s312
      %s327 = sphi 0, %s313
      %s331 = sphi 0, %s331
      %s333 = sphi 0, %s331
      %s334 = sphi 0, %s333
      %s348 = sphi 0, %s334
      %s352 = sphi 0, %s352
      %s354 = sphi 0, %s352
      %s355 = sphi 0, %s354
      %s369 = sphi 0, %s355
      %s373 = sphi 0, %s373
      %s375 = sphi 0, %s373
      %s376 = sphi 0, %s375
      %s390 = sphi 0, %s376
      %s394 = sphi 0, %s394
      %s396 = sphi 0, %s394
      %s397 = sphi 0, %s396
      %s411 = sphi 0, %s397
      %s415 = sphi 0, %s415
      %s417 = sphi 0, %s415
      %s418 = sphi 0, %s417
      %s432 = sphi 0, %s418
      %s436 = sphi 0, %s436
      %s438 = sphi 0, %s436
      %s439 = sphi 0, %s438
      %s453 = sphi 0, %s439
      %s457 = sphi 0, %s457
      %s459 = sphi 0, %s457
      %s460 = sphi 0, %s459
      %s474 = sphi 0, %s460
      %s480 = sphi 0, %s482
      %s483 = sphi 0, %s480
      %s484 = sphi 0, %s483
      %s500 = sphi 0, %s484
    $region4: #{tpu_custom_call.1} parent=1 // loop_header_branch
      %43 = sbr.rel (%p41) target = $region8
    $region5: #{tpu_custom_call.1} parent=1 // loop_body
      %s45 = ssub.s32 %s40, 1
      %s46 = ssub.s32 %s40, 2
      %s47 = sadd.s32 %s40, 1
      %s48 = ssub.s32 %s40, %s47
      %p49 = scmp.eq.s32.totalorder %s48, 0
      %s51 = sadd.s32 %s50, 1
      %s52 = scalar_select %p49, %s50, %s51
      %p55 = pneg %p49
      %p56 = scmp.eq.s32.totalorder %s40, 1
      %p57 = por %p55, %p56
      %p58 = scmp.ne.s32.totalorder %s50, %s53
      %p59 = scmp.eq.s32.totalorder %s40, 0
      %p60 = por %p58, %p59
      %p61 = scmp.ne.s32.totalorder %s50, %s53
      %p62 = scmp.eq.s32.totalorder %s45, 1
      %p63 = por %p61, %p62
      %p64 = scmp.ne.s32.totalorder %s53, %s54
      %p65 = scmp.eq.s32.totalorder %s45, 0
      %p66 = por %p64, %p65
      %p67 = scmp.ne.s32.totalorder %s53, %s54
      %p68 = scmp.eq.s32.totalorder %s46, 1
      %p69 = por %p67, %p68
      %p71 = scmp.ne.s32.totalorder %s54, %s70
      %p72 = scmp.eq.s32.totalorder %s46, 0
      %p73 = por %p71, %p72
      %s74 = ssub.s32 %s40, %s47
      %p75 = scmp.eq.s32.totalorder %s74, 0
      %s77 = sadd.s32 %s76, 1
      %s78 = scalar_select %p75, %s76, %s77
      %p81 = pneg %p75
      %p82 = scmp.eq.s32.totalorder %s40, 1
      %p83 = por %p81, %p82
      %p84 = scmp.ne.s32.totalorder %s76, %s79
      %p85 = scmp.eq.s32.totalorder %s40, 0
      %p86 = por %p84, %p85
      %p87 = scmp.ne.s32.totalorder %s76, %s79
      %p88 = scmp.eq.s32.totalorder %s45, 1
      %p89 = por %p87, %p88
      %p90 = scmp.ne.s32.totalorder %s79, %s80
      %p91 = scmp.eq.s32.totalorder %s45, 0
      %p92 = por %p90, %p91
      %p93 = scmp.ne.s32.totalorder %s79, %s80
      %p94 = scmp.eq.s32.totalorder %s46, 1
      %p95 = por %p93, %p94
      %p97 = scmp.ne.s32.totalorder %s80, %s96
      %p98 = scmp.eq.s32.totalorder %s46, 0
      %p99 = por %p97, %p98
      %s101 = sadd.s32 %s100, 1
      %p104 = scmp.eq.s32.totalorder %s40, 1
      %p105 = scmp.ne.s32.totalorder %s100, %s102
      %p106 = scmp.eq.s32.totalorder %s40, 0
      %p107 = por %p105, %p106
      %p108 = scmp.ne.s32.totalorder %s100, %s102
      %p109 = scmp.eq.s32.totalorder %s45, 1
      %p110 = por %p108, %p109
      %p111 = scmp.ne.s32.totalorder %s102, %s103
      %p112 = scmp.eq.s32.totalorder %s45, 0
      %p113 = por %p111, %p112
      %p114 = scmp.ne.s32.totalorder %s102, %s103
      %p115 = scmp.eq.s32.totalorder %s46, 1
      %p116 = por %p114, %p115
      %p118 = scmp.ne.s32.totalorder %s103, %s117
      %p119 = scmp.eq.s32.totalorder %s46, 0
      %p120 = por %p118, %p119
      %s122 = sadd.s32 %s121, 1
      %p125 = scmp.eq.s32.totalorder %s40, 1
      %p126 = scmp.ne.s32.totalorder %s121, %s123
      %p127 = scmp.eq.s32.totalorder %s40, 0
      %p128 = por %p126, %p127
      %p129 = scmp.ne.s32.totalorder %s121, %s123
      %p130 = scmp.eq.s32.totalorder %s45, 1
      %p131 = por %p129, %p130
      %p132 = scmp.ne.s32.totalorder %s123, %s124
      %p133 = scmp.eq.s32.totalorder %s45, 0
      %p134 = por %p132, %p133
      %p135 = scmp.ne.s32.totalorder %s123, %s124
      %p136 = scmp.eq.s32.totalorder %s46, 1
      %p137 = por %p135, %p136
      %p139 = scmp.ne.s32.totalorder %s124, %s138
      %p140 = scmp.eq.s32.totalorder %s46, 0
      %p141 = por %p139, %p140
      %s143 = sadd.s32 %s142, 1
      %p146 = scmp.eq.s32.totalorder %s40, 1
      %p147 = scmp.ne.s32.totalorder %s142, %s144
      %p148 = scmp.eq.s32.totalorder %s40, 0
      %p149 = por %p147, %p148
      %p150 = scmp.ne.s32.totalorder %s142, %s144
      %p151 = scmp.eq.s32.totalorder %s45, 1
      %p152 = por %p150, %p151
      %p153 = scmp.ne.s32.totalorder %s144, %s145
      %p154 = scmp.eq.s32.totalorder %s45, 0
      %p155 = por %p153, %p154
      %p156 = scmp.ne.s32.totalorder %s144, %s145
      %p157 = scmp.eq.s32.totalorder %s46, 1
      %p158 = por %p156, %p157
      %p160 = scmp.ne.s32.totalorder %s145, %s159
      %p161 = scmp.eq.s32.totalorder %s46, 0
      %p162 = por %p160, %p161
      %s164 = sadd.s32 %s163, 1
      %p167 = scmp.eq.s32.totalorder %s40, 1
      %p168 = scmp.ne.s32.totalorder %s163, %s165
      %p169 = scmp.eq.s32.totalorder %s40, 0
      %p170 = por %p168, %p169
      %p171 = scmp.ne.s32.totalorder %s163, %s165
      %p172 = scmp.eq.s32.totalorder %s45, 1
      %p173 = por %p171, %p172
      %p174 = scmp.ne.s32.totalorder %s165, %s166
      %p175 = scmp.eq.s32.totalorder %s45, 0
      %p176 = por %p174, %p175
      %p177 = scmp.ne.s32.totalorder %s165, %s166
      %p178 = scmp.eq.s32.totalorder %s46, 1
      %p179 = por %p177, %p178
      %p181 = scmp.ne.s32.totalorder %s166, %s180
      %p182 = scmp.eq.s32.totalorder %s46, 0
      %p183 = por %p181, %p182
      %s185 = sadd.s32 %s184, 1
      %p188 = scmp.eq.s32.totalorder %s40, 1
      %p189 = scmp.ne.s32.totalorder %s184, %s186
      %p190 = scmp.eq.s32.totalorder %s40, 0
      %p191 = por %p189, %p190
      %p192 = scmp.ne.s32.totalorder %s184, %s186
      %p193 = scmp.eq.s32.totalorder %s45, 1
      %p194 = por %p192, %p193
      %p195 = scmp.ne.s32.totalorder %s186, %s187
      %p196 = scmp.eq.s32.totalorder %s45, 0
      %p197 = por %p195, %p196
      %p198 = scmp.ne.s32.totalorder %s186, %s187
      %p199 = scmp.eq.s32.totalorder %s46, 1
      %p200 = por %p198, %p199
      %p202 = scmp.ne.s32.totalorder %s187, %s201
      %p203 = scmp.eq.s32.totalorder %s46, 0
      %p204 = por %p202, %p203
      %s206 = sadd.s32 %s205, 1
      %p209 = scmp.eq.s32.totalorder %s40, 1
      %p210 = scmp.ne.s32.totalorder %s205, %s207
      %p211 = scmp.eq.s32.totalorder %s40, 0
      %p212 = por %p210, %p211
      %p213 = scmp.ne.s32.totalorder %s205, %s207
      %p214 = scmp.eq.s32.totalorder %s45, 1
      %p215 = por %p213, %p214
      %p216 = scmp.ne.s32.totalorder %s207, %s208
      %p217 = scmp.eq.s32.totalorder %s45, 0
      %p218 = por %p216, %p217
      %p219 = scmp.ne.s32.totalorder %s207, %s208
      %p220 = scmp.eq.s32.totalorder %s46, 1
      %p221 = por %p219, %p220
      %p223 = scmp.ne.s32.totalorder %s208, %s222
      %p224 = scmp.eq.s32.totalorder %s46, 0
      %p225 = por %p223, %p224
      %s227 = sadd.s32 %s226, 1
      %p230 = scmp.eq.s32.totalorder %s40, 1
      %p231 = scmp.ne.s32.totalorder %s226, %s228
      %p232 = scmp.eq.s32.totalorder %s40, 0
      %p233 = por %p231, %p232
      %p234 = scmp.ne.s32.totalorder %s226, %s228
      %p235 = scmp.eq.s32.totalorder %s45, 1
      %p236 = por %p234, %p235
      %p237 = scmp.ne.s32.totalorder %s228, %s229
      %p238 = scmp.eq.s32.totalorder %s45, 0
      %p239 = por %p237, %p238
      %p240 = scmp.ne.s32.totalorder %s228, %s229
      %p241 = scmp.eq.s32.totalorder %s46, 1
      %p242 = por %p240, %p241
      %p244 = scmp.ne.s32.totalorder %s229, %s243
      %p245 = scmp.eq.s32.totalorder %s46, 0
      %p246 = por %p244, %p245
      %s248 = sadd.s32 %s247, 1
      %p251 = scmp.eq.s32.totalorder %s40, 1
      %p252 = scmp.ne.s32.totalorder %s247, %s249
      %p253 = scmp.eq.s32.totalorder %s40, 0
      %p254 = por %p252, %p253
      %p255 = scmp.ne.s32.totalorder %s247, %s249
      %p256 = scmp.eq.s32.totalorder %s45, 1
      %p257 = por %p255, %p256
      %p258 = scmp.ne.s32.totalorder %s249, %s250
      %p259 = scmp.eq.s32.totalorder %s45, 0
      %p260 = por %p258, %p259
      %p261 = scmp.ne.s32.totalorder %s249, %s250
      %p262 = scmp.eq.s32.totalorder %s46, 1
      %p263 = por %p261, %p262
      %p265 = scmp.ne.s32.totalorder %s250, %s264
      %p266 = scmp.eq.s32.totalorder %s46, 0
      %p267 = por %p265, %p266
      %s269 = sadd.s32 %s268, 1
      %p272 = scmp.eq.s32.totalorder %s40, 1
      %p273 = scmp.ne.s32.totalorder %s268, %s270
      %p274 = scmp.eq.s32.totalorder %s40, 0
      %p275 = por %p273, %p274
      %p276 = scmp.ne.s32.totalorder %s268, %s270
      %p277 = scmp.eq.s32.totalorder %s45, 1
      %p278 = por %p276, %p277
      %p279 = scmp.ne.s32.totalorder %s270, %s271
      %p280 = scmp.eq.s32.totalorder %s45, 0
      %p281 = por %p279, %p280
      %p282 = scmp.ne.s32.totalorder %s270, %s271
      %p283 = scmp.eq.s32.totalorder %s46, 1
      %p284 = por %p282, %p283
      %p286 = scmp.ne.s32.totalorder %s271, %s285
      %p287 = scmp.eq.s32.totalorder %s46, 0
      %p288 = por %p286, %p287
      %s290 = sadd.s32 %s289, 1
      %p293 = scmp.eq.s32.totalorder %s40, 1
      %p294 = scmp.ne.s32.totalorder %s289, %s291
      %p295 = scmp.eq.s32.totalorder %s40, 0
      %p296 = por %p294, %p295
      %p297 = scmp.ne.s32.totalorder %s289, %s291
      %p298 = scmp.eq.s32.totalorder %s45, 1
      %p299 = por %p297, %p298
      %p300 = scmp.ne.s32.totalorder %s291, %s292
      %p301 = scmp.eq.s32.totalorder %s45, 0
      %p302 = por %p300, %p301
      %p303 = scmp.ne.s32.totalorder %s291, %s292
      %p304 = scmp.eq.s32.totalorder %s46, 1
      %p305 = por %p303, %p304
      %p307 = scmp.ne.s32.totalorder %s292, %s306
      %p308 = scmp.eq.s32.totalorder %s46, 0
      %p309 = por %p307, %p308
      %s311 = sadd.s32 %s310, 1
      %p314 = scmp.eq.s32.totalorder %s40, 1
      %p315 = scmp.ne.s32.totalorder %s310, %s312
      %p316 = scmp.eq.s32.totalorder %s40, 0
      %p317 = por %p315, %p316
      %p318 = scmp.ne.s32.totalorder %s310, %s312
      %p319 = scmp.eq.s32.totalorder %s45, 1
      %p320 = por %p318, %p319
      %p321 = scmp.ne.s32.totalorder %s312, %s313
      %p322 = scmp.eq.s32.totalorder %s45, 0
      %p323 = por %p321, %p322
      %p324 = scmp.ne.s32.totalorder %s312, %s313
      %p325 = scmp.eq.s32.totalorder %s46, 1
      %p326 = por %p324, %p325
      %p328 = scmp.ne.s32.totalorder %s313, %s327
      %p329 = scmp.eq.s32.totalorder %s46, 0
      %p330 = por %p328, %p329
      %s332 = sadd.s32 %s331, 1
      %p335 = scmp.eq.s32.totalorder %s40, 1
      %p336 = scmp.ne.s32.totalorder %s331, %s333
      %p337 = scmp.eq.s32.totalorder %s40, 0
      %p338 = por %p336, %p337
      %p339 = scmp.ne.s32.totalorder %s331, %s333
      %p340 = scmp.eq.s32.totalorder %s45, 1
      %p341 = por %p339, %p340
      %p342 = scmp.ne.s32.totalorder %s333, %s334
      %p343 = scmp.eq.s32.totalorder %s45, 0
      %p344 = por %p342, %p343
      %p345 = scmp.ne.s32.totalorder %s333, %s334
      %p346 = scmp.eq.s32.totalorder %s46, 1
      %p347 = por %p345, %p346
      %p349 = scmp.ne.s32.totalorder %s334, %s348
      %p350 = scmp.eq.s32.totalorder %s46, 0
      %p351 = por %p349, %p350
      %s353 = sadd.s32 %s352, 1
      %p356 = scmp.eq.s32.totalorder %s40, 1
      %p357 = scmp.ne.s32.totalorder %s352, %s354
      %p358 = scmp.eq.s32.totalorder %s40, 0
      %p359 = por %p357, %p358
      %p360 = scmp.ne.s32.totalorder %s352, %s354
      %p361 = scmp.eq.s32.totalorder %s45, 1
      %p362 = por %p360, %p361
      %p363 = scmp.ne.s32.totalorder %s354, %s355
      %p364 = scmp.eq.s32.totalorder %s45, 0
      %p365 = por %p363, %p364
      %p366 = scmp.ne.s32.totalorder %s354, %s355
      %p367 = scmp.eq.s32.totalorder %s46, 1
      %p368 = por %p366, %p367
      %p370 = scmp.ne.s32.totalorder %s355, %s369
      %p371 = scmp.eq.s32.totalorder %s46, 0
      %p372 = por %p370, %p371
      %s374 = sadd.s32 %s373, 1
      %p377 = scmp.eq.s32.totalorder %s40, 1
      %p378 = scmp.ne.s32.totalorder %s373, %s375
      %p379 = scmp.eq.s32.totalorder %s40, 0
      %p380 = por %p378, %p379
      %p381 = scmp.ne.s32.totalorder %s373, %s375
      %p382 = scmp.eq.s32.totalorder %s45, 1
      %p383 = por %p381, %p382
      %p384 = scmp.ne.s32.totalorder %s375, %s376
      %p385 = scmp.eq.s32.totalorder %s45, 0
      %p386 = por %p384, %p385
      %p387 = scmp.ne.s32.totalorder %s375, %s376
      %p388 = scmp.eq.s32.totalorder %s46, 1
      %p389 = por %p387, %p388
      %p391 = scmp.ne.s32.totalorder %s376, %s390
      %p392 = scmp.eq.s32.totalorder %s46, 0
      %p393 = por %p391, %p392
      %s395 = sadd.s32 %s394, 1
      %p398 = scmp.eq.s32.totalorder %s40, 1
      %p399 = scmp.ne.s32.totalorder %s394, %s396
      %p400 = scmp.eq.s32.totalorder %s40, 0
      %p401 = por %p399, %p400
      %p402 = scmp.ne.s32.totalorder %s394, %s396
      %p403 = scmp.eq.s32.totalorder %s45, 1
      %p404 = por %p402, %p403
      %p405 = scmp.ne.s32.totalorder %s396, %s397
      %p406 = scmp.eq.s32.totalorder %s45, 0
      %p407 = por %p405, %p406
      %p408 = scmp.ne.s32.totalorder %s396, %s397
      %p409 = scmp.eq.s32.totalorder %s46, 1
      %p410 = por %p408, %p409
      %p412 = scmp.ne.s32.totalorder %s397, %s411
      %p413 = scmp.eq.s32.totalorder %s46, 0
      %p414 = por %p412, %p413
      %s416 = sadd.s32 %s415, 1
      %p419 = scmp.eq.s32.totalorder %s40, 1
      %p420 = scmp.ne.s32.totalorder %s415, %s417
      %p421 = scmp.eq.s32.totalorder %s40, 0
      %p422 = por %p420, %p421
      %p423 = scmp.ne.s32.totalorder %s415, %s417
      %p424 = scmp.eq.s32.totalorder %s45, 1
      %p425 = por %p423, %p424
      %p426 = scmp.ne.s32.totalorder %s417, %s418
      %p427 = scmp.eq.s32.totalorder %s45, 0
      %p428 = por %p426, %p427
      %p429 = scmp.ne.s32.totalorder %s417, %s418
      %p430 = scmp.eq.s32.totalorder %s46, 1
      %p431 = por %p429, %p430
      %p433 = scmp.ne.s32.totalorder %s418, %s432
      %p434 = scmp.eq.s32.totalorder %s46, 0
      %p435 = por %p433, %p434
      %s437 = sadd.s32 %s436, 1
      %p440 = scmp.eq.s32.totalorder %s40, 1
      %p441 = scmp.ne.s32.totalorder %s436, %s438
      %p442 = scmp.eq.s32.totalorder %s40, 0
      %p443 = por %p441, %p442
      %p444 = scmp.ne.s32.totalorder %s436, %s438
      %p445 = scmp.eq.s32.totalorder %s45, 1
      %p446 = por %p444, %p445
      %p447 = scmp.ne.s32.totalorder %s438, %s439
      %p448 = scmp.eq.s32.totalorder %s45, 0
      %p449 = por %p447, %p448
      %p450 = scmp.ne.s32.totalorder %s438, %s439
      %p451 = scmp.eq.s32.totalorder %s46, 1
      %p452 = por %p450, %p451
      %p454 = scmp.ne.s32.totalorder %s439, %s453
      %p455 = scmp.eq.s32.totalorder %s46, 0
      %p456 = por %p454, %p455
      %s458 = sadd.s32 %s457, 1
      %p461 = scmp.eq.s32.totalorder %s40, 1
      %p462 = scmp.ne.s32.totalorder %s457, %s459
      %p463 = scmp.eq.s32.totalorder %s40, 0
      %p464 = por %p462, %p463
      %p465 = scmp.ne.s32.totalorder %s457, %s459
      %p466 = scmp.eq.s32.totalorder %s45, 1
      %p467 = por %p465, %p466
      %p468 = scmp.ne.s32.totalorder %s459, %s460
      %p469 = scmp.eq.s32.totalorder %s45, 0
      %p470 = por %p468, %p469
      %p471 = scmp.ne.s32.totalorder %s459, %s460
      %p472 = scmp.eq.s32.totalorder %s46, 1
      %p473 = por %p471, %p472
      %p475 = scmp.ne.s32.totalorder %s460, %s474
      %p476 = scmp.eq.s32.totalorder %s46, 0
      %p477 = por %p475, %p476
      %s478 = ssub.s32 %s40, %s47
      %p479 = scmp.eq.s32.totalorder %s478, 0
      %s481 = sadd.s32 %s480, 1
      %s482 = scalar_select %p479, %s480, %s481
      %p485 = pneg %p479
      %p486 = scmp.eq.s32.totalorder %s40, 1
      %p487 = por %p485, %p486
      %p488 = scmp.ne.s32.totalorder %s480, %s483
      %p489 = scmp.eq.s32.totalorder %s40, 0
      %p490 = por %p488, %p489
      %p491 = scmp.ne.s32.totalorder %s480, %s483
      %p492 = scmp.eq.s32.totalorder %s45, 1
      %p493 = por %p491, %p492
      %p494 = scmp.ne.s32.totalorder %s483, %s484
      %p495 = scmp.eq.s32.totalorder %s45, 0
      %p496 = por %p494, %p495
      %p497 = scmp.ne.s32.totalorder %s483, %s484
      %p498 = scmp.eq.s32.totalorder %s46, 1
      %p499 = por %p497, %p498
      %p501 = scmp.ne.s32.totalorder %s484, %s500
      %p502 = scmp.eq.s32.totalorder %s46, 0
      %p503 = por %p501, %p502
      %p504 = scmp.le.s32.totalorder 1, %s40
      %p505 = scmp.lt.s32.totalorder %s40, 3
      %p506 = pnand %p504, %p505
      %p507 = pneg %p506
      // Predicated region
      $region9: #{tpu_custom_call.1} parent=5 // pred_check
        _
      $region10: #{tpu_custom_call.1} parent=5 // pred_check_branch
        %509 = sbr.rel (%p506) target = $region12
      $region11: #{tpu_custom_call.1} parent=5 // pred_region
        %s510 = ssub.s32 %s40, 1
        // Predicated region
        $region13: #{tpu_custom_call.1} parent=11 // pred_check
          %p511 = pneg %p113
        $region14: #{tpu_custom_call.1} parent=11 // pred_check_branch
          %513 = sbr.rel (%p511) target = $region16
        $region15: #{tpu_custom_call.1} parent=11 // pred_region
          %515 = vsyncadd [#allocation6], 0
          %s516 = sshll.u32 %s2, 4
          %s517 = int_to_ptr.hbm [resolvable:$true] %s516
          %s518 = sshll.u32 [#allocation7], 4
          %s519 = int_to_ptr.vmem [resolvable:$true] %s518
          %524 = dma.hbm_to_vmem [thread:$0]  %s517, 1024, %s519, [#allocation6], 64, 64, 4
        $region16: #{tpu_custom_call.1} parent=11 // pred_fallthru
          _
        // Predicated region
        $region17: #{tpu_custom_call.1} parent=11 // pred_check
          %p525 = pneg %p134
        $region18: #{tpu_custom_call.1} parent=11 // pred_check_branch
          %527 = sbr.rel (%p525) target = $region20
        $region19: #{tpu_custom_call.1} parent=11 // pred_region
          _
        $region20: #{tpu_custom_call.1} parent=11 // pred_fallthru
          _
        // Predicated region
        $region21: #{tpu_custom_call.1} parent=11 // pred_check
          %p528 = pneg %p155
        $region22: #{tpu_custom_call.1} parent=11 // pred_check_branch
          %530 = sbr.rel (%p528) target = $region24
        $region23: #{tpu_custom_call.1} parent=11 // pred_region
          %532 = vsyncadd [#allocation9], 0
          %s533 = sshll.u32 %s4, 4
          %s534 = int_to_ptr.hbm [resolvable:$true] %s533
          %s535 = sshll.u32 [#allocation8], 4
          %s536 = int_to_ptr.vmem [resolvable:$true] %s535
          %541 = dma.hbm_to_vmem [thread:$0]  %s534, 1024, %s536, [#allocation9], 64, 64, 4
        $region24: #{tpu_custom_call.1} parent=11 // pred_fallthru
          _
        // Predicated region
        $region25: #{tpu_custom_call.1} parent=11 // pred_check
          %p542 = pneg %p176
        $region26: #{tpu_custom_call.1} parent=11 // pred_check_branch
          %544 = sbr.rel (%p542) target = $region28
        $region27: #{tpu_custom_call.1} parent=11 // pred_region
          %546 = vsyncadd [#allocation9], 0
          %s547 = sshll.u32 %s5, 4
          %s548 = int_to_ptr.hbm [resolvable:$true] %s547
          %s549 = sshll.u32 [#allocation10], 4
          %s550 = int_to_ptr.vmem [resolvable:$true] %s549
          %555 = dma.hbm_to_vmem [thread:$0]  %s548, 1024, %s550, [#allocation9], 64, 64, 4
        $region28: #{tpu_custom_call.1} parent=11 // pred_fallthru
          _
        // Predicated region
        $region29: #{tpu_custom_call.1} parent=11 // pred_check
          %p556 = pneg %p197
        $region30: #{tpu_custom_call.1} parent=11 // pred_check_branch
          %558 = sbr.rel (%p556) target = $region32
        $region31: #{tpu_custom_call.1} parent=11 // pred_region
          _
        $region32: #{tpu_custom_call.1} parent=11 // pred_fallthru
          _
        // Predicated region
        $region33: #{tpu_custom_call.1} parent=11 // pred_check
          %p559 = pneg %p218
        $region34: #{tpu_custom_call.1} parent=11 // pred_check_branch
          %561 = sbr.rel (%p559) target = $region36
        $region35: #{tpu_custom_call.1} parent=11 // pred_region
          %563 = vsyncadd [#allocation12], 0
          %s564 = sshll.u32 %s7, 4
          %s565 = int_to_ptr.hbm [resolvable:$true] %s564
          %s566 = sshll.u32 [#allocation11], 4
          %s567 = int_to_ptr.vmem [resolvable:$true] %s566
          %572 = dma.hbm_to_vmem [thread:$0]  %s565, 1024, %s567, [#allocation12], 64, 64, 4
        $region36: #{tpu_custom_call.1} parent=11 // pred_fallthru
          _
        // Predicated region
        $region37: #{tpu_custom_call.1} parent=11 // pred_check
          %p573 = pneg %p239
        $region38: #{tpu_custom_call.1} parent=11 // pred_check_branch
          %575 = sbr.rel (%p573) target = $region40
        $region39: #{tpu_custom_call.1} parent=11 // pred_region
          %577 = vsyncadd [#allocation12], 0
          %s578 = sshll.u32 %s8, 4
          %s579 = int_to_ptr.hbm [resolvable:$true] %s578
          %s580 = sshll.u32 [#allocation13], 4
          %s581 = int_to_ptr.vmem [resolvable:$true] %s580
          %586 = dma.hbm_to_vmem [thread:$0]  %s579, 1024, %s581, [#allocation12], 64, 64, 4
        $region40: #{tpu_custom_call.1} parent=11 // pred_fallthru
          _
        // Predicated region
        $region41: #{tpu_custom_call.1} parent=11 // pred_check
          %p587 = pneg %p260
        $region42: #{tpu_custom_call.1} parent=11 // pred_check_branch
          %589 = sbr.rel (%p587) target = $region44
        $region43: #{tpu_custom_call.1} parent=11 // pred_region
          _
        $region44: #{tpu_custom_call.1} parent=11 // pred_fallthru
          _
        // Predicated region
        $region45: #{tpu_custom_call.1} parent=11 // pred_check
          %p590 = pneg %p281
        $region46: #{tpu_custom_call.1} parent=11 // pred_check_branch
          %592 = sbr.rel (%p590) target = $region48
        $region47: #{tpu_custom_call.1} parent=11 // pred_region
          %594 = vsyncadd [#allocation15], 0
          %s595 = sshll.u32 %s10, 4
          %s596 = int_to_ptr.hbm [resolvable:$true] %s595
          %s597 = sshll.u32 [#allocation14], 4
          %s598 = int_to_ptr.vmem [resolvable:$true] %s597
          %603 = dma.hbm_to_vmem [thread:$0]  %s596, 2048, %s598, [#allocation15], 128, 128, 8
        $region48: #{tpu_custom_call.1} parent=11 // pred_fallthru
          _
        // Predicated region
        $region49: #{tpu_custom_call.1} parent=11 // pred_check
          %p604 = pneg %p302
        $region50: #{tpu_custom_call.1} parent=11 // pred_check_branch
          %606 = sbr.rel (%p604) target = $region52
        $region51: #{tpu_custom_call.1} parent=11 // pred_region
          %608 = vsyncadd [#allocation15], 0
          %s609 = sshll.u32 %s11, 4
          %s610 = int_to_ptr.hbm [resolvable:$true] %s609
          %s611 = sshll.u32 [#allocation16], 4
          %s612 = int_to_ptr.vmem [resolvable:$true] %s611
          %617 = dma.hbm_to_vmem [thread:$0]  %s610, 2048, %s612, [#allocation15], 128, 128, 8
        $region52: #{tpu_custom_call.1} parent=11 // pred_fallthru
          _
        // Predicated region
        $region53: #{tpu_custom_call.1} parent=11 // pred_check
          %p618 = pneg %p323
        $region54: #{tpu_custom_call.1} parent=11 // pred_check_branch
          %620 = sbr.rel (%p618) target = $region56
        $region55: #{tpu_custom_call.1} parent=11 // pred_region
          _
        $region56: #{tpu_custom_call.1} parent=11 // pred_fallthru
          _
        // Predicated region
        $region57: #{tpu_custom_call.1} parent=11 // pred_check
          %p621 = pneg %p344
        $region58: #{tpu_custom_call.1} parent=11 // pred_check_branch
          %623 = sbr.rel (%p621) target = $region60
        $region59: #{tpu_custom_call.1} parent=11 // pred_region
          %625 = vsyncadd [#allocation18], 0
          %s626 = sshll.u32 %s13, 4
          %s627 = int_to_ptr.hbm [resolvable:$true] %s626
          %s628 = sshll.u32 [#allocation17], 4
          %s629 = int_to_ptr.vmem [resolvable:$true] %s628
          %634 = dma.hbm_to_vmem [thread:$0]  %s627, 2048, %s629, [#allocation18], 64, 64, 4
        $region60: #{tpu_custom_call.1} parent=11 // pred_fallthru
          _
        // Predicated region
        $region61: #{tpu_custom_call.1} parent=11 // pred_check
          %p635 = pneg %p365
        $region62: #{tpu_custom_call.1} parent=11 // pred_check_branch
          %637 = sbr.rel (%p635) target = $region64
        $region63: #{tpu_custom_call.1} parent=11 // pred_region
          %639 = vsyncadd [#allocation18], 0
          %s640 = sshll.u32 %s14, 4
          %s641 = int_to_ptr.hbm [resolvable:$true] %s640
          %s642 = sshll.u32 [#allocation19], 4
          %s643 = int_to_ptr.vmem [resolvable:$true] %s642
          %648 = dma.hbm_to_vmem [thread:$0]  %s641, 2048, %s643, [#allocation18], 64, 64, 4
        $region64: #{tpu_custom_call.1} parent=11 // pred_fallthru
          _
        // Predicated region
        $region65: #{tpu_custom_call.1} parent=11 // pred_check
          %p649 = pneg %p386
        $region66: #{tpu_custom_call.1} parent=11 // pred_check_branch
          %651 = sbr.rel (%p649) target = $region68
        $region67: #{tpu_custom_call.1} parent=11 // pred_region
          _
        $region68: #{tpu_custom_call.1} parent=11 // pred_fallthru
          _
        // Predicated region
        $region69: #{tpu_custom_call.1} parent=11 // pred_check
          %p652 = pneg %p407
        $region70: #{tpu_custom_call.1} parent=11 // pred_check_branch
          %654 = sbr.rel (%p652) target = $region72
        $region71: #{tpu_custom_call.1} parent=11 // pred_region
          %656 = vsyncadd [#allocation21], 0
          %s657 = sshll.u32 %s16, 4
          %s658 = int_to_ptr.hbm [resolvable:$true] %s657
          %s659 = sshll.u32 [#allocation20], 4
          %s660 = int_to_ptr.vmem [resolvable:$true] %s659
          %665 = dma.hbm_to_vmem [thread:$0]  %s658, 1024, %s660, [#allocation21], 64, 64, 4
        $region72: #{tpu_custom_call.1} parent=11 // pred_fallthru
          _
        // Predicated region
        $region73: #{tpu_custom_call.1} parent=11 // pred_check
          %p666 = pneg %p428
        $region74: #{tpu_custom_call.1} parent=11 // pred_check_branch
          %668 = sbr.rel (%p666) target = $region76
        $region75: #{tpu_custom_call.1} parent=11 // pred_region
          _
        $region76: #{tpu_custom_call.1} parent=11 // pred_fallthru
          _
        // Predicated region
        $region77: #{tpu_custom_call.1} parent=11 // pred_check
          %p669 = pneg %p449
        $region78: #{tpu_custom_call.1} parent=11 // pred_check_branch
          %671 = sbr.rel (%p669) target = $region80
        $region79: #{tpu_custom_call.1} parent=11 // pred_region
          %673 = vsyncadd [#allocation21], 0
          %s674 = sshll.u32 %s18, 4
          %s675 = int_to_ptr.hbm [resolvable:$true] %s674
          %s676 = sshll.u32 [#allocation22], 4
          %s677 = int_to_ptr.vmem [resolvable:$true] %s676
          %682 = dma.hbm_to_vmem [thread:$0]  %s675, 1024, %s677, [#allocation21], 64, 64, 4
        $region80: #{tpu_custom_call.1} parent=11 // pred_fallthru
          _
        // Predicated region
        $region81: #{tpu_custom_call.1} parent=11 // pred_check
          %p683 = pneg %p470
        $region82: #{tpu_custom_call.1} parent=11 // pred_check_branch
          %685 = sbr.rel (%p683) target = $region84
        $region83: #{tpu_custom_call.1} parent=11 // pred_region
          _
        $region84: #{tpu_custom_call.1} parent=11 // pred_fallthru
          _
      $region12: #{tpu_custom_call.1} parent=5 // pred_fallthru
        _
      %p686 = scmp.lt.s32.totalorder %s40, 2
      // Predicated region
      $region85: #{tpu_custom_call.1} parent=5 // pred_check
        %p687 = pneg %p686
      $region86: #{tpu_custom_call.1} parent=5 // pred_check_branch
        %689 = sbr.rel (%p687) target = $region88
      $region87: #{tpu_custom_call.1} parent=5 // pred_region
        // Predicated region
        $region89: #{tpu_custom_call.1} parent=87 // pred_check
          %p690 = pneg %p60
        $region90: #{tpu_custom_call.1} parent=87 // pred_check_branch
          %692 = sbr.rel (%p690) target = $region92
        $region91: #{tpu_custom_call.1} parent=87 // pred_region
          %s693 = sand.u32 %s50, 1
          %s694 = scalar_lea.sflag [#allocation3], %s693
          %s695 = sand.u32 %s50, 1
          %s696 = smul.addr %s695, 32
          %s697 = scalar_lea.vmem [#allocation2], %s696
          %699 = vsyncadd %s694, 0
          %s700 = smul.addr %s40, 8
          %s701 = smul.addr %s700, 4
          %s702 = scalar_lea.hbm %s0, %s701
          %s703 = sshll.u32 %s702, 4
          %s704 = int_to_ptr.hbm [resolvable:$true] %s703
          %s705 = sshll.u32 %s697, 4
          %s706 = int_to_ptr.vmem [resolvable:$true] %s705
          %711 = dma.hbm_to_vmem [thread:$0]  %s704, 512, %s706, %s694, 64, 64, 4
        $region92: #{tpu_custom_call.1} parent=87 // pred_fallthru
          _
        // Predicated region
        $region93: #{tpu_custom_call.1} parent=87 // pred_check
          %p712 = pneg %p86
        $region94: #{tpu_custom_call.1} parent=87 // pred_check_branch
          %714 = sbr.rel (%p712) target = $region96
        $region95: #{tpu_custom_call.1} parent=87 // pred_region
          %s715 = sand.u32 %s40, 1
          %s716 = scalar_lea.sflag [#allocation6], %s715
          %s717 = sand.u32 %s76, 1
          %s718 = smul.addr %s717, 32
          %s719 = scalar_lea.vmem [#allocation5], %s718
          %721 = vsyncadd %s716, 0
          %s722 = smul.addr %s40, 8
          %s723 = smul.addr %s722, 4
          %s724 = scalar_lea.hbm %s1, %s723
          %s725 = sshll.u32 %s724, 4
          %s726 = int_to_ptr.hbm [resolvable:$true] %s725
          %s727 = sshll.u32 %s719, 4
          %s728 = int_to_ptr.vmem [resolvable:$true] %s727
          %733 = dma.hbm_to_vmem [thread:$0]  %s726, 512, %s728, %s716, 64, 64, 4
        $region96: #{tpu_custom_call.1} parent=87 // pred_fallthru
          _
      $region88: #{tpu_custom_call.1} parent=5 // pred_fallthru
        _
      %p734 = scmp.le.s32.totalorder 1, %s40
      %p735 = scmp.lt.s32.totalorder %s40, 3
      %p736 = pnand %p734, %p735
      %p737 = pneg %p736
      // Predicated region
      $region97: #{tpu_custom_call.1} parent=5 // pred_check
        _
      $region98: #{tpu_custom_call.1} parent=5 // pred_check_branch
        %739 = sbr.rel (%p736) target = $region100
      $region99: #{tpu_custom_call.1} parent=5 // pred_region
        %s740 = ssub.s32 %s40, 1
        %s741 = sand.u32 %s53, 1
        %s742 = scalar_lea.sflag [#allocation3], %s741
        %s743 = sand.u32 %s53, 1
        %s744 = smul.addr %s743, 32
        %s745 = scalar_lea.vmem [#allocation2], %s744
        // Predicated region
        $region101: #{tpu_custom_call.1} parent=99 // pred_check
          %p746 = pneg %p66
        $region102: #{tpu_custom_call.1} parent=99 // pred_check_branch
          %748 = sbr.rel (%p746) target = $region104
        $region103: #{tpu_custom_call.1} parent=99 // pred_region
          %750 = dma.done %s742, 512
        $region104: #{tpu_custom_call.1} parent=99 // pred_fallthru
          _
        %s751 = sand.u32 %s45, 1
        %s752 = scalar_lea.sflag [#allocation6], %s751
        %s753 = sand.u32 %s79, 1
        %s754 = smul.addr %s753, 32
        %s755 = scalar_lea.vmem [#allocation5], %s754
        // Predicated region
        $region105: #{tpu_custom_call.1} parent=99 // pred_check
          %p756 = pneg %p92
        $region106: #{tpu_custom_call.1} parent=99 // pred_check_branch
          %758 = sbr.rel (%p756) target = $region108
        $region107: #{tpu_custom_call.1} parent=99 // pred_region
          %760 = dma.done %s752, 512
        $region108: #{tpu_custom_call.1} parent=99 // pred_fallthru
          _
        // Predicated region
        $region109: #{tpu_custom_call.1} parent=99 // pred_check
          %p761 = pneg %p113
        $region110: #{tpu_custom_call.1} parent=99 // pred_check_branch
          %763 = sbr.rel (%p761) target = $region112
        $region111: #{tpu_custom_call.1} parent=99 // pred_region
          %765 = dma.done [#allocation6], 1024
        $region112: #{tpu_custom_call.1} parent=99 // pred_fallthru
          _
        // Predicated region
        $region113: #{tpu_custom_call.1} parent=99 // pred_check
          %p766 = pneg %p155
        $region114: #{tpu_custom_call.1} parent=99 // pred_check_branch
          %768 = sbr.rel (%p766) target = $region116
        $region115: #{tpu_custom_call.1} parent=99 // pred_region
          %770 = dma.done [#allocation9], 1024
        $region116: #{tpu_custom_call.1} parent=99 // pred_fallthru
          _
        // Predicated region
        $region117: #{tpu_custom_call.1} parent=99 // pred_check
          %p771 = pneg %p176
        $region118: #{tpu_custom_call.1} parent=99 // pred_check_branch
          %773 = sbr.rel (%p771) target = $region120
        $region119: #{tpu_custom_call.1} parent=99 // pred_region
          %775 = dma.done [#allocation9], 1024
        $region120: #{tpu_custom_call.1} parent=99 // pred_fallthru
          _
        // Predicated region
        $region121: #{tpu_custom_call.1} parent=99 // pred_check
          %p776 = pneg %p218
        $region122: #{tpu_custom_call.1} parent=99 // pred_check_branch
          %778 = sbr.rel (%p776) target = $region124
        $region123: #{tpu_custom_call.1} parent=99 // pred_region
          %780 = dma.done [#allocation12], 1024
        $region124: #{tpu_custom_call.1} parent=99 // pred_fallthru
          _
        // Predicated region
        $region125: #{tpu_custom_call.1} parent=99 // pred_check
          %p781 = pneg %p239
        $region126: #{tpu_custom_call.1} parent=99 // pred_check_branch
          %783 = sbr.rel (%p781) target = $region128
        $region127: #{tpu_custom_call.1} parent=99 // pred_region
          %785 = dma.done [#allocation12], 1024
        $region128: #{tpu_custom_call.1} parent=99 // pred_fallthru
          _
        // Predicated region
        $region129: #{tpu_custom_call.1} parent=99 // pred_check
          %p786 = pneg %p281
        $region130: #{tpu_custom_call.1} parent=99 // pred_check_branch
          %788 = sbr.rel (%p786) target = $region132
        $region131: #{tpu_custom_call.1} parent=99 // pred_region
          %790 = dma.done [#allocation15], 2048
        $region132: #{tpu_custom_call.1} parent=99 // pred_fallthru
          _
        // Predicated region
        $region133: #{tpu_custom_call.1} parent=99 // pred_check
          %p791 = pneg %p302
        $region134: #{tpu_custom_call.1} parent=99 // pred_check_branch
          %793 = sbr.rel (%p791) target = $region136
        $region135: #{tpu_custom_call.1} parent=99 // pred_region
          %795 = dma.done [#allocation15], 2048
        $region136: #{tpu_custom_call.1} parent=99 // pred_fallthru
          _
        // Predicated region
        $region137: #{tpu_custom_call.1} parent=99 // pred_check
          %p796 = pneg %p344
        $region138: #{tpu_custom_call.1} parent=99 // pred_check_branch
          %798 = sbr.rel (%p796) target = $region140
        $region139: #{tpu_custom_call.1} parent=99 // pred_region
          %800 = dma.done [#allocation18], 2048
        $region140: #{tpu_custom_call.1} parent=99 // pred_fallthru
          _
        // Predicated region
        $region141: #{tpu_custom_call.1} parent=99 // pred_check
          %p801 = pneg %p365
        $region142: #{tpu_custom_call.1} parent=99 // pred_check_branch
          %803 = sbr.rel (%p801) target = $region144
        $region143: #{tpu_custom_call.1} parent=99 // pred_region
          %805 = dma.done [#allocation18], 2048
        $region144: #{tpu_custom_call.1} parent=99 // pred_fallthru
          _
        // Predicated region
        $region145: #{tpu_custom_call.1} parent=99 // pred_check
          %p806 = pneg %p407
        $region146: #{tpu_custom_call.1} parent=99 // pred_check_branch
          %808 = sbr.rel (%p806) target = $region148
        $region147: #{tpu_custom_call.1} parent=99 // pred_region
          %810 = dma.done [#allocation21], 1024
        $region148: #{tpu_custom_call.1} parent=99 // pred_fallthru
          _
        // Predicated region
        $region149: #{tpu_custom_call.1} parent=99 // pred_check
          %p811 = pneg %p449
        $region150: #{tpu_custom_call.1} parent=99 // pred_check_branch
          %813 = sbr.rel (%p811) target = $region152
        $region151: #{tpu_custom_call.1} parent=99 // pred_region
          %815 = dma.done [#allocation21], 1024
        $region152: #{tpu_custom_call.1} parent=99 // pred_fallthru
          _
        %s816 = sand.u32 %s53, 1
        %s817 = scalar_lea.sflag [#allocation3], %s816
        %s818 = sand.u32 %s53, 1
        %s819 = smul.addr %s818, 32
        %s820 = scalar_lea.vmem [#allocation2], %s819
        %p821 = pneg %p66
        %p822 = pneg %p63
        %s823 = sand.u32 %s45, 1
        %s824 = scalar_lea.sflag [#allocation6], %s823
        %s825 = sand.u32 %s79, 1
        %s826 = smul.addr %s825, 32
        %s827 = scalar_lea.vmem [#allocation5], %s826
        %p828 = pneg %p92
        %p829 = pneg %p89
        %p830 = pneg %p113
        %p831 = pneg %p110
        %p832 = pneg %p134
        %p833 = pneg %p131
        %p834 = pneg %p155
        %p835 = pneg %p152
        %p836 = pneg %p176
        %p837 = pneg %p173
        %p838 = pneg %p197
        %p839 = pneg %p194
        %p840 = pneg %p218
        %p841 = pneg %p215
        %p842 = pneg %p239
        %p843 = pneg %p236
        %p844 = pneg %p260
        %p845 = pneg %p257
        %p846 = pneg %p281
        %p847 = pneg %p278
        %p848 = pneg %p302
        %p849 = pneg %p299
        %p850 = pneg %p323
        %p851 = pneg %p320
        %p852 = pneg %p344
        %p853 = pneg %p341
        %p854 = pneg %p365
        %p855 = pneg %p362
        %p856 = pneg %p386
        %p857 = pneg %p383
        %p858 = pneg %p407
        %p859 = pneg %p404
        %p860 = pneg %p428
        %p861 = pneg %p425
        %p862 = pneg %p449
        %p863 = pneg %p446
        %p864 = pneg %p470
        %p865 = pneg %p467
        %p866 = pneg %p496
        %p867 = pneg %p493
        %s868 = sand.u32 %s483, 1
        %s869 = scalar_lea.sflag [#allocation4], %s868
        %s870 = sand.u32 %s483, 1
        %s871 = smul.addr %s870, 4
        %s872 = scalar_lea.vmem [#allocation23], %s871
        %v874 = vld [vmem:[%s755] sm:$0xf]
        %v875 = vld [vmem:[%s755 + $0x4] sm:$0xf]
        %v876 = vld [vmem:[%s755 + $0x8] sm:$0xf]
        %v877 = vld [vmem:[%s755 + $0xc] sm:$0xf]
        %v878 = vld [vmem:[%s755 + $0x10] sm:$0xf]
        %v879 = vld [vmem:[%s755 + $0x14] sm:$0xf]
        %v880 = vld [vmem:[%s755 + $0x18] sm:$0xf]
        %v881 = vld [vmem:[%s755 + $0x1c] sm:$0xf]
        %v882 = vld [vmem:[%s745] sm:$0xf]
        %v883 = vld [vmem:[%s745 + $0x4] sm:$0xf]
        %v884 = vld [vmem:[%s745 + $0x8] sm:$0xf]
        %v885 = vld [vmem:[%s745 + $0xc] sm:$0xf]
        %v886 = vld [vmem:[%s745 + $0x10] sm:$0xf]
        %v887 = vld [vmem:[%s745 + $0x14] sm:$0xf]
        %v888 = vld [vmem:[%s745 + $0x18] sm:$0xf]
        %v889 = vld [vmem:[%s745 + $0x1c] sm:$0xf]
        %v890 = vld [vmem:[#allocation7] sm:$0xf]
        %v891 = vld [vmem:[#allocation7 + $0x4] sm:$0xf]
        %v892 = vld [vmem:[#allocation7 + $0x8] sm:$0xf]
        %v893 = vld [vmem:[#allocation7 + $0xc] sm:$0xf]
        %v894 = vld [vmem:[#allocation7 + $0x10] sm:$0xf]
        %v895 = vld [vmem:[#allocation7 + $0x14] sm:$0xf]
        %v896 = vld [vmem:[#allocation7 + $0x18] sm:$0xf]
        %v897 = vld [vmem:[#allocation7 + $0x1c] sm:$0xf]
        %v898 = vld [vmem:[#allocation7 + $0x20] sm:$0xf]
        %v899 = vld [vmem:[#allocation7 + $0x24] sm:$0xf]
        %v900 = vld [vmem:[#allocation7 + $0x28] sm:$0xf]
        %v901 = vld [vmem:[#allocation7 + $0x2c] sm:$0xf]
        %v902 = vld [vmem:[#allocation7 + $0x30] sm:$0xf]
        %v903 = vld [vmem:[#allocation7 + $0x34] sm:$0xf]
        %v904 = vld [vmem:[#allocation7 + $0x38] sm:$0xf]
        %v905 = vld [vmem:[#allocation7 + $0x3c] sm:$0xf]
        %v914 = vunpack.c.l.b16 %v882
        %v915 = vunpack.c.l.b16 %v883
        %v916 = vunpack.c.l.b16 %v884
        %v917 = vunpack.c.l.b16 %v885
        %v918 = vunpack.c.l.b16 %v886
        %v919 = vunpack.c.l.b16 %v887
        %v920 = vunpack.c.l.b16 %v888
        %v921 = vunpack.c.l.b16 %v889
        %v922 = vpack.c.b16 %v915, %v914
        %v923 = vpack.c.b16 %v917, %v916
        %v924 = vpack.c.b16 %v919, %v918
        %v925 = vpack.c.b16 %v921, %v920
        %v946 = vunpack.c.l.b16 %v890
        %v947 = vunpack.c.l.b16 %v891
        %v948 = vunpack.c.l.b16 %v892
        %v949 = vunpack.c.l.b16 %v893
        %v950 = vunpack.c.l.b16 %v894
        %v951 = vunpack.c.l.b16 %v895
        %v952 = vunpack.c.l.b16 %v896
        %v953 = vunpack.c.l.b16 %v897
        %v954 = vunpack.c.l.b16 %v898
        %v955 = vunpack.c.l.b16 %v899
        %v956 = vunpack.c.l.b16 %v900
        %v957 = vunpack.c.l.b16 %v901
        %v958 = vunpack.c.l.b16 %v902
        %v959 = vunpack.c.l.b16 %v903
        %v960 = vunpack.c.l.b16 %v904
        %v961 = vunpack.c.l.b16 %v905
        %v962 = vpack.c.b16 %v947, %v946
        %v963 = vpack.c.b16 %v949, %v948
        %v964 = vpack.c.b16 %v951, %v950
        %v965 = vpack.c.b16 %v953, %v952
        %v966 = vpack.c.b16 %v955, %v954
        %v967 = vpack.c.b16 %v957, %v956
        %v968 = vpack.c.b16 %v959, %v958
        %v969 = vpack.c.b16 %v961, %v960
        %978 = vmatpush.bf16.msra.mxu0 %v969
        %979 = vmatpush.bf16.msra.mxu0 %v968
        %980 = vmatpush.bf16.msra.mxu0 %v967
        %981 = vmatpush.bf16.msra.mxu0 %v966
        %982 = vmatpush.bf16.msra.mxu0 %v965
        %983 = vmatpush.bf16.msra.mxu0 %v964
        %984 = vmatpush.bf16.msra.mxu0 %v963
        %985 = vmatpush.bf16.msra.mxu0 %v962
        %986 = vmatmul.bf16.gmra.mxu0 %v922
        %v987 = vpop.f32.mrf.mxu0
        %v988 = vadd.f32 0.0, %v987
        %v989 = vpop.f32.mrf.mxu0
        %v990 = vadd.f32 0.0, %v989
        %991 = vmatmul.bf16.gmra.mxu0 %v923
        %v992 = vpop.f32.mrf.mxu0
        %v993 = vadd.f32 0.0, %v992
        %v994 = vpop.f32.mrf.mxu0
        %v995 = vadd.f32 0.0, %v994
        %996 = vmatmul.bf16.gmra.mxu0 %v924
        %v997 = vpop.f32.mrf.mxu0
        %v998 = vadd.f32 0.0, %v997
        %v999 = vpop.f32.mrf.mxu0
        %v1000 = vadd.f32 0.0, %v999
        %1001 = vmatmul.bf16.gmra.mxu0 %v925
        %v1002 = vpop.f32.mrf.mxu0
        %v1003 = vadd.f32 0.0, %v1002
        %v1004 = vpop.f32.mrf.mxu0
        %v1005 = vadd.f32 0.0, %v1004
        %1006 = vdwg.mxu0
        %v1007 = vpack.c.bf16 %v990, %v988
        %v1008 = vpack.c.bf16 %v995, %v993
        %v1009 = vpack.c.bf16 %v1000, %v998
        %v1010 = vpack.c.bf16 %v1005, %v1003
        %v1011 = vld [vmem:[%s3] sm:$0x1]
        %v1013 = vperm.slane %v1011, 0
        %v1023 = vunpack.c.l.b16 %v874
        %v1024 = vunpack.c.l.b16 %v875
        %v1025 = vunpack.c.l.b16 %v876
        %v1026 = vunpack.c.l.b16 %v877
        %v1027 = vunpack.c.l.b16 %v878
        %v1028 = vunpack.c.l.b16 %v879
        %v1029 = vunpack.c.l.b16 %v880
        %v1030 = vunpack.c.l.b16 %v881
        %v1031 = vpack.c.b16 %v1024, %v1023
        %v1032 = vpack.c.b16 %v1026, %v1025
        %v1033 = vpack.c.b16 %v1028, %v1027
        %v1034 = vpack.c.b16 %v1030, %v1029
        %vm1035 = vcmask 523264
        %v1037 = vsel %vm1035, %v1031, 0
        %v1040 = vsel %vm1035, %v1032, 0
        %v1043 = vsel %vm1035, %v1033, 0
        %v1046 = vsel %vm1035, %v1034, 0
        %1048 = vmatpush.bf16.msra.mxu0 0
        %1049 = vmatpush.bf16.msra.mxu0 0
        %1050 = vmatpush.bf16.msra.mxu0 0
        %1051 = vmatpush.bf16.msra.mxu0 0
        %1052 = vmatpush.bf16.msra.mxu0 %v1010
        %1053 = vmatpush.bf16.msra.mxu0 %v1009
        %1054 = vmatpush.bf16.msra.mxu0 %v1008
        %1055 = vmatpush.bf16.msra.mxu0 %v1007
        %1056 = vmatmul.bf16.gmra.mxu0 %v1037
        %v1057 = vpop.f32.mrf.mxu0
        %v1058 = vadd.f32 %v1013, %v1057
        %v1059 = vpop.f32.mrf.mxu0
        %v1060 = vadd.f32 %v1013, %v1059
        %1061 = vmatmul.bf16.gmra.mxu0 %v1040
        %v1062 = vpop.f32.mrf.mxu0
        %v1063 = vadd.f32 %v1013, %v1062
        %v1064 = vpop.f32.mrf.mxu0
        %v1065 = vadd.f32 %v1013, %v1064
        %1066 = vmatmul.bf16.gmra.mxu0 %v1043
        %v1067 = vpop.f32.mrf.mxu0
        %v1068 = vadd.f32 %v1013, %v1067
        %v1069 = vpop.f32.mrf.mxu0
        %v1070 = vadd.f32 %v1013, %v1069
        %1071 = vmatmul.bf16.gmra.mxu0 %v1046
        %v1072 = vpop.f32.mrf.mxu0
        %v1073 = vadd.f32 %v1013, %v1072
        %v1074 = vpop.f32.mrf.mxu0
        %v1075 = vadd.f32 %v1013, %v1074
        %1076 = vdwg.mxu0
        %v1077 = vmax.f32 %v1058, 0.0
        %v1078 = vmax.f32 %v1060, 0.0
        %v1079 = vmax.f32 %v1063, 0.0
        %v1080 = vmax.f32 %v1065, 0.0
        %v1081 = vmax.f32 %v1068, 0.0
        %v1082 = vmax.f32 %v1070, 0.0
        %v1083 = vmax.f32 %v1073, 0.0
        %v1084 = vmax.f32 %v1075, 0.0
        %v1085 = vpack.c.bf16 %v1077, %v1077
        %v1086 = vpack.c.bf16 %v1078, %v1078
        %v1087 = vpack.c.bf16 %v1079, %v1079
        %v1088 = vpack.c.bf16 %v1080, %v1080
        %v1089 = vpack.c.bf16 %v1081, %v1081
        %v1090 = vpack.c.bf16 %v1082, %v1082
        %v1091 = vpack.c.bf16 %v1083, %v1083
        %v1092 = vpack.c.bf16 %v1084, %v1084
        %v1093 = vunpack.c.l.bf16 %v1085
        %v1094 = vunpack.c.l.bf16 %v1086
        %v1095 = vunpack.c.l.bf16 %v1087
        %v1096 = vunpack.c.l.bf16 %v1088
        %v1097 = vunpack.c.l.bf16 %v1089
        %v1098 = vunpack.c.l.bf16 %v1090
        %v1099 = vunpack.c.l.bf16 %v1091
        %v1100 = vunpack.c.l.bf16 %v1092
        %v1101 = vmax.f32 %v1093, %v1094
        %v1102 = vrot.slane %v1101, 4
        %v1103 = vmax.f32 %v1101, %v1102
        %v1104 = vrot.slane %v1103, 2
        %v1105 = vmax.f32 %v1103, %v1104
        %v1106 = vrot.slane %v1105, 1
        %v1107 = vmax.f32 %v1105, %v1106
        %v1108 = vmax.f32 %v1095, %v1096
        %v1109 = vrot.slane %v1108, 4
        %v1110 = vmax.f32 %v1108, %v1109
        %v1111 = vrot.slane %v1110, 2
        %v1112 = vmax.f32 %v1110, %v1111
        %v1113 = vrot.slane %v1112, 1
        %v1114 = vmax.f32 %v1112, %v1113
        %v1115 = vmax.f32 %v1097, %v1098
        %v1116 = vrot.slane %v1115, 4
        %v1117 = vmax.f32 %v1115, %v1116
        %v1118 = vrot.slane %v1117, 2
        %v1119 = vmax.f32 %v1117, %v1118
        %v1120 = vrot.slane %v1119, 1
        %v1121 = vmax.f32 %v1119, %v1120
        %v1122 = vmax.f32 %v1099, %v1100
        %v1123 = vrot.slane %v1122, 4
        %v1124 = vmax.f32 %v1122, %v1123
        %v1125 = vrot.slane %v1124, 2
        %v1126 = vmax.f32 %v1124, %v1125
        %v1127 = vrot.slane %v1126, 1
        %v1128 = vmax.f32 %v1126, %v1127
        %v1129 = vpack.c.bf16 %v1107, %v1107
        %v1130 = vpack.c.bf16 %v1114, %v1114
        %v1131 = vpack.c.bf16 %v1121, %v1121
        %v1132 = vpack.c.bf16 %v1128, %v1128
        %v1133 = vld [vmem:[#allocation8] sm:$0xf]
        %v1134 = vld [vmem:[#allocation8 + $0x4] sm:$0xf]
        %v1135 = vld [vmem:[#allocation8 + $0x8] sm:$0xf]
        %v1136 = vld [vmem:[#allocation8 + $0xc] sm:$0xf]
        %v1137 = vld [vmem:[#allocation8 + $0x10] sm:$0xf]
        %v1138 = vld [vmem:[#allocation8 + $0x14] sm:$0xf]
        %v1139 = vld [vmem:[#allocation8 + $0x18] sm:$0xf]
        %v1140 = vld [vmem:[#allocation8 + $0x1c] sm:$0xf]
        %v1141 = vld [vmem:[#allocation8 + $0x20] sm:$0xf]
        %v1142 = vld [vmem:[#allocation8 + $0x24] sm:$0xf]
        %v1143 = vld [vmem:[#allocation8 + $0x28] sm:$0xf]
        %v1144 = vld [vmem:[#allocation8 + $0x2c] sm:$0xf]
        %v1145 = vld [vmem:[#allocation8 + $0x30] sm:$0xf]
        %v1146 = vld [vmem:[#allocation8 + $0x34] sm:$0xf]
        %v1147 = vld [vmem:[#allocation8 + $0x38] sm:$0xf]
        %v1148 = vld [vmem:[#allocation8 + $0x3c] sm:$0xf]
        %v1157 = vunpack.c.l.b16 %v1085
        %v1158 = vunpack.c.l.b16 %v1086
        %v1159 = vunpack.c.l.b16 %v1087
        %v1160 = vunpack.c.l.b16 %v1088
        %v1161 = vunpack.c.l.b16 %v1089
        %v1162 = vunpack.c.l.b16 %v1090
        %v1163 = vunpack.c.l.b16 %v1091
        %v1164 = vunpack.c.l.b16 %v1092
        %v1165 = vpack.c.b16 %v1158, %v1157
        %v1166 = vpack.c.b16 %v1160, %v1159
        %v1167 = vpack.c.b16 %v1162, %v1161
        %v1168 = vpack.c.b16 %v1164, %v1163
        %v1189 = vunpack.c.l.b16 %v1133
        %v1190 = vunpack.c.l.b16 %v1134
        %v1191 = vunpack.c.l.b16 %v1135
        %v1192 = vunpack.c.l.b16 %v1136
        %v1193 = vunpack.c.l.b16 %v1137
        %v1194 = vunpack.c.l.b16 %v1138
        %v1195 = vunpack.c.l.b16 %v1139
        %v1196 = vunpack.c.l.b16 %v1140
        %v1197 = vunpack.c.l.b16 %v1141
        %v1198 = vunpack.c.l.b16 %v1142
        %v1199 = vunpack.c.l.b16 %v1143
        %v1200 = vunpack.c.l.b16 %v1144
        %v1201 = vunpack.c.l.b16 %v1145
        %v1202 = vunpack.c.l.b16 %v1146
        %v1203 = vunpack.c.l.b16 %v1147
        %v1204 = vunpack.c.l.b16 %v1148
        %v1205 = vpack.c.b16 %v1190, %v1189
        %v1206 = vpack.c.b16 %v1192, %v1191
        %v1207 = vpack.c.b16 %v1194, %v1193
        %v1208 = vpack.c.b16 %v1196, %v1195
        %v1209 = vpack.c.b16 %v1198, %v1197
        %v1210 = vpack.c.b16 %v1200, %v1199
        %v1211 = vpack.c.b16 %v1202, %v1201
        %v1212 = vpack.c.b16 %v1204, %v1203
        %1221 = vmatpush.bf16.msra.mxu0 %v1212
        %1222 = vmatpush.bf16.msra.mxu0 %v1211
        %1223 = vmatpush.bf16.msra.mxu0 %v1210
        %1224 = vmatpush.bf16.msra.mxu0 %v1209
        %1225 = vmatpush.bf16.msra.mxu0 %v1208
        %1226 = vmatpush.bf16.msra.mxu0 %v1207
        %1227 = vmatpush.bf16.msra.mxu0 %v1206
        %1228 = vmatpush.bf16.msra.mxu0 %v1205
        %1229 = vmatmul.bf16.gmra.mxu0 %v1165
        %v1230 = vpop.f32.mrf.mxu0
        %v1231 = vadd.f32 0.0, %v1230
        %v1232 = vpop.f32.mrf.mxu0
        %v1233 = vadd.f32 0.0, %v1232
        %1234 = vmatmul.bf16.gmra.mxu0 %v1166
        %v1235 = vpop.f32.mrf.mxu0
        %v1236 = vadd.f32 0.0, %v1235
        %v1237 = vpop.f32.mrf.mxu0
        %v1238 = vadd.f32 0.0, %v1237
        %1239 = vmatmul.bf16.gmra.mxu0 %v1167
        %v1240 = vpop.f32.mrf.mxu0
        %v1241 = vadd.f32 0.0, %v1240
        %v1242 = vpop.f32.mrf.mxu0
        %v1243 = vadd.f32 0.0, %v1242
        %1244 = vmatmul.bf16.gmra.mxu0 %v1168
        %v1245 = vpop.f32.mrf.mxu0
        %v1246 = vadd.f32 0.0, %v1245
        %v1247 = vpop.f32.mrf.mxu0
        %v1248 = vadd.f32 0.0, %v1247
        %1249 = vdwg.mxu0
        %v1250 = vld [vmem:[#allocation10] sm:$0xf]
        %v1251 = vld [vmem:[#allocation10 + $0x4] sm:$0xf]
        %v1252 = vld [vmem:[#allocation10 + $0x8] sm:$0xf]
        %v1253 = vld [vmem:[#allocation10 + $0xc] sm:$0xf]
        %v1254 = vld [vmem:[#allocation10 + $0x10] sm:$0xf]
        %v1255 = vld [vmem:[#allocation10 + $0x14] sm:$0xf]
        %v1256 = vld [vmem:[#allocation10 + $0x18] sm:$0xf]
        %v1257 = vld [vmem:[#allocation10 + $0x1c] sm:$0xf]
        %v1258 = vld [vmem:[#allocation10 + $0x20] sm:$0xf]
        %v1259 = vld [vmem:[#allocation10 + $0x24] sm:$0xf]
        %v1260 = vld [vmem:[#allocation10 + $0x28] sm:$0xf]
        %v1261 = vld [vmem:[#allocation10 + $0x2c] sm:$0xf]
        %v1262 = vld [vmem:[#allocation10 + $0x30] sm:$0xf]
        %v1263 = vld [vmem:[#allocation10 + $0x34] sm:$0xf]
        %v1264 = vld [vmem:[#allocation10 + $0x38] sm:$0xf]
        %v1265 = vld [vmem:[#allocation10 + $0x3c] sm:$0xf]
        %v1270 = vunpack.c.l.b16 %v1129
        %v1271 = vunpack.c.l.b16 %v1130
        %v1272 = vunpack.c.l.b16 %v1131
        %v1273 = vunpack.c.l.b16 %v1132
        %vm1274 = vcmask 1041409
        %v1275 = vsel %vm1274, %v1271, %v1270
        %vm1276 = vcmask 1042434
        %v1277 = vsel %vm1276, %v1272, %v1275
        %vm1278 = vcmask 1043459
        %v1279 = vsel %vm1278, %v1273, %v1277
        %v1280 = vpack.c.b16 %v1279, %v1279
        %v1298 = vunpack.c.l.b16 %v1250
        %v1299 = vunpack.c.l.b16 %v1251
        %v1300 = vunpack.c.l.b16 %v1252
        %v1301 = vunpack.c.l.b16 %v1253
        %v1302 = vunpack.c.l.b16 %v1254
        %v1303 = vunpack.c.l.b16 %v1255
        %v1304 = vunpack.c.l.b16 %v1256
        %v1305 = vunpack.c.l.b16 %v1257
        %v1306 = vunpack.c.l.b16 %v1258
        %v1307 = vunpack.c.l.b16 %v1259
        %v1308 = vunpack.c.l.b16 %v1260
        %v1309 = vunpack.c.l.b16 %v1261
        %v1310 = vunpack.c.l.b16 %v1262
        %v1311 = vunpack.c.l.b16 %v1263
        %v1312 = vunpack.c.l.b16 %v1264
        %v1313 = vunpack.c.l.b16 %v1265
        %v1314 = vpack.c.b16 %v1299, %v1298
        %v1315 = vpack.c.b16 %v1301, %v1300
        %v1316 = vpack.c.b16 %v1303, %v1302
        %v1317 = vpack.c.b16 %v1305, %v1304
        %v1318 = vpack.c.b16 %v1307, %v1306
        %v1319 = vpack.c.b16 %v1309, %v1308
        %v1320 = vpack.c.b16 %v1311, %v1310
        %v1321 = vpack.c.b16 %v1313, %v1312
        %1330 = vmatpush.bf16.msra.mxu0 %v1321
        %1331 = vmatpush.bf16.msra.mxu0 %v1320
        %1332 = vmatpush.bf16.msra.mxu0 %v1319
        %1333 = vmatpush.bf16.msra.mxu0 %v1318
        %1334 = vmatpush.bf16.msra.mxu0 %v1317
        %1335 = vmatpush.bf16.msra.mxu0 %v1316
        %1336 = vmatpush.bf16.msra.mxu0 %v1315
        %1337 = vmatpush.bf16.msra.mxu0 %v1314
        %1338 = vmatmul.bf16.gmra.mxu0 %v1280
        %v1339 = vpop.f32.mrf.mxu0
        %v1340 = vadd.f32 0.0, %v1339
        %v1341 = vpop.f32.mrf.mxu0
        %1342 = vdwg.mxu0
        %v1344 = vrot.slane %v1340, 1
        %v1345 = vrot.slane %v1340, 2
        %v1346 = vrot.slane %v1340, 3
        %v1347 = vperm.slane %v1340, 0
        %v1348 = vperm.slane %v1344, 0
        %v1349 = vperm.slane %v1345, 0
        %v1350 = vperm.slane %v1346, 0
        %v1355 = vadd.f32 %v1231, %v1347
        %v1356 = vadd.f32 %v1233, %v1347
        %v1357 = vadd.f32 %v1236, %v1348
        %v1358 = vadd.f32 %v1238, %v1348
        %v1359 = vadd.f32 %v1241, %v1349
        %v1360 = vadd.f32 %v1243, %v1349
        %v1361 = vadd.f32 %v1246, %v1350
        %v1362 = vadd.f32 %v1248, %v1350
        %v1363 = vpack.c.bf16 %v1356, %v1355
        %v1364 = vpack.c.bf16 %v1358, %v1357
        %v1365 = vpack.c.bf16 %v1360, %v1359
        %v1366 = vpack.c.bf16 %v1362, %v1361
        %v1367 = vld [vmem:[%s6] sm:$0x1]
        %v1369 = vperm.slane %v1367, 0
        %1371 = vmatpush.bf16.msra.mxu0 0
        %1372 = vmatpush.bf16.msra.mxu0 0
        %1373 = vmatpush.bf16.msra.mxu0 0
        %1374 = vmatpush.bf16.msra.mxu0 0
        %1375 = vmatpush.bf16.msra.mxu0 %v1366
        %1376 = vmatpush.bf16.msra.mxu0 %v1365
        %1377 = vmatpush.bf16.msra.mxu0 %v1364
        %1378 = vmatpush.bf16.msra.mxu0 %v1363
        %1379 = vmatmul.bf16.gmra.mxu0 %v1037
        %v1380 = vpop.f32.mrf.mxu0
        %v1381 = vadd.f32 %v1369, %v1380
        %v1382 = vpop.f32.mrf.mxu0
        %v1383 = vadd.f32 %v1369, %v1382
        %1384 = vmatmul.bf16.gmra.mxu0 %v1040
        %v1385 = vpop.f32.mrf.mxu0
        %v1386 = vadd.f32 %v1369, %v1385
        %v1387 = vpop.f32.mrf.mxu0
        %v1388 = vadd.f32 %v1369, %v1387
        %1389 = vmatmul.bf16.gmra.mxu0 %v1043
        %v1390 = vpop.f32.mrf.mxu0
        %v1391 = vadd.f32 %v1369, %v1390
        %v1392 = vpop.f32.mrf.mxu0
        %v1393 = vadd.f32 %v1369, %v1392
        %1394 = vmatmul.bf16.gmra.mxu0 %v1046
        %v1395 = vpop.f32.mrf.mxu0
        %v1396 = vadd.f32 %v1369, %v1395
        %v1397 = vpop.f32.mrf.mxu0
        %v1398 = vadd.f32 %v1369, %v1397
        %1399 = vdwg.mxu0
        %v1400 = vmax.f32 %v1381, 0.0
        %v1401 = vmax.f32 %v1383, 0.0
        %v1402 = vmax.f32 %v1386, 0.0
        %v1403 = vmax.f32 %v1388, 0.0
        %v1404 = vmax.f32 %v1391, 0.0
        %v1405 = vmax.f32 %v1393, 0.0
        %v1406 = vmax.f32 %v1396, 0.0
        %v1407 = vmax.f32 %v1398, 0.0
        %v1408 = vpack.c.bf16 %v1400, %v1400
        %v1409 = vpack.c.bf16 %v1401, %v1401
        %v1410 = vpack.c.bf16 %v1402, %v1402
        %v1411 = vpack.c.bf16 %v1403, %v1403
        %v1412 = vpack.c.bf16 %v1404, %v1404
        %v1413 = vpack.c.bf16 %v1405, %v1405
        %v1414 = vpack.c.bf16 %v1406, %v1406
        %v1415 = vpack.c.bf16 %v1407, %v1407
        %v1416 = vunpack.c.l.bf16 %v1408
        %v1417 = vunpack.c.l.bf16 %v1409
        %v1418 = vunpack.c.l.bf16 %v1410
        %v1419 = vunpack.c.l.bf16 %v1411
        %v1420 = vunpack.c.l.bf16 %v1412
        %v1421 = vunpack.c.l.bf16 %v1413
        %v1422 = vunpack.c.l.bf16 %v1414
        %v1423 = vunpack.c.l.bf16 %v1415
        %v1424 = vmax.f32 %v1416, %v1417
        %v1425 = vrot.slane %v1424, 4
        %v1426 = vmax.f32 %v1424, %v1425
        %v1427 = vrot.slane %v1426, 2
        %v1428 = vmax.f32 %v1426, %v1427
        %v1429 = vrot.slane %v1428, 1
        %v1430 = vmax.f32 %v1428, %v1429
        %v1431 = vmax.f32 %v1418, %v1419
        %v1432 = vrot.slane %v1431, 4
        %v1433 = vmax.f32 %v1431, %v1432
        %v1434 = vrot.slane %v1433, 2
        %v1435 = vmax.f32 %v1433, %v1434
        %v1436 = vrot.slane %v1435, 1
        %v1437 = vmax.f32 %v1435, %v1436
        %v1438 = vmax.f32 %v1420, %v1421
        %v1439 = vrot.slane %v1438, 4
        %v1440 = vmax.f32 %v1438, %v1439
        %v1441 = vrot.slane %v1440, 2
        %v1442 = vmax.f32 %v1440, %v1441
        %v1443 = vrot.slane %v1442, 1
        %v1444 = vmax.f32 %v1442, %v1443
        %v1445 = vmax.f32 %v1422, %v1423
        %v1446 = vrot.slane %v1445, 4
        %v1447 = vmax.f32 %v1445, %v1446
        %v1448 = vrot.slane %v1447, 2
        %v1449 = vmax.f32 %v1447, %v1448
        %v1450 = vrot.slane %v1449, 1
        %v1451 = vmax.f32 %v1449, %v1450
        %v1452 = vpack.c.bf16 %v1430, %v1430
        %v1453 = vpack.c.bf16 %v1437, %v1437
        %v1454 = vpack.c.bf16 %v1444, %v1444
        %v1455 = vpack.c.bf16 %v1451, %v1451
        %v1456 = vld [vmem:[#allocation11] sm:$0xf]
        %v1457 = vld [vmem:[#allocation11 + $0x4] sm:$0xf]
        %v1458 = vld [vmem:[#allocation11 + $0x8] sm:$0xf]
        %v1459 = vld [vmem:[#allocation11 + $0xc] sm:$0xf]
        %v1460 = vld [vmem:[#allocation11 + $0x10] sm:$0xf]
        %v1461 = vld [vmem:[#allocation11 + $0x14] sm:$0xf]
        %v1462 = vld [vmem:[#allocation11 + $0x18] sm:$0xf]
        %v1463 = vld [vmem:[#allocation11 + $0x1c] sm:$0xf]
        %v1464 = vld [vmem:[#allocation11 + $0x20] sm:$0xf]
        %v1465 = vld [vmem:[#allocation11 + $0x24] sm:$0xf]
        %v1466 = vld [vmem:[#allocation11 + $0x28] sm:$0xf]
        %v1467 = vld [vmem:[#allocation11 + $0x2c] sm:$0xf]
        %v1468 = vld [vmem:[#allocation11 + $0x30] sm:$0xf]
        %v1469 = vld [vmem:[#allocation11 + $0x34] sm:$0xf]
        %v1470 = vld [vmem:[#allocation11 + $0x38] sm:$0xf]
        %v1471 = vld [vmem:[#allocation11 + $0x3c] sm:$0xf]
        %v1480 = vunpack.c.l.b16 %v1408
        %v1481 = vunpack.c.l.b16 %v1409
        %v1482 = vunpack.c.l.b16 %v1410
        %v1483 = vunpack.c.l.b16 %v1411
        %v1484 = vunpack.c.l.b16 %v1412
        %v1485 = vunpack.c.l.b16 %v1413
        %v1486 = vunpack.c.l.b16 %v1414
        %v1487 = vunpack.c.l.b16 %v1415
        %v1488 = vpack.c.b16 %v1481, %v1480
        %v1489 = vpack.c.b16 %v1483, %v1482
        %v1490 = vpack.c.b16 %v1485, %v1484
        %v1491 = vpack.c.b16 %v1487, %v1486
        %v1512 = vunpack.c.l.b16 %v1456
        %v1513 = vunpack.c.l.b16 %v1457
        %v1514 = vunpack.c.l.b16 %v1458
        %v1515 = vunpack.c.l.b16 %v1459
        %v1516 = vunpack.c.l.b16 %v1460
        %v1517 = vunpack.c.l.b16 %v1461
        %v1518 = vunpack.c.l.b16 %v1462
        %v1519 = vunpack.c.l.b16 %v1463
        %v1520 = vunpack.c.l.b16 %v1464
        %v1521 = vunpack.c.l.b16 %v1465
        %v1522 = vunpack.c.l.b16 %v1466
        %v1523 = vunpack.c.l.b16 %v1467
        %v1524 = vunpack.c.l.b16 %v1468
        %v1525 = vunpack.c.l.b16 %v1469
        %v1526 = vunpack.c.l.b16 %v1470
        %v1527 = vunpack.c.l.b16 %v1471
        %v1528 = vpack.c.b16 %v1513, %v1512
        %v1529 = vpack.c.b16 %v1515, %v1514
        %v1530 = vpack.c.b16 %v1517, %v1516
        %v1531 = vpack.c.b16 %v1519, %v1518
        %v1532 = vpack.c.b16 %v1521, %v1520
        %v1533 = vpack.c.b16 %v1523, %v1522
        %v1534 = vpack.c.b16 %v1525, %v1524
        %v1535 = vpack.c.b16 %v1527, %v1526
        %1544 = vmatpush.bf16.msra.mxu0 %v1535
        %1545 = vmatpush.bf16.msra.mxu0 %v1534
        %1546 = vmatpush.bf16.msra.mxu0 %v1533
        %1547 = vmatpush.bf16.msra.mxu0 %v1532
        %1548 = vmatpush.bf16.msra.mxu0 %v1531
        %1549 = vmatpush.bf16.msra.mxu0 %v1530
        %1550 = vmatpush.bf16.msra.mxu0 %v1529
        %1551 = vmatpush.bf16.msra.mxu0 %v1528
        %1552 = vmatmul.bf16.gmra.mxu0 %v1488
        %v1553 = vpop.f32.mrf.mxu0
        %v1554 = vadd.f32 0.0, %v1553
        %v1555 = vpop.f32.mrf.mxu0
        %v1556 = vadd.f32 0.0, %v1555
        %1557 = vmatmul.bf16.gmra.mxu0 %v1489
        %v1558 = vpop.f32.mrf.mxu0
        %v1559 = vadd.f32 0.0, %v1558
        %v1560 = vpop.f32.mrf.mxu0
        %v1561 = vadd.f32 0.0, %v1560
        %1562 = vmatmul.bf16.gmra.mxu0 %v1490
        %v1563 = vpop.f32.mrf.mxu0
        %v1564 = vadd.f32 0.0, %v1563
        %v1565 = vpop.f32.mrf.mxu0
        %v1566 = vadd.f32 0.0, %v1565
        %1567 = vmatmul.bf16.gmra.mxu0 %v1491
        %v1568 = vpop.f32.mrf.mxu0
        %v1569 = vadd.f32 0.0, %v1568
        %v1570 = vpop.f32.mrf.mxu0
        %v1571 = vadd.f32 0.0, %v1570
        %1572 = vdwg.mxu0
        %v1573 = vld [vmem:[#allocation13] sm:$0xf]
        %v1574 = vld [vmem:[#allocation13 + $0x4] sm:$0xf]
        %v1575 = vld [vmem:[#allocation13 + $0x8] sm:$0xf]
        %v1576 = vld [vmem:[#allocation13 + $0xc] sm:$0xf]
        %v1577 = vld [vmem:[#allocation13 + $0x10] sm:$0xf]
        %v1578 = vld [vmem:[#allocation13 + $0x14] sm:$0xf]
        %v1579 = vld [vmem:[#allocation13 + $0x18] sm:$0xf]
        %v1580 = vld [vmem:[#allocation13 + $0x1c] sm:$0xf]
        %v1581 = vld [vmem:[#allocation13 + $0x20] sm:$0xf]
        %v1582 = vld [vmem:[#allocation13 + $0x24] sm:$0xf]
        %v1583 = vld [vmem:[#allocation13 + $0x28] sm:$0xf]
        %v1584 = vld [vmem:[#allocation13 + $0x2c] sm:$0xf]
        %v1585 = vld [vmem:[#allocation13 + $0x30] sm:$0xf]
        %v1586 = vld [vmem:[#allocation13 + $0x34] sm:$0xf]
        %v1587 = vld [vmem:[#allocation13 + $0x38] sm:$0xf]
        %v1588 = vld [vmem:[#allocation13 + $0x3c] sm:$0xf]
        %v1593 = vunpack.c.l.b16 %v1452
        %v1594 = vunpack.c.l.b16 %v1453
        %v1595 = vunpack.c.l.b16 %v1454
        %v1596 = vunpack.c.l.b16 %v1455
        %v1597 = vsel %vm1274, %v1594, %v1593
        %v1598 = vsel %vm1276, %v1595, %v1597
        %v1599 = vsel %vm1278, %v1596, %v1598
        %v1600 = vpack.c.b16 %v1599, %v1599
        %v1618 = vunpack.c.l.b16 %v1573
        %v1619 = vunpack.c.l.b16 %v1574
        %v1620 = vunpack.c.l.b16 %v1575
        %v1621 = vunpack.c.l.b16 %v1576
        %v1622 = vunpack.c.l.b16 %v1577
        %v1623 = vunpack.c.l.b16 %v1578
        %v1624 = vunpack.c.l.b16 %v1579
        %v1625 = vunpack.c.l.b16 %v1580
        %v1626 = vunpack.c.l.b16 %v1581
        %v1627 = vunpack.c.l.b16 %v1582
        %v1628 = vunpack.c.l.b16 %v1583
        %v1629 = vunpack.c.l.b16 %v1584
        %v1630 = vunpack.c.l.b16 %v1585
        %v1631 = vunpack.c.l.b16 %v1586
        %v1632 = vunpack.c.l.b16 %v1587
        %v1633 = vunpack.c.l.b16 %v1588
        %v1634 = vpack.c.b16 %v1619, %v1618
        %v1635 = vpack.c.b16 %v1621, %v1620
        %v1636 = vpack.c.b16 %v1623, %v1622
        %v1637 = vpack.c.b16 %v1625, %v1624
        %v1638 = vpack.c.b16 %v1627, %v1626
        %v1639 = vpack.c.b16 %v1629, %v1628
        %v1640 = vpack.c.b16 %v1631, %v1630
        %v1641 = vpack.c.b16 %v1633, %v1632
        %1650 = vmatpush.bf16.msra.mxu0 %v1641
        %1651 = vmatpush.bf16.msra.mxu0 %v1640
        %1652 = vmatpush.bf16.msra.mxu0 %v1639
        %1653 = vmatpush.bf16.msra.mxu0 %v1638
        %1654 = vmatpush.bf16.msra.mxu0 %v1637
        %1655 = vmatpush.bf16.msra.mxu0 %v1636
        %1656 = vmatpush.bf16.msra.mxu0 %v1635
        %1657 = vmatpush.bf16.msra.mxu0 %v1634
        %1658 = vmatmul.bf16.gmra.mxu0 %v1600
        %v1659 = vpop.f32.mrf.mxu0
        %v1660 = vadd.f32 0.0, %v1659
        %v1661 = vpop.f32.mrf.mxu0
        %1662 = vdwg.mxu0
        %v1664 = vrot.slane %v1660, 1
        %v1665 = vrot.slane %v1660, 2
        %v1666 = vrot.slane %v1660, 3
        %v1667 = vperm.slane %v1660, 0
        %v1668 = vperm.slane %v1664, 0
        %v1669 = vperm.slane %v1665, 0
        %v1670 = vperm.slane %v1666, 0
        %v1675 = vadd.f32 %v1554, %v1667
        %v1676 = vadd.f32 %v1556, %v1667
        %v1677 = vadd.f32 %v1559, %v1668
        %v1678 = vadd.f32 %v1561, %v1668
        %v1679 = vadd.f32 %v1564, %v1669
        %v1680 = vadd.f32 %v1566, %v1669
        %v1681 = vadd.f32 %v1569, %v1670
        %v1682 = vadd.f32 %v1571, %v1670
        %v1683 = vpack.c.bf16 %v1676, %v1675
        %v1684 = vpack.c.bf16 %v1678, %v1677
        %v1685 = vpack.c.bf16 %v1680, %v1679
        %v1686 = vpack.c.bf16 %v1682, %v1681
        %v1687 = vld [vmem:[%s9] sm:$0x1]
        %v1689 = vperm.slane %v1687, 0
        %1691 = vmatpush.bf16.msra.mxu0 0
        %1692 = vmatpush.bf16.msra.mxu0 0
        %1693 = vmatpush.bf16.msra.mxu0 0
        %1694 = vmatpush.bf16.msra.mxu0 0
        %1695 = vmatpush.bf16.msra.mxu0 %v1686
        %1696 = vmatpush.bf16.msra.mxu0 %v1685
        %1697 = vmatpush.bf16.msra.mxu0 %v1684
        %1698 = vmatpush.bf16.msra.mxu0 %v1683
        %1699 = vmatmul.bf16.gmra.mxu0 %v1037
        %v1700 = vpop.f32.mrf.mxu0
        %v1701 = vadd.f32 %v1689, %v1700
        %v1702 = vpop.f32.mrf.mxu0
        %v1703 = vadd.f32 %v1689, %v1702
        %1704 = vmatmul.bf16.gmra.mxu0 %v1040
        %v1705 = vpop.f32.mrf.mxu0
        %v1706 = vadd.f32 %v1689, %v1705
        %v1707 = vpop.f32.mrf.mxu0
        %v1708 = vadd.f32 %v1689, %v1707
        %1709 = vmatmul.bf16.gmra.mxu0 %v1043
        %v1710 = vpop.f32.mrf.mxu0
        %v1711 = vadd.f32 %v1689, %v1710
        %v1712 = vpop.f32.mrf.mxu0
        %v1713 = vadd.f32 %v1689, %v1712
        %1714 = vmatmul.bf16.gmra.mxu0 %v1046
        %v1715 = vpop.f32.mrf.mxu0
        %v1716 = vadd.f32 %v1689, %v1715
        %v1717 = vpop.f32.mrf.mxu0
        %v1718 = vadd.f32 %v1689, %v1717
        %1719 = vdwg.mxu0
        %v1720 = vmax.f32 %v1701, 0.0
        %v1721 = vmax.f32 %v1703, 0.0
        %v1722 = vmax.f32 %v1706, 0.0
        %v1723 = vmax.f32 %v1708, 0.0
        %v1724 = vmax.f32 %v1711, 0.0
        %v1725 = vmax.f32 %v1713, 0.0
        %v1726 = vmax.f32 %v1716, 0.0
        %v1727 = vmax.f32 %v1718, 0.0
        %v1728 = vpack.c.bf16 %v1720, %v1720
        %v1729 = vpack.c.bf16 %v1721, %v1721
        %v1730 = vpack.c.bf16 %v1722, %v1722
        %v1731 = vpack.c.bf16 %v1723, %v1723
        %v1732 = vpack.c.bf16 %v1724, %v1724
        %v1733 = vpack.c.bf16 %v1725, %v1725
        %v1734 = vpack.c.bf16 %v1726, %v1726
        %v1735 = vpack.c.bf16 %v1727, %v1727
        %v1736 = vunpack.c.l.bf16 %v1728
        %v1737 = vunpack.c.l.bf16 %v1729
        %v1738 = vunpack.c.l.bf16 %v1730
        %v1739 = vunpack.c.l.bf16 %v1731
        %v1740 = vunpack.c.l.bf16 %v1732
        %v1741 = vunpack.c.l.bf16 %v1733
        %v1742 = vunpack.c.l.bf16 %v1734
        %v1743 = vunpack.c.l.bf16 %v1735
        %v1744 = vmax.f32 %v1736, %v1737
        %v1745 = vrot.slane %v1744, 4
        %v1746 = vmax.f32 %v1744, %v1745
        %v1747 = vrot.slane %v1746, 2
        %v1748 = vmax.f32 %v1746, %v1747
        %v1749 = vrot.slane %v1748, 1
        %v1750 = vmax.f32 %v1748, %v1749
        %v1751 = vmax.f32 %v1738, %v1739
        %v1752 = vrot.slane %v1751, 4
        %v1753 = vmax.f32 %v1751, %v1752
        %v1754 = vrot.slane %v1753, 2
        %v1755 = vmax.f32 %v1753, %v1754
        %v1756 = vrot.slane %v1755, 1
        %v1757 = vmax.f32 %v1755, %v1756
        %v1758 = vmax.f32 %v1740, %v1741
        %v1759 = vrot.slane %v1758, 4
        %v1760 = vmax.f32 %v1758, %v1759
        %v1761 = vrot.slane %v1760, 2
        %v1762 = vmax.f32 %v1760, %v1761
        %v1763 = vrot.slane %v1762, 1
        %v1764 = vmax.f32 %v1762, %v1763
        %v1765 = vmax.f32 %v1742, %v1743
        %v1766 = vrot.slane %v1765, 4
        %v1767 = vmax.f32 %v1765, %v1766
        %v1768 = vrot.slane %v1767, 2
        %v1769 = vmax.f32 %v1767, %v1768
        %v1770 = vrot.slane %v1769, 1
        %v1771 = vmax.f32 %v1769, %v1770
        %v1772 = vpack.c.bf16 %v1750, %v1750
        %v1773 = vpack.c.bf16 %v1757, %v1757
        %v1774 = vpack.c.bf16 %v1764, %v1764
        %v1775 = vpack.c.bf16 %v1771, %v1771
        %v1776 = vld [vmem:[#allocation14] sm:$0xff]
        %v1777 = vld [vmem:[#allocation14 + $0x8] sm:$0xff]
        %v1778 = vld [vmem:[#allocation14 + $0x10] sm:$0xff]
        %v1779 = vld [vmem:[#allocation14 + $0x18] sm:$0xff]
        %v1780 = vld [vmem:[#allocation14 + $0x20] sm:$0xff]
        %v1781 = vld [vmem:[#allocation14 + $0x28] sm:$0xff]
        %v1782 = vld [vmem:[#allocation14 + $0x30] sm:$0xff]
        %v1783 = vld [vmem:[#allocation14 + $0x38] sm:$0xff]
        %v1784 = vld [vmem:[#allocation14 + $0x40] sm:$0xff]
        %v1785 = vld [vmem:[#allocation14 + $0x48] sm:$0xff]
        %v1786 = vld [vmem:[#allocation14 + $0x50] sm:$0xff]
        %v1787 = vld [vmem:[#allocation14 + $0x58] sm:$0xff]
        %v1788 = vld [vmem:[#allocation14 + $0x60] sm:$0xff]
        %v1789 = vld [vmem:[#allocation14 + $0x68] sm:$0xff]
        %v1790 = vld [vmem:[#allocation14 + $0x70] sm:$0xff]
        %v1791 = vld [vmem:[#allocation14 + $0x78] sm:$0xff]
        %v1800 = vunpack.c.l.b16 %v1728
        %v1801 = vunpack.c.l.b16 %v1729
        %v1802 = vunpack.c.l.b16 %v1730
        %v1803 = vunpack.c.l.b16 %v1731
        %v1804 = vunpack.c.l.b16 %v1732
        %v1805 = vunpack.c.l.b16 %v1733
        %v1806 = vunpack.c.l.b16 %v1734
        %v1807 = vunpack.c.l.b16 %v1735
        %v1808 = vpack.c.b16 %v1801, %v1800
        %v1809 = vpack.c.b16 %v1803, %v1802
        %v1810 = vpack.c.b16 %v1805, %v1804
        %v1811 = vpack.c.b16 %v1807, %v1806
        %v1832 = vunpack.c.l.b16 %v1776
        %v1833 = vunpack.c.h.b16 %v1776
        %v1834 = vunpack.c.l.b16 %v1777
        %v1835 = vunpack.c.h.b16 %v1777
        %v1836 = vunpack.c.l.b16 %v1778
        %v1837 = vunpack.c.h.b16 %v1778
        %v1838 = vunpack.c.l.b16 %v1779
        %v1839 = vunpack.c.h.b16 %v1779
        %v1840 = vunpack.c.l.b16 %v1780
        %v1841 = vunpack.c.h.b16 %v1780
        %v1842 = vunpack.c.l.b16 %v1781
        %v1843 = vunpack.c.h.b16 %v1781
        %v1844 = vunpack.c.l.b16 %v1782
        %v1845 = vunpack.c.h.b16 %v1782
        %v1846 = vunpack.c.l.b16 %v1783
        %v1847 = vunpack.c.h.b16 %v1783
        %v1848 = vunpack.c.l.b16 %v1784
        %v1849 = vunpack.c.h.b16 %v1784
        %v1850 = vunpack.c.l.b16 %v1785
        %v1851 = vunpack.c.h.b16 %v1785
        %v1852 = vunpack.c.l.b16 %v1786
        %v1853 = vunpack.c.h.b16 %v1786
        %v1854 = vunpack.c.l.b16 %v1787
        %v1855 = vunpack.c.h.b16 %v1787
        %v1856 = vunpack.c.l.b16 %v1788
        %v1857 = vunpack.c.h.b16 %v1788
        %v1858 = vunpack.c.l.b16 %v1789
        %v1859 = vunpack.c.h.b16 %v1789
        %v1860 = vunpack.c.l.b16 %v1790
        %v1861 = vunpack.c.h.b16 %v1790
        %v1862 = vunpack.c.l.b16 %v1791
        %v1863 = vunpack.c.h.b16 %v1791
        %v1864 = vpack.c.b16 %v1834, %v1832
        %v1865 = vpack.c.b16 %v1835, %v1833
        %v1866 = vpack.c.b16 %v1838, %v1836
        %v1867 = vpack.c.b16 %v1839, %v1837
        %v1868 = vpack.c.b16 %v1842, %v1840
        %v1869 = vpack.c.b16 %v1843, %v1841
        %v1870 = vpack.c.b16 %v1846, %v1844
        %v1871 = vpack.c.b16 %v1847, %v1845
        %v1872 = vpack.c.b16 %v1850, %v1848
        %v1873 = vpack.c.b16 %v1851, %v1849
        %v1874 = vpack.c.b16 %v1854, %v1852
        %v1875 = vpack.c.b16 %v1855, %v1853
        %v1876 = vpack.c.b16 %v1858, %v1856
        %v1877 = vpack.c.b16 %v1859, %v1857
        %v1878 = vpack.c.b16 %v1862, %v1860
        %v1879 = vpack.c.b16 %v1863, %v1861
        %1896 = vmatpush.bf16.msra.mxu0 %v1878
        %1897 = vmatpush.bf16.msra.mxu0 %v1876
        %1898 = vmatpush.bf16.msra.mxu0 %v1874
        %1899 = vmatpush.bf16.msra.mxu0 %v1872
        %1900 = vmatpush.bf16.msra.mxu0 %v1870
        %1901 = vmatpush.bf16.msra.mxu0 %v1868
        %1902 = vmatpush.bf16.msra.mxu0 %v1866
        %1903 = vmatpush.bf16.msra.mxu0 %v1864
        %1904 = vmatmul.bf16.gmra.mxu0 %v1808
        %v1905 = vpop.f32.mrf.mxu0
        %v1906 = vadd.f32 0.0, %v1905
        %v1907 = vpop.f32.mrf.mxu0
        %v1908 = vadd.f32 0.0, %v1907
        %1909 = vmatmul.bf16.gmra.mxu0 %v1809
        %v1910 = vpop.f32.mrf.mxu0
        %v1911 = vadd.f32 0.0, %v1910
        %v1912 = vpop.f32.mrf.mxu0
        %v1913 = vadd.f32 0.0, %v1912
        %1914 = vmatmul.bf16.gmra.mxu0 %v1810
        %v1915 = vpop.f32.mrf.mxu0
        %v1916 = vadd.f32 0.0, %v1915
        %v1917 = vpop.f32.mrf.mxu0
        %v1918 = vadd.f32 0.0, %v1917
        %1919 = vmatmul.bf16.gmra.mxu0 %v1811
        %v1920 = vpop.f32.mrf.mxu0
        %v1921 = vadd.f32 0.0, %v1920
        %v1922 = vpop.f32.mrf.mxu0
        %v1923 = vadd.f32 0.0, %v1922
        %1924 = vdwg.mxu0
        %1925 = vmatpush.bf16.msra.mxu0 %v1879
        %1926 = vmatpush.bf16.msra.mxu0 %v1877
        %1927 = vmatpush.bf16.msra.mxu0 %v1875
        %1928 = vmatpush.bf16.msra.mxu0 %v1873
        %1929 = vmatpush.bf16.msra.mxu0 %v1871
        %1930 = vmatpush.bf16.msra.mxu0 %v1869
        %1931 = vmatpush.bf16.msra.mxu0 %v1867
        %1932 = vmatpush.bf16.msra.mxu0 %v1865
        %1933 = vmatmul.bf16.gmra.mxu0 %v1808
        %v1934 = vpop.f32.mrf.mxu0
        %v1935 = vadd.f32 0.0, %v1934
        %v1936 = vpop.f32.mrf.mxu0
        %v1937 = vadd.f32 0.0, %v1936
        %1938 = vmatmul.bf16.gmra.mxu0 %v1809
        %v1939 = vpop.f32.mrf.mxu0
        %v1940 = vadd.f32 0.0, %v1939
        %v1941 = vpop.f32.mrf.mxu0
        %v1942 = vadd.f32 0.0, %v1941
        %1943 = vmatmul.bf16.gmra.mxu0 %v1810
        %v1944 = vpop.f32.mrf.mxu0
        %v1945 = vadd.f32 0.0, %v1944
        %v1946 = vpop.f32.mrf.mxu0
        %v1947 = vadd.f32 0.0, %v1946
        %1948 = vmatmul.bf16.gmra.mxu0 %v1811
        %v1949 = vpop.f32.mrf.mxu0
        %v1950 = vadd.f32 0.0, %v1949
        %v1951 = vpop.f32.mrf.mxu0
        %v1952 = vadd.f32 0.0, %v1951
        %1953 = vdwg.mxu0
        %v1954 = vld [vmem:[#allocation16] sm:$0xff]
        %v1955 = vld [vmem:[#allocation16 + $0x8] sm:$0xff]
        %v1956 = vld [vmem:[#allocation16 + $0x10] sm:$0xff]
        %v1957 = vld [vmem:[#allocation16 + $0x18] sm:$0xff]
        %v1958 = vld [vmem:[#allocation16 + $0x20] sm:$0xff]
        %v1959 = vld [vmem:[#allocation16 + $0x28] sm:$0xff]
        %v1960 = vld [vmem:[#allocation16 + $0x30] sm:$0xff]
        %v1961 = vld [vmem:[#allocation16 + $0x38] sm:$0xff]
        %v1962 = vld [vmem:[#allocation16 + $0x40] sm:$0xff]
        %v1963 = vld [vmem:[#allocation16 + $0x48] sm:$0xff]
        %v1964 = vld [vmem:[#allocation16 + $0x50] sm:$0xff]
        %v1965 = vld [vmem:[#allocation16 + $0x58] sm:$0xff]
        %v1966 = vld [vmem:[#allocation16 + $0x60] sm:$0xff]
        %v1967 = vld [vmem:[#allocation16 + $0x68] sm:$0xff]
        %v1968 = vld [vmem:[#allocation16 + $0x70] sm:$0xff]
        %v1969 = vld [vmem:[#allocation16 + $0x78] sm:$0xff]
        %v1974 = vunpack.c.l.b16 %v1772
        %v1975 = vunpack.c.l.b16 %v1773
        %v1976 = vunpack.c.l.b16 %v1774
        %v1977 = vunpack.c.l.b16 %v1775
        %v1978 = vsel %vm1274, %v1975, %v1974
        %v1979 = vsel %vm1276, %v1976, %v1978
        %v1980 = vsel %vm1278, %v1977, %v1979
        %v1981 = vpack.c.b16 %v1980, %v1980
        %v1999 = vunpack.c.l.b16 %v1954
        %v2000 = vunpack.c.h.b16 %v1954
        %v2001 = vunpack.c.l.b16 %v1955
        %v2002 = vunpack.c.h.b16 %v1955
        %v2003 = vunpack.c.l.b16 %v1956
        %v2004 = vunpack.c.h.b16 %v1956
        %v2005 = vunpack.c.l.b16 %v1957
        %v2006 = vunpack.c.h.b16 %v1957
        %v2007 = vunpack.c.l.b16 %v1958
        %v2008 = vunpack.c.h.b16 %v1958
        %v2009 = vunpack.c.l.b16 %v1959
        %v2010 = vunpack.c.h.b16 %v1959
        %v2011 = vunpack.c.l.b16 %v1960
        %v2012 = vunpack.c.h.b16 %v1960
        %v2013 = vunpack.c.l.b16 %v1961
        %v2014 = vunpack.c.h.b16 %v1961
        %v2015 = vunpack.c.l.b16 %v1962
        %v2016 = vunpack.c.h.b16 %v1962
        %v2017 = vunpack.c.l.b16 %v1963
        %v2018 = vunpack.c.h.b16 %v1963
        %v2019 = vunpack.c.l.b16 %v1964
        %v2020 = vunpack.c.h.b16 %v1964
        %v2021 = vunpack.c.l.b16 %v1965
        %v2022 = vunpack.c.h.b16 %v1965
        %v2023 = vunpack.c.l.b16 %v1966
        %v2024 = vunpack.c.h.b16 %v1966
        %v2025 = vunpack.c.l.b16 %v1967
        %v2026 = vunpack.c.h.b16 %v1967
        %v2027 = vunpack.c.l.b16 %v1968
        %v2028 = vunpack.c.h.b16 %v1968
        %v2029 = vunpack.c.l.b16 %v1969
        %v2030 = vunpack.c.h.b16 %v1969
        %v2031 = vpack.c.b16 %v2001, %v1999
        %v2032 = vpack.c.b16 %v2002, %v2000
        %v2033 = vpack.c.b16 %v2005, %v2003
        %v2034 = vpack.c.b16 %v2006, %v2004
        %v2035 = vpack.c.b16 %v2009, %v2007
        %v2036 = vpack.c.b16 %v2010, %v2008
        %v2037 = vpack.c.b16 %v2013, %v2011
        %v2038 = vpack.c.b16 %v2014, %v2012
        %v2039 = vpack.c.b16 %v2017, %v2015
        %v2040 = vpack.c.b16 %v2018, %v2016
        %v2041 = vpack.c.b16 %v2021, %v2019
        %v2042 = vpack.c.b16 %v2022, %v2020
        %v2043 = vpack.c.b16 %v2025, %v2023
        %v2044 = vpack.c.b16 %v2026, %v2024
        %v2045 = vpack.c.b16 %v2029, %v2027
        %v2046 = vpack.c.b16 %v2030, %v2028
        %2063 = vmatpush.bf16.msra.mxu0 %v2045
        %2064 = vmatpush.bf16.msra.mxu0 %v2043
        %2065 = vmatpush.bf16.msra.mxu0 %v2041
        %2066 = vmatpush.bf16.msra.mxu0 %v2039
        %2067 = vmatpush.bf16.msra.mxu0 %v2037
        %2068 = vmatpush.bf16.msra.mxu0 %v2035
        %2069 = vmatpush.bf16.msra.mxu0 %v2033
        %2070 = vmatpush.bf16.msra.mxu0 %v2031
        %2071 = vmatmul.bf16.gmra.mxu0 %v1981
        %v2072 = vpop.f32.mrf.mxu0
        %v2073 = vadd.f32 0.0, %v2072
        %v2074 = vpop.f32.mrf.mxu0
        %2075 = vdwg.mxu0
        %2076 = vmatpush.bf16.msra.mxu0 %v2046
        %2077 = vmatpush.bf16.msra.mxu0 %v2044
        %2078 = vmatpush.bf16.msra.mxu0 %v2042
        %2079 = vmatpush.bf16.msra.mxu0 %v2040
        %2080 = vmatpush.bf16.msra.mxu0 %v2038
        %2081 = vmatpush.bf16.msra.mxu0 %v2036
        %2082 = vmatpush.bf16.msra.mxu0 %v2034
        %2083 = vmatpush.bf16.msra.mxu0 %v2032
        %2084 = vmatmul.bf16.gmra.mxu0 %v1981
        %v2085 = vpop.f32.mrf.mxu0
        %v2086 = vadd.f32 0.0, %v2085
        %v2087 = vpop.f32.mrf.mxu0
        %2088 = vdwg.mxu0
        %v2091 = vrot.slane %v2086, 7
        %vm2092 = vcmask 1040384
        %v2093 = vsel %vm2092, %v2073, %v2091
        %v2094 = vsel %vm1274, %v2073, %v2091
        %v2095 = vrot.slane %v2094, 1
        %v2096 = vsel %vm1276, %v2073, %v2091
        %v2097 = vrot.slane %v2096, 2
        %v2098 = vsel %vm1278, %v2073, %v2091
        %v2099 = vrot.slane %v2098, 3
        %v2100 = vperm.slane %v2093, 0
        %v2101 = vperm.slane %v2093, 1
        %v2102 = vperm.slane %v2095, 0
        %v2103 = vperm.slane %v2095, 1
        %v2104 = vperm.slane %v2097, 0
        %v2105 = vperm.slane %v2097, 1
        %v2106 = vperm.slane %v2099, 0
        %v2107 = vperm.slane %v2099, 1
        %v2116 = vadd.f32 %v1906, %v2100
        %v2117 = vadd.f32 %v1935, %v2101
        %v2118 = vadd.f32 %v1908, %v2100
        %v2119 = vadd.f32 %v1937, %v2101
        %v2120 = vadd.f32 %v1911, %v2102
        %v2121 = vadd.f32 %v1940, %v2103
        %v2122 = vadd.f32 %v1913, %v2102
        %v2123 = vadd.f32 %v1942, %v2103
        %v2124 = vadd.f32 %v1916, %v2104
        %v2125 = vadd.f32 %v1945, %v2105
        %v2126 = vadd.f32 %v1918, %v2104
        %v2127 = vadd.f32 %v1947, %v2105
        %v2128 = vadd.f32 %v1921, %v2106
        %v2129 = vadd.f32 %v1950, %v2107
        %v2130 = vadd.f32 %v1923, %v2106
        %v2131 = vadd.f32 %v1952, %v2107
        %v2132 = vpack.c.bf16 %v2118, %v2116
        %v2133 = vpack.c.bf16 %v2119, %v2117
        %v2134 = vpack.c.bf16 %v2122, %v2120
        %v2135 = vpack.c.bf16 %v2123, %v2121
        %v2136 = vpack.c.bf16 %v2126, %v2124
        %v2137 = vpack.c.bf16 %v2127, %v2125
        %v2138 = vpack.c.bf16 %v2130, %v2128
        %v2139 = vpack.c.bf16 %v2131, %v2129
        %v2140 = vld [vmem:[%s12] sm:$0x3]
        %v2142 = vperm.slane %v2140, 0
        %v2143 = vperm.slane %v2140, 1
        %2146 = vmatpush.bf16.msra.mxu0 0
        %2147 = vmatpush.bf16.msra.mxu0 0
        %2148 = vmatpush.bf16.msra.mxu0 0
        %2149 = vmatpush.bf16.msra.mxu0 0
        %2150 = vmatpush.bf16.msra.mxu0 %v2138
        %2151 = vmatpush.bf16.msra.mxu0 %v2136
        %2152 = vmatpush.bf16.msra.mxu0 %v2134
        %2153 = vmatpush.bf16.msra.mxu0 %v2132
        %2154 = vmatmul.bf16.gmra.mxu0 %v1037
        %v2155 = vpop.f32.mrf.mxu0
        %v2156 = vadd.f32 %v2142, %v2155
        %v2157 = vpop.f32.mrf.mxu0
        %v2158 = vadd.f32 %v2142, %v2157
        %2159 = vmatmul.bf16.gmra.mxu0 %v1040
        %v2160 = vpop.f32.mrf.mxu0
        %v2161 = vadd.f32 %v2142, %v2160
        %v2162 = vpop.f32.mrf.mxu0
        %v2163 = vadd.f32 %v2142, %v2162
        %2164 = vmatmul.bf16.gmra.mxu0 %v1043
        %v2165 = vpop.f32.mrf.mxu0
        %v2166 = vadd.f32 %v2142, %v2165
        %v2167 = vpop.f32.mrf.mxu0
        %v2168 = vadd.f32 %v2142, %v2167
        %2169 = vmatmul.bf16.gmra.mxu0 %v1046
        %v2170 = vpop.f32.mrf.mxu0
        %v2171 = vadd.f32 %v2142, %v2170
        %v2172 = vpop.f32.mrf.mxu0
        %v2173 = vadd.f32 %v2142, %v2172
        %2174 = vdwg.mxu0
        %2175 = vmatpush.bf16.msra.mxu0 0
        %2176 = vmatpush.bf16.msra.mxu0 0
        %2177 = vmatpush.bf16.msra.mxu0 0
        %2178 = vmatpush.bf16.msra.mxu0 0
        %2179 = vmatpush.bf16.msra.mxu0 %v2139
        %2180 = vmatpush.bf16.msra.mxu0 %v2137
        %2181 = vmatpush.bf16.msra.mxu0 %v2135
        %2182 = vmatpush.bf16.msra.mxu0 %v2133
        %2183 = vmatmul.bf16.gmra.mxu0 %v1037
        %v2184 = vpop.f32.mrf.mxu0
        %v2185 = vadd.f32 %v2143, %v2184
        %v2186 = vpop.f32.mrf.mxu0
        %v2187 = vadd.f32 %v2143, %v2186
        %2188 = vmatmul.bf16.gmra.mxu0 %v1040
        %v2189 = vpop.f32.mrf.mxu0
        %v2190 = vadd.f32 %v2143, %v2189
        %v2191 = vpop.f32.mrf.mxu0
        %v2192 = vadd.f32 %v2143, %v2191
        %2193 = vmatmul.bf16.gmra.mxu0 %v1043
        %v2194 = vpop.f32.mrf.mxu0
        %v2195 = vadd.f32 %v2143, %v2194
        %v2196 = vpop.f32.mrf.mxu0
        %v2197 = vadd.f32 %v2143, %v2196
        %2198 = vmatmul.bf16.gmra.mxu0 %v1046
        %v2199 = vpop.f32.mrf.mxu0
        %v2200 = vadd.f32 %v2143, %v2199
        %v2201 = vpop.f32.mrf.mxu0
        %v2202 = vadd.f32 %v2143, %v2201
        %2203 = vdwg.mxu0
        %v2204 = vmax.f32 %v2156, 0.0
        %v2205 = vmax.f32 %v2185, 0.0
        %v2206 = vmax.f32 %v2158, 0.0
        %v2207 = vmax.f32 %v2187, 0.0
        %v2208 = vmax.f32 %v2161, 0.0
        %v2209 = vmax.f32 %v2190, 0.0
        %v2210 = vmax.f32 %v2163, 0.0
        %v2211 = vmax.f32 %v2192, 0.0
        %v2212 = vmax.f32 %v2166, 0.0
        %v2213 = vmax.f32 %v2195, 0.0
        %v2214 = vmax.f32 %v2168, 0.0
        %v2215 = vmax.f32 %v2197, 0.0
        %v2216 = vmax.f32 %v2171, 0.0
        %v2217 = vmax.f32 %v2200, 0.0
        %v2218 = vmax.f32 %v2173, 0.0
        %v2219 = vmax.f32 %v2202, 0.0
        %v2220 = vpack.c.bf16 %v2205, %v2204
        %v2221 = vpack.c.bf16 %v2207, %v2206
        %v2222 = vpack.c.bf16 %v2209, %v2208
        %v2223 = vpack.c.bf16 %v2211, %v2210
        %v2224 = vpack.c.bf16 %v2213, %v2212
        %v2225 = vpack.c.bf16 %v2215, %v2214
        %v2226 = vpack.c.bf16 %v2217, %v2216
        %v2227 = vpack.c.bf16 %v2219, %v2218
        %v2228 = vunpack.c.l.bf16 %v2220
        %v2229 = vunpack.c.h.bf16 %v2220
        %v2230 = vunpack.c.l.bf16 %v2221
        %v2231 = vunpack.c.h.bf16 %v2221
        %v2232 = vunpack.c.l.bf16 %v2222
        %v2233 = vunpack.c.h.bf16 %v2222
        %v2234 = vunpack.c.l.bf16 %v2223
        %v2235 = vunpack.c.h.bf16 %v2223
        %v2236 = vunpack.c.l.bf16 %v2224
        %v2237 = vunpack.c.h.bf16 %v2224
        %v2238 = vunpack.c.l.bf16 %v2225
        %v2239 = vunpack.c.h.bf16 %v2225
        %v2240 = vunpack.c.l.bf16 %v2226
        %v2241 = vunpack.c.h.bf16 %v2226
        %v2242 = vunpack.c.l.bf16 %v2227
        %v2243 = vunpack.c.h.bf16 %v2227
        %v2244 = vadd.f32 %v2228, %v2230
        %v2245 = vrot.slane %v2244, 4
        %v2246 = vadd.f32 %v2244, %v2245
        %v2247 = vrot.slane %v2246, 2
        %v2248 = vadd.f32 %v2246, %v2247
        %v2249 = vrot.slane %v2248, 1
        %v2250 = vadd.f32 %v2248, %v2249
        %v2251 = vadd.f32 %v2229, %v2231
        %v2252 = vrot.slane %v2251, 4
        %v2253 = vadd.f32 %v2251, %v2252
        %v2254 = vrot.slane %v2253, 2
        %v2255 = vadd.f32 %v2253, %v2254
        %v2256 = vrot.slane %v2255, 1
        %v2257 = vadd.f32 %v2255, %v2256
        %v2258 = vadd.f32 %v2232, %v2234
        %v2259 = vrot.slane %v2258, 4
        %v2260 = vadd.f32 %v2258, %v2259
        %v2261 = vrot.slane %v2260, 2
        %v2262 = vadd.f32 %v2260, %v2261
        %v2263 = vrot.slane %v2262, 1
        %v2264 = vadd.f32 %v2262, %v2263
        %v2265 = vadd.f32 %v2233, %v2235
        %v2266 = vrot.slane %v2265, 4
        %v2267 = vadd.f32 %v2265, %v2266
        %v2268 = vrot.slane %v2267, 2
        %v2269 = vadd.f32 %v2267, %v2268
        %v2270 = vrot.slane %v2269, 1
        %v2271 = vadd.f32 %v2269, %v2270
        %v2272 = vadd.f32 %v2236, %v2238
        %v2273 = vrot.slane %v2272, 4
        %v2274 = vadd.f32 %v2272, %v2273
        %v2275 = vrot.slane %v2274, 2
        %v2276 = vadd.f32 %v2274, %v2275
        %v2277 = vrot.slane %v2276, 1
        %v2278 = vadd.f32 %v2276, %v2277
        %v2279 = vadd.f32 %v2237, %v2239
        %v2280 = vrot.slane %v2279, 4
        %v2281 = vadd.f32 %v2279, %v2280
        %v2282 = vrot.slane %v2281, 2
        %v2283 = vadd.f32 %v2281, %v2282
        %v2284 = vrot.slane %v2283, 1
        %v2285 = vadd.f32 %v2283, %v2284
        %v2286 = vadd.f32 %v2240, %v2242
        %v2287 = vrot.slane %v2286, 4
        %v2288 = vadd.f32 %v2286, %v2287
        %v2289 = vrot.slane %v2288, 2
        %v2290 = vadd.f32 %v2288, %v2289
        %v2291 = vrot.slane %v2290, 1
        %v2292 = vadd.f32 %v2290, %v2291
        %v2293 = vadd.f32 %v2241, %v2243
        %v2294 = vrot.slane %v2293, 4
        %v2295 = vadd.f32 %v2293, %v2294
        %v2296 = vrot.slane %v2295, 2
        %v2297 = vadd.f32 %v2295, %v2296
        %v2298 = vrot.slane %v2297, 1
        %v2299 = vadd.f32 %v2297, %v2298
        %v2300 = vrcp.pop 16.0
        %v2301 = vmul.f32 16.0, %v2300
        %v2302 = vsub.f32 1.0, %v2301
        %v2303 = vmul.f32 %v2300, %v2302
        %v2304 = vadd.f32 %v2300, %v2303
        %vm2305 = vweird.f32 %v2300
        %v2306 = vsel %vm2305, %v2300, %v2304
        %v2307 = vmul.f32 %v2250, %v2306
        %v2308 = vmul.f32 %v2257, %v2306
        %v2309 = vmul.f32 %v2264, %v2306
        %v2310 = vmul.f32 %v2271, %v2306
        %v2311 = vmul.f32 %v2278, %v2306
        %v2312 = vmul.f32 %v2285, %v2306
        %v2313 = vmul.f32 %v2292, %v2306
        %v2314 = vmul.f32 %v2299, %v2306
        %v2315 = vpack.c.bf16 %v2307, %v2307
        %v2316 = vpack.c.bf16 %v2308, %v2308
        %v2317 = vpack.c.bf16 %v2309, %v2309
        %v2318 = vpack.c.bf16 %v2310, %v2310
        %v2319 = vpack.c.bf16 %v2311, %v2311
        %v2320 = vpack.c.bf16 %v2312, %v2312
        %v2321 = vpack.c.bf16 %v2313, %v2313
        %v2322 = vpack.c.bf16 %v2314, %v2314
        %v2323 = vmax.f32 %v2228, %v2230
        %v2324 = vrot.slane %v2323, 4
        %v2325 = vmax.f32 %v2323, %v2324
        %v2326 = vrot.slane %v2325, 2
        %v2327 = vmax.f32 %v2325, %v2326
        %v2328 = vrot.slane %v2327, 1
        %v2329 = vmax.f32 %v2327, %v2328
        %v2330 = vmax.f32 %v2229, %v2231
        %v2331 = vrot.slane %v2330, 4
        %v2332 = vmax.f32 %v2330, %v2331
        %v2333 = vrot.slane %v2332, 2
        %v2334 = vmax.f32 %v2332, %v2333
        %v2335 = vrot.slane %v2334, 1
        %v2336 = vmax.f32 %v2334, %v2335
        %v2337 = vmax.f32 %v2232, %v2234
        %v2338 = vrot.slane %v2337, 4
        %v2339 = vmax.f32 %v2337, %v2338
        %v2340 = vrot.slane %v2339, 2
        %v2341 = vmax.f32 %v2339, %v2340
        %v2342 = vrot.slane %v2341, 1
        %v2343 = vmax.f32 %v2341, %v2342
        %v2344 = vmax.f32 %v2233, %v2235
        %v2345 = vrot.slane %v2344, 4
        %v2346 = vmax.f32 %v2344, %v2345
        %v2347 = vrot.slane %v2346, 2
        %v2348 = vmax.f32 %v2346, %v2347
        %v2349 = vrot.slane %v2348, 1
        %v2350 = vmax.f32 %v2348, %v2349
        %v2351 = vmax.f32 %v2236, %v2238
        %v2352 = vrot.slane %v2351, 4
        %v2353 = vmax.f32 %v2351, %v2352
        %v2354 = vrot.slane %v2353, 2
        %v2355 = vmax.f32 %v2353, %v2354
        %v2356 = vrot.slane %v2355, 1
        %v2357 = vmax.f32 %v2355, %v2356
        %v2358 = vmax.f32 %v2237, %v2239
        %v2359 = vrot.slane %v2358, 4
        %v2360 = vmax.f32 %v2358, %v2359
        %v2361 = vrot.slane %v2360, 2
        %v2362 = vmax.f32 %v2360, %v2361
        %v2363 = vrot.slane %v2362, 1
        %v2364 = vmax.f32 %v2362, %v2363
        %v2365 = vmax.f32 %v2240, %v2242
        %v2366 = vrot.slane %v2365, 4
        %v2367 = vmax.f32 %v2365, %v2366
        %v2368 = vrot.slane %v2367, 2
        %v2369 = vmax.f32 %v2367, %v2368
        %v2370 = vrot.slane %v2369, 1
        %v2371 = vmax.f32 %v2369, %v2370
        %v2372 = vmax.f32 %v2241, %v2243
        %v2373 = vrot.slane %v2372, 4
        %v2374 = vmax.f32 %v2372, %v2373
        %v2375 = vrot.slane %v2374, 2
        %v2376 = vmax.f32 %v2374, %v2375
        %v2377 = vrot.slane %v2376, 1
        %v2378 = vmax.f32 %v2376, %v2377
        %v2379 = vpack.c.bf16 %v2329, %v2329
        %v2380 = vpack.c.bf16 %v2336, %v2336
        %v2381 = vpack.c.bf16 %v2343, %v2343
        %v2382 = vpack.c.bf16 %v2350, %v2350
        %v2383 = vpack.c.bf16 %v2357, %v2357
        %v2384 = vpack.c.bf16 %v2364, %v2364
        %v2385 = vpack.c.bf16 %v2371, %v2371
        %v2386 = vpack.c.bf16 %v2378, %v2378
        %v2387 = vld [vmem:[#allocation17] sm:$0xf]
        %v2388 = vld [vmem:[#allocation17 + $0x4] sm:$0xf]
        %v2389 = vld [vmem:[#allocation17 + $0x8] sm:$0xf]
        %v2390 = vld [vmem:[#allocation17 + $0xc] sm:$0xf]
        %v2391 = vld [vmem:[#allocation17 + $0x10] sm:$0xf]
        %v2392 = vld [vmem:[#allocation17 + $0x14] sm:$0xf]
        %v2393 = vld [vmem:[#allocation17 + $0x18] sm:$0xf]
        %v2394 = vld [vmem:[#allocation17 + $0x1c] sm:$0xf]
        %v2395 = vld [vmem:[#allocation17 + $0x20] sm:$0xf]
        %v2396 = vld [vmem:[#allocation17 + $0x24] sm:$0xf]
        %v2397 = vld [vmem:[#allocation17 + $0x28] sm:$0xf]
        %v2398 = vld [vmem:[#allocation17 + $0x2c] sm:$0xf]
        %v2399 = vld [vmem:[#allocation17 + $0x30] sm:$0xf]
        %v2400 = vld [vmem:[#allocation17 + $0x34] sm:$0xf]
        %v2401 = vld [vmem:[#allocation17 + $0x38] sm:$0xf]
        %v2402 = vld [vmem:[#allocation17 + $0x3c] sm:$0xf]
        %v2403 = vld [vmem:[#allocation17 + $0x40] sm:$0xf]
        %v2404 = vld [vmem:[#allocation17 + $0x44] sm:$0xf]
        %v2405 = vld [vmem:[#allocation17 + $0x48] sm:$0xf]
        %v2406 = vld [vmem:[#allocation17 + $0x4c] sm:$0xf]
        %v2407 = vld [vmem:[#allocation17 + $0x50] sm:$0xf]
        %v2408 = vld [vmem:[#allocation17 + $0x54] sm:$0xf]
        %v2409 = vld [vmem:[#allocation17 + $0x58] sm:$0xf]
        %v2410 = vld [vmem:[#allocation17 + $0x5c] sm:$0xf]
        %v2411 = vld [vmem:[#allocation17 + $0x60] sm:$0xf]
        %v2412 = vld [vmem:[#allocation17 + $0x64] sm:$0xf]
        %v2413 = vld [vmem:[#allocation17 + $0x68] sm:$0xf]
        %v2414 = vld [vmem:[#allocation17 + $0x6c] sm:$0xf]
        %v2415 = vld [vmem:[#allocation17 + $0x70] sm:$0xf]
        %v2416 = vld [vmem:[#allocation17 + $0x74] sm:$0xf]
        %v2417 = vld [vmem:[#allocation17 + $0x78] sm:$0xf]
        %v2418 = vld [vmem:[#allocation17 + $0x7c] sm:$0xf]
        %v2419 = vld [vmem:[#allocation19] sm:$0xf]
        %v2420 = vld [vmem:[#allocation19 + $0x4] sm:$0xf]
        %v2421 = vld [vmem:[#allocation19 + $0x8] sm:$0xf]
        %v2422 = vld [vmem:[#allocation19 + $0xc] sm:$0xf]
        %v2423 = vld [vmem:[#allocation19 + $0x10] sm:$0xf]
        %v2424 = vld [vmem:[#allocation19 + $0x14] sm:$0xf]
        %v2425 = vld [vmem:[#allocation19 + $0x18] sm:$0xf]
        %v2426 = vld [vmem:[#allocation19 + $0x1c] sm:$0xf]
        %v2427 = vld [vmem:[#allocation19 + $0x20] sm:$0xf]
        %v2428 = vld [vmem:[#allocation19 + $0x24] sm:$0xf]
        %v2429 = vld [vmem:[#allocation19 + $0x28] sm:$0xf]
        %v2430 = vld [vmem:[#allocation19 + $0x2c] sm:$0xf]
        %v2431 = vld [vmem:[#allocation19 + $0x30] sm:$0xf]
        %v2432 = vld [vmem:[#allocation19 + $0x34] sm:$0xf]
        %v2433 = vld [vmem:[#allocation19 + $0x38] sm:$0xf]
        %v2434 = vld [vmem:[#allocation19 + $0x3c] sm:$0xf]
        %v2435 = vld [vmem:[#allocation19 + $0x40] sm:$0xf]
        %v2436 = vld [vmem:[#allocation19 + $0x44] sm:$0xf]
        %v2437 = vld [vmem:[#allocation19 + $0x48] sm:$0xf]
        %v2438 = vld [vmem:[#allocation19 + $0x4c] sm:$0xf]
        %v2439 = vld [vmem:[#allocation19 + $0x50] sm:$0xf]
        %v2440 = vld [vmem:[#allocation19 + $0x54] sm:$0xf]
        %v2441 = vld [vmem:[#allocation19 + $0x58] sm:$0xf]
        %v2442 = vld [vmem:[#allocation19 + $0x5c] sm:$0xf]
        %v2443 = vld [vmem:[#allocation19 + $0x60] sm:$0xf]
        %v2444 = vld [vmem:[#allocation19 + $0x64] sm:$0xf]
        %v2445 = vld [vmem:[#allocation19 + $0x68] sm:$0xf]
        %v2446 = vld [vmem:[#allocation19 + $0x6c] sm:$0xf]
        %v2447 = vld [vmem:[#allocation19 + $0x70] sm:$0xf]
        %v2448 = vld [vmem:[#allocation19 + $0x74] sm:$0xf]
        %v2449 = vld [vmem:[#allocation19 + $0x78] sm:$0xf]
        %v2450 = vld [vmem:[#allocation19 + $0x7c] sm:$0xf]
        %v2459 = vunpack.c.l.b16 %v2379
        %v2460 = vunpack.c.l.b16 %v2380
        %v2461 = vunpack.c.l.b16 %v2381
        %v2462 = vunpack.c.l.b16 %v2382
        %v2463 = vunpack.c.l.b16 %v2383
        %v2464 = vunpack.c.l.b16 %v2384
        %v2465 = vunpack.c.l.b16 %v2385
        %v2466 = vunpack.c.l.b16 %v2386
        %v2467 = vsel %vm1274, %v2461, %v2459
        %v2468 = vsel %vm1276, %v2463, %v2467
        %v2469 = vsel %vm1278, %v2465, %v2468
        %v2470 = vsel %vm1274, %v2462, %v2460
        %v2471 = vsel %vm1276, %v2464, %v2470
        %v2472 = vsel %vm1278, %v2466, %v2471
        %v2473 = vpack.c.b16 %v2469, %v2469
        %v2474 = vpack.c.b16 %v2472, %v2472
        %v2509 = vunpack.c.l.b16 %v2419
        %v2510 = vunpack.c.l.b16 %v2420
        %v2511 = vunpack.c.l.b16 %v2421
        %v2512 = vunpack.c.l.b16 %v2422
        %v2513 = vunpack.c.l.b16 %v2423
        %v2514 = vunpack.c.l.b16 %v2424
        %v2515 = vunpack.c.l.b16 %v2425
        %v2516 = vunpack.c.l.b16 %v2426
        %v2517 = vunpack.c.l.b16 %v2427
        %v2518 = vunpack.c.l.b16 %v2428
        %v2519 = vunpack.c.l.b16 %v2429
        %v2520 = vunpack.c.l.b16 %v2430
        %v2521 = vunpack.c.l.b16 %v2431
        %v2522 = vunpack.c.l.b16 %v2432
        %v2523 = vunpack.c.l.b16 %v2433
        %v2524 = vunpack.c.l.b16 %v2434
        %v2525 = vunpack.c.l.b16 %v2435
        %v2526 = vunpack.c.l.b16 %v2436
        %v2527 = vunpack.c.l.b16 %v2437
        %v2528 = vunpack.c.l.b16 %v2438
        %v2529 = vunpack.c.l.b16 %v2439
        %v2530 = vunpack.c.l.b16 %v2440
        %v2531 = vunpack.c.l.b16 %v2441
        %v2532 = vunpack.c.l.b16 %v2442
        %v2533 = vunpack.c.l.b16 %v2443
        %v2534 = vunpack.c.l.b16 %v2444
        %v2535 = vunpack.c.l.b16 %v2445
        %v2536 = vunpack.c.l.b16 %v2446
        %v2537 = vunpack.c.l.b16 %v2447
        %v2538 = vunpack.c.l.b16 %v2448
        %v2539 = vunpack.c.l.b16 %v2449
        %v2540 = vunpack.c.l.b16 %v2450
        %v2541 = vpack.c.b16 %v2510, %v2509
        %v2542 = vpack.c.b16 %v2512, %v2511
        %v2543 = vpack.c.b16 %v2514, %v2513
        %v2544 = vpack.c.b16 %v2516, %v2515
        %v2545 = vpack.c.b16 %v2518, %v2517
        %v2546 = vpack.c.b16 %v2520, %v2519
        %v2547 = vpack.c.b16 %v2522, %v2521
        %v2548 = vpack.c.b16 %v2524, %v2523
        %v2549 = vpack.c.b16 %v2526, %v2525
        %v2550 = vpack.c.b16 %v2528, %v2527
        %v2551 = vpack.c.b16 %v2530, %v2529
        %v2552 = vpack.c.b16 %v2532, %v2531
        %v2553 = vpack.c.b16 %v2534, %v2533
        %v2554 = vpack.c.b16 %v2536, %v2535
        %v2555 = vpack.c.b16 %v2538, %v2537
        %v2556 = vpack.c.b16 %v2540, %v2539
        %2573 = vmatpush.bf16.msra.mxu0 %v2548
        %2574 = vmatpush.bf16.msra.mxu0 %v2547
        %2575 = vmatpush.bf16.msra.mxu0 %v2546
        %2576 = vmatpush.bf16.msra.mxu0 %v2545
        %2577 = vmatpush.bf16.msra.mxu0 %v2544
        %2578 = vmatpush.bf16.msra.mxu0 %v2543
        %2579 = vmatpush.bf16.msra.mxu0 %v2542
        %2580 = vmatpush.bf16.msra.mxu0 %v2541
        %2581 = vmatmul.bf16.gmra.mxu0 %v2473
        %v2582 = vpop.f32.mrf.mxu0
        %v2583 = vadd.f32 0.0, %v2582
        %v2584 = vpop.f32.mrf.mxu0
        %2585 = vdwg.mxu0
        %2586 = vmatpush.bf16.msra.mxu0 %v2556
        %2587 = vmatpush.bf16.msra.mxu0 %v2555
        %2588 = vmatpush.bf16.msra.mxu0 %v2554
        %2589 = vmatpush.bf16.msra.mxu0 %v2553
        %2590 = vmatpush.bf16.msra.mxu0 %v2552
        %2591 = vmatpush.bf16.msra.mxu0 %v2551
        %2592 = vmatpush.bf16.msra.mxu0 %v2550
        %2593 = vmatpush.bf16.msra.mxu0 %v2549
        %2594 = vmatmul.bf16.gmra.mxu0 %v2474
        %v2595 = vpop.f32.mrf.mxu0
        %v2596 = vadd.f32 %v2583, %v2595
        %v2597 = vpop.f32.mrf.mxu0
        %2598 = vdwg.mxu0
        %v2607 = vunpack.c.l.b16 %v2315
        %v2608 = vunpack.c.l.b16 %v2316
        %v2609 = vunpack.c.l.b16 %v2317
        %v2610 = vunpack.c.l.b16 %v2318
        %v2611 = vunpack.c.l.b16 %v2319
        %v2612 = vunpack.c.l.b16 %v2320
        %v2613 = vunpack.c.l.b16 %v2321
        %v2614 = vunpack.c.l.b16 %v2322
        %v2615 = vsel %vm1274, %v2609, %v2607
        %v2616 = vsel %vm1276, %v2611, %v2615
        %v2617 = vsel %vm1278, %v2613, %v2616
        %v2618 = vsel %vm1274, %v2610, %v2608
        %v2619 = vsel %vm1276, %v2612, %v2618
        %v2620 = vsel %vm1278, %v2614, %v2619
        %v2621 = vpack.c.b16 %v2617, %v2617
        %v2622 = vpack.c.b16 %v2620, %v2620
        %v2657 = vunpack.c.l.b16 %v2387
        %v2658 = vunpack.c.l.b16 %v2388
        %v2659 = vunpack.c.l.b16 %v2389
        %v2660 = vunpack.c.l.b16 %v2390
        %v2661 = vunpack.c.l.b16 %v2391
        %v2662 = vunpack.c.l.b16 %v2392
        %v2663 = vunpack.c.l.b16 %v2393
        %v2664 = vunpack.c.l.b16 %v2394
        %v2665 = vunpack.c.l.b16 %v2395
        %v2666 = vunpack.c.l.b16 %v2396
        %v2667 = vunpack.c.l.b16 %v2397
        %v2668 = vunpack.c.l.b16 %v2398
        %v2669 = vunpack.c.l.b16 %v2399
        %v2670 = vunpack.c.l.b16 %v2400
        %v2671 = vunpack.c.l.b16 %v2401
        %v2672 = vunpack.c.l.b16 %v2402
        %v2673 = vunpack.c.l.b16 %v2403
        %v2674 = vunpack.c.l.b16 %v2404
        %v2675 = vunpack.c.l.b16 %v2405
        %v2676 = vunpack.c.l.b16 %v2406
        %v2677 = vunpack.c.l.b16 %v2407
        %v2678 = vunpack.c.l.b16 %v2408
        %v2679 = vunpack.c.l.b16 %v2409
        %v2680 = vunpack.c.l.b16 %v2410
        %v2681 = vunpack.c.l.b16 %v2411
        %v2682 = vunpack.c.l.b16 %v2412
        %v2683 = vunpack.c.l.b16 %v2413
        %v2684 = vunpack.c.l.b16 %v2414
        %v2685 = vunpack.c.l.b16 %v2415
        %v2686 = vunpack.c.l.b16 %v2416
        %v2687 = vunpack.c.l.b16 %v2417
        %v2688 = vunpack.c.l.b16 %v2418
        %v2689 = vpack.c.b16 %v2658, %v2657
        %v2690 = vpack.c.b16 %v2660, %v2659
        %v2691 = vpack.c.b16 %v2662, %v2661
        %v2692 = vpack.c.b16 %v2664, %v2663
        %v2693 = vpack.c.b16 %v2666, %v2665
        %v2694 = vpack.c.b16 %v2668, %v2667
        %v2695 = vpack.c.b16 %v2670, %v2669
        %v2696 = vpack.c.b16 %v2672, %v2671
        %v2697 = vpack.c.b16 %v2674, %v2673
        %v2698 = vpack.c.b16 %v2676, %v2675
        %v2699 = vpack.c.b16 %v2678, %v2677
        %v2700 = vpack.c.b16 %v2680, %v2679
        %v2701 = vpack.c.b16 %v2682, %v2681
        %v2702 = vpack.c.b16 %v2684, %v2683
        %v2703 = vpack.c.b16 %v2686, %v2685
        %v2704 = vpack.c.b16 %v2688, %v2687
        %2721 = vmatpush.bf16.msra.mxu0 %v2696
        %2722 = vmatpush.bf16.msra.mxu0 %v2695
        %2723 = vmatpush.bf16.msra.mxu0 %v2694
        %2724 = vmatpush.bf16.msra.mxu0 %v2693
        %2725 = vmatpush.bf16.msra.mxu0 %v2692
        %2726 = vmatpush.bf16.msra.mxu0 %v2691
        %2727 = vmatpush.bf16.msra.mxu0 %v2690
        %2728 = vmatpush.bf16.msra.mxu0 %v2689
        %2729 = vmatmul.bf16.gmra.mxu0 %v2621
        %v2730 = vpop.f32.mrf.mxu0
        %v2731 = vadd.f32 %v2596, %v2730
        %v2732 = vpop.f32.mrf.mxu0
        %2733 = vdwg.mxu0
        %2734 = vmatpush.bf16.msra.mxu0 %v2704
        %2735 = vmatpush.bf16.msra.mxu0 %v2703
        %2736 = vmatpush.bf16.msra.mxu0 %v2702
        %2737 = vmatpush.bf16.msra.mxu0 %v2701
        %2738 = vmatpush.bf16.msra.mxu0 %v2700
        %2739 = vmatpush.bf16.msra.mxu0 %v2699
        %2740 = vmatpush.bf16.msra.mxu0 %v2698
        %2741 = vmatpush.bf16.msra.mxu0 %v2697
        %2742 = vmatmul.bf16.gmra.mxu0 %v2622
        %v2743 = vpop.f32.mrf.mxu0
        %v2744 = vadd.f32 %v2731, %v2743
        %v2745 = vpop.f32.mrf.mxu0
        %2746 = vdwg.mxu0
        %v2747 = vld [vmem:[%s15] sm:$0x1]
        %v2749 = vperm.slane %v2747, 0
        %v2751 = vadd.f32 %v2744, %v2749
        %v2752 = vmax.f32 %v2751, 0.0
        %v2753 = vpack.c.bf16 %v2752, %v2752
        %v2754 = vld [vmem:[#allocation20] sm:$0xf]
        %v2755 = vld [vmem:[#allocation20 + $0x4] sm:$0xf]
        %v2756 = vld [vmem:[#allocation20 + $0x8] sm:$0xf]
        %v2757 = vld [vmem:[#allocation20 + $0xc] sm:$0xf]
        %v2758 = vld [vmem:[#allocation20 + $0x10] sm:$0xf]
        %v2759 = vld [vmem:[#allocation20 + $0x14] sm:$0xf]
        %v2760 = vld [vmem:[#allocation20 + $0x18] sm:$0xf]
        %v2761 = vld [vmem:[#allocation20 + $0x1c] sm:$0xf]
        %v2762 = vld [vmem:[#allocation20 + $0x20] sm:$0xf]
        %v2763 = vld [vmem:[#allocation20 + $0x24] sm:$0xf]
        %v2764 = vld [vmem:[#allocation20 + $0x28] sm:$0xf]
        %v2765 = vld [vmem:[#allocation20 + $0x2c] sm:$0xf]
        %v2766 = vld [vmem:[#allocation20 + $0x30] sm:$0xf]
        %v2767 = vld [vmem:[#allocation20 + $0x34] sm:$0xf]
        %v2768 = vld [vmem:[#allocation20 + $0x38] sm:$0xf]
        %v2769 = vld [vmem:[#allocation20 + $0x3c] sm:$0xf]
        %v2770 = vld [vmem:[%s17] sm:$0x1]
        %v2772 = vperm.slane %v2770, 0
        %v2790 = vunpack.c.l.b16 %v2754
        %v2791 = vunpack.c.l.b16 %v2755
        %v2792 = vunpack.c.l.b16 %v2756
        %v2793 = vunpack.c.l.b16 %v2757
        %v2794 = vunpack.c.l.b16 %v2758
        %v2795 = vunpack.c.l.b16 %v2759
        %v2796 = vunpack.c.l.b16 %v2760
        %v2797 = vunpack.c.l.b16 %v2761
        %v2798 = vunpack.c.l.b16 %v2762
        %v2799 = vunpack.c.l.b16 %v2763
        %v2800 = vunpack.c.l.b16 %v2764
        %v2801 = vunpack.c.l.b16 %v2765
        %v2802 = vunpack.c.l.b16 %v2766
        %v2803 = vunpack.c.l.b16 %v2767
        %v2804 = vunpack.c.l.b16 %v2768
        %v2805 = vunpack.c.l.b16 %v2769
        %v2806 = vpack.c.b16 %v2791, %v2790
        %v2807 = vpack.c.b16 %v2793, %v2792
        %v2808 = vpack.c.b16 %v2795, %v2794
        %v2809 = vpack.c.b16 %v2797, %v2796
        %v2810 = vpack.c.b16 %v2799, %v2798
        %v2811 = vpack.c.b16 %v2801, %v2800
        %v2812 = vpack.c.b16 %v2803, %v2802
        %v2813 = vpack.c.b16 %v2805, %v2804
        %2822 = vmatpush.bf16.msra.mxu0 %v2813
        %2823 = vmatpush.bf16.msra.mxu0 %v2812
        %2824 = vmatpush.bf16.msra.mxu0 %v2811
        %2825 = vmatpush.bf16.msra.mxu0 %v2810
        %2826 = vmatpush.bf16.msra.mxu0 %v2809
        %2827 = vmatpush.bf16.msra.mxu0 %v2808
        %2828 = vmatpush.bf16.msra.mxu0 %v2807
        %2829 = vmatpush.bf16.msra.mxu0 %v2806
        %2830 = vmatmul.bf16.gmra.mxu0 %v2753
        %v2831 = vpop.f32.mrf.mxu0
        %v2832 = vadd.f32 %v2772, %v2831
        %v2833 = vpop.f32.mrf.mxu0
        %2834 = vdwg.mxu0
        %v2835 = vmax.f32 %v2832, 0.0
        %v2836 = vpack.c.bf16 %v2835, %v2835
        %v2837 = vld [vmem:[#allocation22] sm:$0xf]
        %v2838 = vld [vmem:[#allocation22 + $0x4] sm:$0xf]
        %v2839 = vld [vmem:[#allocation22 + $0x8] sm:$0xf]
        %v2840 = vld [vmem:[#allocation22 + $0xc] sm:$0xf]
        %v2841 = vld [vmem:[#allocation22 + $0x10] sm:$0xf]
        %v2842 = vld [vmem:[#allocation22 + $0x14] sm:$0xf]
        %v2843 = vld [vmem:[#allocation22 + $0x18] sm:$0xf]
        %v2844 = vld [vmem:[#allocation22 + $0x1c] sm:$0xf]
        %v2845 = vld [vmem:[#allocation22 + $0x20] sm:$0xf]
        %v2846 = vld [vmem:[#allocation22 + $0x24] sm:$0xf]
        %v2847 = vld [vmem:[#allocation22 + $0x28] sm:$0xf]
        %v2848 = vld [vmem:[#allocation22 + $0x2c] sm:$0xf]
        %v2849 = vld [vmem:[#allocation22 + $0x30] sm:$0xf]
        %v2850 = vld [vmem:[#allocation22 + $0x34] sm:$0xf]
        %v2851 = vld [vmem:[#allocation22 + $0x38] sm:$0xf]
        %v2852 = vld [vmem:[#allocation22 + $0x3c] sm:$0xf]
        %v2853 = vld [vmem:[%s19] sm:$0x1]
        %v2855 = vperm.slane %v2853, 0
        %v2873 = vunpack.c.l.b16 %v2837
        %v2874 = vunpack.c.l.b16 %v2838
        %v2875 = vunpack.c.l.b16 %v2839
        %v2876 = vunpack.c.l.b16 %v2840
        %v2877 = vunpack.c.l.b16 %v2841
        %v2878 = vunpack.c.l.b16 %v2842
        %v2879 = vunpack.c.l.b16 %v2843
        %v2880 = vunpack.c.l.b16 %v2844
        %v2881 = vunpack.c.l.b16 %v2845
        %v2882 = vunpack.c.l.b16 %v2846
        %v2883 = vunpack.c.l.b16 %v2847
        %v2884 = vunpack.c.l.b16 %v2848
        %v2885 = vunpack.c.l.b16 %v2849
        %v2886 = vunpack.c.l.b16 %v2850
        %v2887 = vunpack.c.l.b16 %v2851
        %v2888 = vunpack.c.l.b16 %v2852
        %v2889 = vpack.c.b16 %v2874, %v2873
        %v2890 = vpack.c.b16 %v2876, %v2875
        %v2891 = vpack.c.b16 %v2878, %v2877
        %v2892 = vpack.c.b16 %v2880, %v2879
        %v2893 = vpack.c.b16 %v2882, %v2881
        %v2894 = vpack.c.b16 %v2884, %v2883
        %v2895 = vpack.c.b16 %v2886, %v2885
        %v2896 = vpack.c.b16 %v2888, %v2887
        %2905 = vmatpush.bf16.msra.mxu0 %v2896
        %2906 = vmatpush.bf16.msra.mxu0 %v2895
        %2907 = vmatpush.bf16.msra.mxu0 %v2894
        %2908 = vmatpush.bf16.msra.mxu0 %v2893
        %2909 = vmatpush.bf16.msra.mxu0 %v2892
        %2910 = vmatpush.bf16.msra.mxu0 %v2891
        %2911 = vmatpush.bf16.msra.mxu0 %v2890
        %2912 = vmatpush.bf16.msra.mxu0 %v2889
        %2913 = vmatmul.bf16.gmra.mxu0 %v2836
        %v2914 = vpop.f32.mrf.mxu0
        %v2915 = vadd.f32 %v2855, %v2914
        %v2916 = vpop.f32.mrf.mxu0
        %2917 = vdwg.mxu0
        %vm2918 = vcmask 1043456
        %v2919 = vsel %vm2918, %v2915, -inf
        %2920 = vmax.xlane.f32.xlu0 %v2919
        %v2921 = vpop.xlane.xlu0 %2920
        %v2922 = vsub.f32 %v2915, %v2921
        %v2923 = vmul.f32 %v2922, 1.442695
        %v2924 = vpow.pop %v2923
        %v2925 = vsel %vm2918, %v2924, 0.0
        %2926 = vadd.xlane.f32.xlu0 %v2925
        %v2927 = vpop.xlane.xlu0 %2926
        %v2928 = vlog2.pop %v2927
        %v2929 = vmul.f32 %v2928, 0.6931472
        %v2930 = vadd.f32 %v2929, %v2921
        %v2931 = vsub.f32 %v2915, %v2930
        %2932 = vst [vmem:[%s872] sm:$0xf] %v2931
        %s2933 = sand.u32 %s483, 1
        %s2934 = scalar_lea.sflag [#allocation4], %s2933
        %s2935 = sand.u32 %s483, 1
        %s2936 = smul.addr %s2935, 4
        %s2937 = scalar_lea.vmem [#allocation23], %s2936
        // Predicated region
        $region153: #{tpu_custom_call.1} parent=99 // pred_check
          %p2938 = pneg %p493
        $region154: #{tpu_custom_call.1} parent=99 // pred_check_branch
          %2940 = sbr.rel (%p2938) target = $region156
        $region155: #{tpu_custom_call.1} parent=99 // pred_region
          %2942 = vsyncadd %s2934, 0
          %s2943 = smul.addr %s45, 4
          %s2944 = scalar_lea.hbm %s20, %s2943
          %s2946 = sshll.u32 %s2937, 4
          %s2947 = int_to_ptr.vmem [resolvable:$true] %s2946
          %s2948 = sshll.u32 %s2944, 4
          %s2949 = int_to_ptr.hbm [resolvable:$true] %s2948
          %2951 = dma.vmem_to_hbm [thread:$0]  %s2947, 64, %s2949, %s2934
        $region156: #{tpu_custom_call.1} parent=99 // pred_fallthru
          _
      $region100: #{tpu_custom_call.1} parent=5 // pred_fallthru
        _
      %p2952 = scmp.le.s32.totalorder 2, %s40
      // Predicated region
      $region157: #{tpu_custom_call.1} parent=5 // pred_check
        %p2953 = pneg %p2952
      $region158: #{tpu_custom_call.1} parent=5 // pred_check_branch
        %2955 = sbr.rel (%p2953) target = $region160
      $region159: #{tpu_custom_call.1} parent=5 // pred_region
        %s2956 = ssub.s32 %s40, 2
        // Predicated region
        $region161: #{tpu_custom_call.1} parent=159 // pred_check
          %p2957 = pneg %p499
        $region162: #{tpu_custom_call.1} parent=159 // pred_check_branch
          %2959 = sbr.rel (%p2957) target = $region164
        $region163: #{tpu_custom_call.1} parent=159 // pred_region
          %s2960 = sand.u32 %s484, 1
          %s2961 = scalar_lea.sflag [#allocation4], %s2960
          %s2962 = sand.u32 %s484, 1
          %s2963 = smul.addr %s2962, 4
          %s2964 = scalar_lea.vmem [#allocation23], %s2963
          %2966 = dma.done %s2961, 64
        $region164: #{tpu_custom_call.1} parent=159 // pred_fallthru
          _
      $region160: #{tpu_custom_call.1} parent=5 // pred_fallthru
        _
    $region6: #{tpu_custom_call.1} parent=1 // loop_footer
      %s44 = sadd.s32 1, %s40
    $region7: #{tpu_custom_call.1} parent=1 // loop_footer_branch
      %39 = sbr.rel target = $region3
    $region8: #{tpu_custom_call.1} parent=1 // loop_exit
      _
    %2967 = vsyncpa [#allocation3], 1
    %s2968 = scalar_lea.sflag [#allocation3], 1
    %2969 = vsyncpa %s2968, 1
    %2970 = vsyncpa [#allocation6], 1
    %s2971 = scalar_lea.sflag [#allocation6], 1
    %2972 = vsyncpa %s2971, 1
    %2973 = vsyncpa [#allocation9], 1
    %2974 = vsyncpa [#allocation12], 1
    %2975 = vsyncpa [#allocation15], 1
    %2976 = vsyncpa [#allocation18], 1
    %2977 = vsyncpa [#allocation21], 1
    %2978 = vsyncpa [#allocation4], 1
    %s2979 = scalar_lea.sflag [#allocation4], 1
    %2980 = vsyncpa %s2979, 1

// kernel: tpu_custom_call.1
$region0: #{tpu_custom_call.1}
  #allocation0 [shape = 'u32[]', space=smem, size = 0x4, offset = 0x4, fixed_abs, tag = 'smem constant byte address 0x4 - core index']
  #allocation1 [shape = 'u32[72,128]{1,0:T(1,128)}', space=vmem, size = 0x9000, scoped, tag = 'internal scratch']
  %s0 = inlined_call_operand.hbm [shape: bf16[2,64,128], index: 0, kind: input, shape index: {}]
  %s1 = inlined_call_operand.hbm [shape: bf16[2,64,64], index: 1, kind: input, shape index: {}]
  %s2 = inlined_call_operand.hbm [shape: bf16[128,128], index: 2, kind: input, shape index: {}]
  %s3 = inlined_call_operand.vmem [shape: f32[1,128], index: 3, kind: input, shape index: {}]
  %s4 = inlined_call_operand.hbm [shape: bf16[128,128], index: 4, kind: input, shape index: {}]
  %s5 = inlined_call_operand.hbm [shape: bf16[128,128], index: 5, kind: input, shape index: {}]
  %s6 = inlined_call_operand.vmem [shape: f32[1,128], index: 6, kind: input, shape index: {}]
  %s7 = inlined_call_operand.hbm [shape: bf16[128,128], index: 7, kind: input, shape index: {}]
  %s8 = inlined_call_operand.hbm [shape: bf16[128,128], index: 8, kind: input, shape index: {}]
  %s9 = inlined_call_operand.vmem [shape: f32[1,128], index: 9, kind: input, shape index: {}]
  %s10 = inlined_call_operand.hbm [shape: bf16[128,256], index: 10, kind: input, shape index: {}]
  %s11 = inlined_call_operand.hbm [shape: bf16[128,256], index: 11, kind: input, shape index: {}]
  %s12 = inlined_call_operand.vmem [shape: f32[1,256], index: 12, kind: input, shape index: {}]
  %s13 = inlined_call_operand.hbm [shape: bf16[256,128], index: 13, kind: input, shape index: {}]
  %s14 = inlined_call_operand.hbm [shape: bf16[256,128], index: 14, kind: input, shape index: {}]
  %s15 = inlined_call_operand.vmem [shape: f32[1,128], index: 15, kind: input, shape index: {}]
  %s16 = inlined_call_operand.hbm [shape: bf16[128,128], index: 16, kind: input, shape index: {}]
  %s17 = inlined_call_operand.vmem [shape: f32[1,128], index: 17, kind: input, shape index: {}]
  %s18 = inlined_call_operand.hbm [shape: bf16[128,128], index: 18, kind: input, shape index: {}]
  %s19 = inlined_call_operand.vmem [shape: f32[1,128], index: 19, kind: input, shape index: {}]
  %s20 = inlined_call_operand.hbm [shape: f32[2,4,128], index: 20, kind: output, shape index: {}]
  %s21 = sld [smem:[#allocation0]]
  $region165: #{tpu_custom_call.1} parent=0
    _
  %s23 = ssub.s32 1, %s21
  %s24 = scalar_select 0, %s23, %s21
  $region1: #{tpu_custom_call.1} parent=0
    #allocation2 [shape = 'u8[32768]{0}', space=vmem, size = 0x8000, scoped, tag = 'input window, operand 0']
    #allocation3 [shape = 's32[2]{0}', space=sflag, size = 0x8, scoped, tag = 'scoped memory for tpu_custom_call.1']
    #allocation4 [shape = 's32[2]{0}', space=sflag, size = 0x8, scoped, tag = 'scoped memory for tpu_custom_call.1']
    #allocation5 [shape = 'u8[32768]{0}', space=vmem, size = 0x8000, scoped, tag = 'input window, operand 1']
    #allocation6 [shape = 's32[2]{0}', space=sflag, size = 0x8, scoped, tag = 'scoped memory for tpu_custom_call.1']
    #allocation7 [shape = 'u8[32768]{0}', space=vmem, size = 0x8000, scoped, tag = 'input window, operand 2, single buffered']
    #allocation8 [shape = 'u8[32768]{0}', space=vmem, size = 0x8000, scoped, tag = 'input window, operand 4, single buffered']
    #allocation9 [shape = 's32[1]{0}', space=sflag, size = 0x4, scoped, tag = 'scoped memory for tpu_custom_call.1']
    #allocation10 [shape = 'u8[32768]{0}', space=vmem, size = 0x8000, scoped, tag = 'input window, operand 5, single buffered']
    #allocation11 [shape = 'u8[32768]{0}', space=vmem, size = 0x8000, scoped, tag = 'input window, operand 7, single buffered']
    #allocation12 [shape = 's32[1]{0}', space=sflag, size = 0x4, scoped, tag = 'scoped memory for tpu_custom_call.1']
    #allocation13 [shape = 'u8[32768]{0}', space=vmem, size = 0x8000, scoped, tag = 'input window, operand 8, single buffered']
    #allocation14 [shape = 'u8[65536]{0}', space=vmem, size = 0x10000, scoped, tag = 'input window, operand 10, single buffered']
    #allocation15 [shape = 's32[1]{0}', space=sflag, size = 0x4, scoped, tag = 'scoped memory for tpu_custom_call.1']
    #allocation16 [shape = 'u8[65536]{0}', space=vmem, size = 0x10000, scoped, tag = 'input window, operand 11, single buffered']
    #allocation17 [shape = 'u8[65536]{0}', space=vmem, size = 0x10000, scoped, tag = 'input window, operand 13, single buffered']
    #allocation18 [shape = 's32[1]{0}', space=sflag, size = 0x4, scoped, tag = 'scoped memory for tpu_custom_call.1']
    #allocation19 [shape = 'u8[65536]{0}', space=vmem, size = 0x10000, scoped, tag = 'input window, operand 14, single buffered']
    #allocation20 [shape = 'u8[32768]{0}', space=vmem, size = 0x8000, scoped, tag = 'input window, operand 16, single buffered']
    #allocation21 [shape = 's32[1]{0}', space=sflag, size = 0x4, scoped, tag = 'scoped memory for tpu_custom_call.1']
    #allocation22 [shape = 'u8[32768]{0}', space=vmem, size = 0x8000, scoped, tag = 'input window, operand 18, single buffered']
    #allocation23 [shape = 'u8[4096]{0}', space=vmem, size = 0x1000, scoped, tag = 'output window, operand 0']
    %25 = vsyncpa [#allocation3], 0
    %s26 = scalar_lea.sflag [#allocation3], 1
    %27 = vsyncpa %s26, 0
    %28 = vsyncpa [#allocation6], 0
    %s29 = scalar_lea.sflag [#allocation6], 1
    %30 = vsyncpa %s29, 0
    %31 = vsyncpa [#allocation9], 0
    %32 = vsyncpa [#allocation12], 0
    %33 = vsyncpa [#allocation15], 0
    %34 = vsyncpa [#allocation18], 0
    %35 = vsyncpa [#allocation21], 0
    %36 = vsyncpa [#allocation4], 0
    %s37 = scalar_lea.sflag [#allocation4], 1
    %38 = vsyncpa %s37, 0
    loop: start=0, step=1, limit=4
    $region2: #{tpu_custom_call.1} parent=1 // loop_pre_header
      _
    $region3: #{tpu_custom_call.1} parent=1 // loop_header
      %s40 = sphi 0, %s44
      %p41 = scmp.ge.s32.totalorder %s40, 4
      %s50 = sphi 0, %s52
      %s53 = sphi 0, %s50
      %s54 = sphi 0, %s53
      %s70 = sphi 0, %s54
      %s76 = sphi 0, %s78
      %s79 = sphi 0, %s76
      %s80 = sphi 0, %s79
      %s96 = sphi 0, %s80
      %s100 = sphi 0, %s100
      %s102 = sphi 0, %s100
      %s103 = sphi 0, %s102
      %s117 = sphi 0, %s103
      %s121 = sphi 0, %s121
      %s123 = sphi 0, %s121
      %s124 = sphi 0, %s123
      %s138 = sphi 0, %s124
      %s142 = sphi 0, %s142
      %s144 = sphi 0, %s142
      %s145 = sphi 0, %s144
      %s159 = sphi 0, %s145
      %s163 = sphi 0, %s163
      %s165 = sphi 0, %s163
      %s166 = sphi 0, %s165
      %s180 = sphi 0, %s166
      %s184 = sphi 0, %s184
      %s186 = sphi 0, %s184
      %s187 = sphi 0, %s186
      %s201 = sphi 0, %s187
      %s205 = sphi 0, %s205
      %s207 = sphi 0, %s205
      %s208 = sphi 0, %s207
      %s222 = sphi 0, %s208
      %s226 = sphi 0, %s226
      %s228 = sphi 0, %s226
      %s229 = sphi 0, %s228
      %s243 = sphi 0, %s229
      %s247 = sphi 0, %s247
      %s249 = sphi 0, %s247
      %s250 = sphi 0, %s249
      %s264 = sphi 0, %s250
      %s268 = sphi 0, %s268
      %s270 = sphi 0, %s268
      %s271 = sphi 0, %s270
      %s285 = sphi 0, %s271
      %s289 = sphi 0, %s289
      %s291 = sphi 0, %s289
      %s292 = sphi 0, %s291
      %s306 = sphi 0, %s292
      %s310 = sphi 0, %s310
      %s312 = sphi 0, %s310
      %s313 = sphi 0, %s312
      %s327 = sphi 0, %s313
      %s331 = sphi 0, %s331
      %s333 = sphi 0, %s331
      %s334 = sphi 0, %s333
      %s348 = sphi 0, %s334
      %s352 = sphi 0, %s352
      %s354 = sphi 0, %s352
      %s355 = sphi 0, %s354
      %s369 = sphi 0, %s355
      %s373 = sphi 0, %s373
      %s375 = sphi 0, %s373
      %s376 = sphi 0, %s375
      %s390 = sphi 0, %s376
      %s394 = sphi 0, %s394
      %s396 = sphi 0, %s394
      %s397 = sphi 0, %s396
      %s411 = sphi 0, %s397
      %s415 = sphi 0, %s415
      %s417 = sphi 0, %s415
      %s418 = sphi 0, %s417
      %s432 = sphi 0, %s418
      %s436 = sphi 0, %s436
      %s438 = sphi 0, %s436
      %s439 = sphi 0, %s438
      %s453 = sphi 0, %s439
      %s457 = sphi 0, %s457
      %s459 = sphi 0, %s457
      %s460 = sphi 0, %s459
      %s474 = sphi 0, %s460
      %s480 = sphi 0, %s482
      %s483 = sphi 0, %s480
      %s484 = sphi 0, %s483
      %s500 = sphi 0, %s484
    $region4: #{tpu_custom_call.1} parent=1 // loop_header_branch
      %43 = sbr.rel (%p41) target = $region8
    $region5: #{tpu_custom_call.1} parent=1 // loop_body
      %s45 = ssub.s32 %s40, 1
      %s46 = ssub.s32 %s40, 2
      %s47 = sadd.s32 %s40, 1
      %s48 = ssub.s32 %s40, %s47
      %p49 = scmp.eq.s32.totalorder %s48, 0
      %s51 = sadd.s32 %s50, 1
      %s52 = scalar_select %p49, %s50, %s51
      %p55 = pneg %p49
      %p56 = scmp.eq.s32.totalorder %s40, 1
      %p57 = por %p55, %p56
      %p58 = scmp.ne.s32.totalorder %s50, %s53
      %p59 = scmp.eq.s32.totalorder %s40, 0
      %p60 = por %p58, %p59
      %p61 = scmp.ne.s32.totalorder %s50, %s53
      %p62 = scmp.eq.s32.totalorder %s45, 1
      %p63 = por %p61, %p62
      %p64 = scmp.ne.s32.totalorder %s53, %s54
      %p65 = scmp.eq.s32.totalorder %s45, 0
      %p66 = por %p64, %p65
      %p67 = scmp.ne.s32.totalorder %s53, %s54
      %p68 = scmp.eq.s32.totalorder %s46, 1
      %p69 = por %p67, %p68
      %p71 = scmp.ne.s32.totalorder %s54, %s70
      %p72 = scmp.eq.s32.totalorder %s46, 0
      %p73 = por %p71, %p72
      %s74 = ssub.s32 %s40, %s47
      %p75 = scmp.eq.s32.totalorder %s74, 0
      %s77 = sadd.s32 %s76, 1
      %s78 = scalar_select %p75, %s76, %s77
      %p81 = pneg %p75
      %p82 = scmp.eq.s32.totalorder %s40, 1
      %p83 = por %p81, %p82
      %p84 = scmp.ne.s32.totalorder %s76, %s79
      %p85 = scmp.eq.s32.totalorder %s40, 0
      %p86 = por %p84, %p85
      %p87 = scmp.ne.s32.totalorder %s76, %s79
      %p88 = scmp.eq.s32.totalorder %s45, 1
      %p89 = por %p87, %p88
      %p90 = scmp.ne.s32.totalorder %s79, %s80
      %p91 = scmp.eq.s32.totalorder %s45, 0
      %p92 = por %p90, %p91
      %p93 = scmp.ne.s32.totalorder %s79, %s80
      %p94 = scmp.eq.s32.totalorder %s46, 1
      %p95 = por %p93, %p94
      %p97 = scmp.ne.s32.totalorder %s80, %s96
      %p98 = scmp.eq.s32.totalorder %s46, 0
      %p99 = por %p97, %p98
      %s101 = sadd.s32 %s100, 1
      %p104 = scmp.eq.s32.totalorder %s40, 1
      %p105 = scmp.ne.s32.totalorder %s100, %s102
      %p106 = scmp.eq.s32.totalorder %s40, 0
      %p107 = por %p105, %p106
      %p108 = scmp.ne.s32.totalorder %s100, %s102
      %p109 = scmp.eq.s32.totalorder %s45, 1
      %p110 = por %p108, %p109
      %p111 = scmp.ne.s32.totalorder %s102, %s103
      %p112 = scmp.eq.s32.totalorder %s45, 0
      %p113 = por %p111, %p112
      %p114 = scmp.ne.s32.totalorder %s102, %s103
      %p115 = scmp.eq.s32.totalorder %s46, 1
      %p116 = por %p114, %p115
      %p118 = scmp.ne.s32.totalorder %s103, %s117
      %p119 = scmp.eq.s32.totalorder %s46, 0
      %p120 = por %p118, %p119
      %s122 = sadd.s32 %s121, 1
      %p125 = scmp.eq.s32.totalorder %s40, 1
      %p126 = scmp.ne.s32.totalorder %s121, %s123
      %p127 = scmp.eq.s32.totalorder %s40, 0
      %p128 = por %p126, %p127
      %p129 = scmp.ne.s32.totalorder %s121, %s123
      %p130 = scmp.eq.s32.totalorder %s45, 1
      %p131 = por %p129, %p130
      %p132 = scmp.ne.s32.totalorder %s123, %s124
      %p133 = scmp.eq.s32.totalorder %s45, 0
      %p134 = por %p132, %p133
      %p135 = scmp.ne.s32.totalorder %s123, %s124
      %p136 = scmp.eq.s32.totalorder %s46, 1
      %p137 = por %p135, %p136
      %p139 = scmp.ne.s32.totalorder %s124, %s138
      %p140 = scmp.eq.s32.totalorder %s46, 0
      %p141 = por %p139, %p140
      %s143 = sadd.s32 %s142, 1
      %p146 = scmp.eq.s32.totalorder %s40, 1
      %p147 = scmp.ne.s32.totalorder %s142, %s144
      %p148 = scmp.eq.s32.totalorder %s40, 0
      %p149 = por %p147, %p148
      %p150 = scmp.ne.s32.totalorder %s142, %s144
      %p151 = scmp.eq.s32.totalorder %s45, 1
      %p152 = por %p150, %p151
      %p153 = scmp.ne.s32.totalorder %s144, %s145
      %p154 = scmp.eq.s32.totalorder %s45, 0
      %p155 = por %p153, %p154
      %p156 = scmp.ne.s32.totalorder %s144, %s145
      %p157 = scmp.eq.s32.totalorder %s46, 1
      %p158 = por %p156, %p157
      %p160 = scmp.ne.s32.totalorder %s145, %s159
      %p161 = scmp.eq.s32.totalorder %s46, 0
      %p162 = por %p160, %p161
      %s164 = sadd.s32 %s163, 1
      %p167 = scmp.eq.s32.totalorder %s40, 1
      %p168 = scmp.ne.s32.totalorder %s163, %s165
      %p169 = scmp.eq.s32.totalorder %s40, 0
      %p170 = por %p168, %p169
      %p171 = scmp.ne.s32.totalorder %s163, %s165
      %p172 = scmp.eq.s32.totalorder %s45, 1
      %p173 = por %p171, %p172
      %p174 = scmp.ne.s32.totalorder %s165, %s166
      %p175 = scmp.eq.s32.totalorder %s45, 0
      %p176 = por %p174, %p175
      %p177 = scmp.ne.s32.totalorder %s165, %s166
      %p178 = scmp.eq.s32.totalorder %s46, 1
      %p179 = por %p177, %p178
      %p181 = scmp.ne.s32.totalorder %s166, %s180
      %p182 = scmp.eq.s32.totalorder %s46, 0
      %p183 = por %p181, %p182
      %s185 = sadd.s32 %s184, 1
      %p188 = scmp.eq.s32.totalorder %s40, 1
      %p189 = scmp.ne.s32.totalorder %s184, %s186
      %p190 = scmp.eq.s32.totalorder %s40, 0
      %p191 = por %p189, %p190
      %p192 = scmp.ne.s32.totalorder %s184, %s186
      %p193 = scmp.eq.s32.totalorder %s45, 1
      %p194 = por %p192, %p193
      %p195 = scmp.ne.s32.totalorder %s186, %s187
      %p196 = scmp.eq.s32.totalorder %s45, 0
      %p197 = por %p195, %p196
      %p198 = scmp.ne.s32.totalorder %s186, %s187
      %p199 = scmp.eq.s32.totalorder %s46, 1
      %p200 = por %p198, %p199
      %p202 = scmp.ne.s32.totalorder %s187, %s201
      %p203 = scmp.eq.s32.totalorder %s46, 0
      %p204 = por %p202, %p203
      %s206 = sadd.s32 %s205, 1
      %p209 = scmp.eq.s32.totalorder %s40, 1
      %p210 = scmp.ne.s32.totalorder %s205, %s207
      %p211 = scmp.eq.s32.totalorder %s40, 0
      %p212 = por %p210, %p211
      %p213 = scmp.ne.s32.totalorder %s205, %s207
      %p214 = scmp.eq.s32.totalorder %s45, 1
      %p215 = por %p213, %p214
      %p216 = scmp.ne.s32.totalorder %s207, %s208
      %p217 = scmp.eq.s32.totalorder %s45, 0
      %p218 = por %p216, %p217
      %p219 = scmp.ne.s32.totalorder %s207, %s208
      %p220 = scmp.eq.s32.totalorder %s46, 1
      %p221 = por %p219, %p220
      %p223 = scmp.ne.s32.totalorder %s208, %s222
      %p224 = scmp.eq.s32.totalorder %s46, 0
      %p225 = por %p223, %p224
      %s227 = sadd.s32 %s226, 1
      %p230 = scmp.eq.s32.totalorder %s40, 1
      %p231 = scmp.ne.s32.totalorder %s226, %s228
      %p232 = scmp.eq.s32.totalorder %s40, 0
      %p233 = por %p231, %p232
      %p234 = scmp.ne.s32.totalorder %s226, %s228
      %p235 = scmp.eq.s32.totalorder %s45, 1
      %p236 = por %p234, %p235
      %p237 = scmp.ne.s32.totalorder %s228, %s229
      %p238 = scmp.eq.s32.totalorder %s45, 0
      %p239 = por %p237, %p238
      %p240 = scmp.ne.s32.totalorder %s228, %s229
      %p241 = scmp.eq.s32.totalorder %s46, 1
      %p242 = por %p240, %p241
      %p244 = scmp.ne.s32.totalorder %s229, %s243
      %p245 = scmp.eq.s32.totalorder %s46, 0
      %p246 = por %p244, %p245
      %s248 = sadd.s32 %s247, 1
      %p251 = scmp.eq.s32.totalorder %s40, 1
      %p252 = scmp.ne.s32.totalorder %s247, %s249
      %p253 = scmp.eq.s32.totalorder %s40, 0
      %p254 = por %p252, %p253
      %p255 = scmp.ne.s32.totalorder %s247, %s249
      %p256 = scmp.eq.s32.totalorder %s45, 1
      %p257 = por %p255, %p256
      %p258 = scmp.ne.s32.totalorder %s249, %s250
      %p259 = scmp.eq.s32.totalorder %s45, 0
      %p260 = por %p258, %p259
      %p261 = scmp.ne.s32.totalorder %s249, %s250
      %p262 = scmp.eq.s32.totalorder %s46, 1
      %p263 = por %p261, %p262
      %p265 = scmp.ne.s32.totalorder %s250, %s264
      %p266 = scmp.eq.s32.totalorder %s46, 0
      %p267 = por %p265, %p266
      %s269 = sadd.s32 %s268, 1
      %p272 = scmp.eq.s32.totalorder %s40, 1
      %p273 = scmp.ne.s32.totalorder %s268, %s270
      %p274 = scmp.eq.s32.totalorder %s40, 0
      %p275 = por %p273, %p274
      %p276 = scmp.ne.s32.totalorder %s268, %s270
      %p277 = scmp.eq.s32.totalorder %s45, 1
      %p278 = por %p276, %p277
      %p279 = scmp.ne.s32.totalorder %s270, %s271
      %p280 = scmp.eq.s32.totalorder %s45, 0
      %p281 = por %p279, %p280
      %p282 = scmp.ne.s32.totalorder %s270, %s271
      %p283 = scmp.eq.s32.totalorder %s46, 1
      %p284 = por %p282, %p283
      %p286 = scmp.ne.s32.totalorder %s271, %s285
      %p287 = scmp.eq.s32.totalorder %s46, 0
      %p288 = por %p286, %p287
      %s290 = sadd.s32 %s289, 1
      %p293 = scmp.eq.s32.totalorder %s40, 1
      %p294 = scmp.ne.s32.totalorder %s289, %s291
      %p295 = scmp.eq.s32.totalorder %s40, 0
      %p296 = por %p294, %p295
      %p297 = scmp.ne.s32.totalorder %s289, %s291
      %p298 = scmp.eq.s32.totalorder %s45, 1
      %p299 = por %p297, %p298
      %p300 = scmp.ne.s32.totalorder %s291, %s292
      %p301 = scmp.eq.s32.totalorder %s45, 0
      %p302 = por %p300, %p301
      %p303 = scmp.ne.s32.totalorder %s291, %s292
      %p304 = scmp.eq.s32.totalorder %s46, 1
      %p305 = por %p303, %p304
      %p307 = scmp.ne.s32.totalorder %s292, %s306
      %p308 = scmp.eq.s32.totalorder %s46, 0
      %p309 = por %p307, %p308
      %s311 = sadd.s32 %s310, 1
      %p314 = scmp.eq.s32.totalorder %s40, 1
      %p315 = scmp.ne.s32.totalorder %s310, %s312
      %p316 = scmp.eq.s32.totalorder %s40, 0
      %p317 = por %p315, %p316
      %p318 = scmp.ne.s32.totalorder %s310, %s312
      %p319 = scmp.eq.s32.totalorder %s45, 1
      %p320 = por %p318, %p319
      %p321 = scmp.ne.s32.totalorder %s312, %s313
      %p322 = scmp.eq.s32.totalorder %s45, 0
      %p323 = por %p321, %p322
      %p324 = scmp.ne.s32.totalorder %s312, %s313
      %p325 = scmp.eq.s32.totalorder %s46, 1
      %p326 = por %p324, %p325
      %p328 = scmp.ne.s32.totalorder %s313, %s327
      %p329 = scmp.eq.s32.totalorder %s46, 0
      %p330 = por %p328, %p329
      %s332 = sadd.s32 %s331, 1
      %p335 = scmp.eq.s32.totalorder %s40, 1
      %p336 = scmp.ne.s32.totalorder %s331, %s333
      %p337 = scmp.eq.s32.totalorder %s40, 0
      %p338 = por %p336, %p337
      %p339 = scmp.ne.s32.totalorder %s331, %s333
      %p340 = scmp.eq.s32.totalorder %s45, 1
      %p341 = por %p339, %p340
      %p342 = scmp.ne.s32.totalorder %s333, %s334
      %p343 = scmp.eq.s32.totalorder %s45, 0
      %p344 = por %p342, %p343
      %p345 = scmp.ne.s32.totalorder %s333, %s334
      %p346 = scmp.eq.s32.totalorder %s46, 1
      %p347 = por %p345, %p346
      %p349 = scmp.ne.s32.totalorder %s334, %s348
      %p350 = scmp.eq.s32.totalorder %s46, 0
      %p351 = por %p349, %p350
      %s353 = sadd.s32 %s352, 1
      %p356 = scmp.eq.s32.totalorder %s40, 1
      %p357 = scmp.ne.s32.totalorder %s352, %s354
      %p358 = scmp.eq.s32.totalorder %s40, 0
      %p359 = por %p357, %p358
      %p360 = scmp.ne.s32.totalorder %s352, %s354
      %p361 = scmp.eq.s32.totalorder %s45, 1
      %p362 = por %p360, %p361
      %p363 = scmp.ne.s32.totalorder %s354, %s355
      %p364 = scmp.eq.s32.totalorder %s45, 0
      %p365 = por %p363, %p364
      %p366 = scmp.ne.s32.totalorder %s354, %s355
      %p367 = scmp.eq.s32.totalorder %s46, 1
      %p368 = por %p366, %p367
      %p370 = scmp.ne.s32.totalorder %s355, %s369
      %p371 = scmp.eq.s32.totalorder %s46, 0
      %p372 = por %p370, %p371
      %s374 = sadd.s32 %s373, 1
      %p377 = scmp.eq.s32.totalorder %s40, 1
      %p378 = scmp.ne.s32.totalorder %s373, %s375
      %p379 = scmp.eq.s32.totalorder %s40, 0
      %p380 = por %p378, %p379
      %p381 = scmp.ne.s32.totalorder %s373, %s375
      %p382 = scmp.eq.s32.totalorder %s45, 1
      %p383 = por %p381, %p382
      %p384 = scmp.ne.s32.totalorder %s375, %s376
      %p385 = scmp.eq.s32.totalorder %s45, 0
      %p386 = por %p384, %p385
      %p387 = scmp.ne.s32.totalorder %s375, %s376
      %p388 = scmp.eq.s32.totalorder %s46, 1
      %p389 = por %p387, %p388
      %p391 = scmp.ne.s32.totalorder %s376, %s390
      %p392 = scmp.eq.s32.totalorder %s46, 0
      %p393 = por %p391, %p392
      %s395 = sadd.s32 %s394, 1
      %p398 = scmp.eq.s32.totalorder %s40, 1
      %p399 = scmp.ne.s32.totalorder %s394, %s396
      %p400 = scmp.eq.s32.totalorder %s40, 0
      %p401 = por %p399, %p400
      %p402 = scmp.ne.s32.totalorder %s394, %s396
      %p403 = scmp.eq.s32.totalorder %s45, 1
      %p404 = por %p402, %p403
      %p405 = scmp.ne.s32.totalorder %s396, %s397
      %p406 = scmp.eq.s32.totalorder %s45, 0
      %p407 = por %p405, %p406
      %p408 = scmp.ne.s32.totalorder %s396, %s397
      %p409 = scmp.eq.s32.totalorder %s46, 1
      %p410 = por %p408, %p409
      %p412 = scmp.ne.s32.totalorder %s397, %s411
      %p413 = scmp.eq.s32.totalorder %s46, 0
      %p414 = por %p412, %p413
      %s416 = sadd.s32 %s415, 1
      %p419 = scmp.eq.s32.totalorder %s40, 1
      %p420 = scmp.ne.s32.totalorder %s415, %s417
      %p421 = scmp.eq.s32.totalorder %s40, 0
      %p422 = por %p420, %p421
      %p423 = scmp.ne.s32.totalorder %s415, %s417
      %p424 = scmp.eq.s32.totalorder %s45, 1
      %p425 = por %p423, %p424
      %p426 = scmp.ne.s32.totalorder %s417, %s418
      %p427 = scmp.eq.s32.totalorder %s45, 0
      %p428 = por %p426, %p427
      %p429 = scmp.ne.s32.totalorder %s417, %s418
      %p430 = scmp.eq.s32.totalorder %s46, 1
      %p431 = por %p429, %p430
      %p433 = scmp.ne.s32.totalorder %s418, %s432
      %p434 = scmp.eq.s32.totalorder %s46, 0
      %p435 = por %p433, %p434
      %s437 = sadd.s32 %s436, 1
      %p440 = scmp.eq.s32.totalorder %s40, 1
      %p441 = scmp.ne.s32.totalorder %s436, %s438
      %p442 = scmp.eq.s32.totalorder %s40, 0
      %p443 = por %p441, %p442
      %p444 = scmp.ne.s32.totalorder %s436, %s438
      %p445 = scmp.eq.s32.totalorder %s45, 1
      %p446 = por %p444, %p445
      %p447 = scmp.ne.s32.totalorder %s438, %s439
      %p448 = scmp.eq.s32.totalorder %s45, 0
      %p449 = por %p447, %p448
      %p450 = scmp.ne.s32.totalorder %s438, %s439
      %p451 = scmp.eq.s32.totalorder %s46, 1
      %p452 = por %p450, %p451
      %p454 = scmp.ne.s32.totalorder %s439, %s453
      %p455 = scmp.eq.s32.totalorder %s46, 0
      %p456 = por %p454, %p455
      %s458 = sadd.s32 %s457, 1
      %p461 = scmp.eq.s32.totalorder %s40, 1
      %p462 = scmp.ne.s32.totalorder %s457, %s459
      %p463 = scmp.eq.s32.totalorder %s40, 0
      %p464 = por %p462, %p463
      %p465 = scmp.ne.s32.totalorder %s457, %s459
      %p466 = scmp.eq.s32.totalorder %s45, 1
      %p467 = por %p465, %p466
      %p468 = scmp.ne.s32.totalorder %s459, %s460
      %p469 = scmp.eq.s32.totalorder %s45, 0
      %p470 = por %p468, %p469
      %p471 = scmp.ne.s32.totalorder %s459, %s460
      %p472 = scmp.eq.s32.totalorder %s46, 1
      %p473 = por %p471, %p472
      %p475 = scmp.ne.s32.totalorder %s460, %s474
      %p476 = scmp.eq.s32.totalorder %s46, 0
      %p477 = por %p475, %p476
      %s478 = ssub.s32 %s40, %s47
      %p479 = scmp.eq.s32.totalorder %s478, 0
      %s481 = sadd.s32 %s480, 1
      %s482 = scalar_select %p479, %s480, %s481
      %p485 = pneg %p479
      %p486 = scmp.eq.s32.totalorder %s40, 1
      %p487 = por %p485, %p486
      %p488 = scmp.ne.s32.totalorder %s480, %s483
      %p489 = scmp.eq.s32.totalorder %s40, 0
      %p490 = por %p488, %p489
      %p491 = scmp.ne.s32.totalorder %s480, %s483
      %p492 = scmp.eq.s32.totalorder %s45, 1
      %p493 = por %p491, %p492
      %p494 = scmp.ne.s32.totalorder %s483, %s484
      %p495 = scmp.eq.s32.totalorder %s45, 0
      %p496 = por %p494, %p495
      %p497 = scmp.ne.s32.totalorder %s483, %s484
      %p498 = scmp.eq.s32.totalorder %s46, 1
      %p499 = por %p497, %p498
      %p501 = scmp.ne.s32.totalorder %s484, %s500
      %p502 = scmp.eq.s32.totalorder %s46, 0
      %p503 = por %p501, %p502
      %p504 = scmp.le.s32.totalorder 1, %s40
      %p505 = scmp.lt.s32.totalorder %s40, 3
      %p506 = pnand %p504, %p505
      %p507 = pneg %p506
      // Predicated region
      $region9: #{tpu_custom_call.1} parent=5 // pred_check
        _
      $region10: #{tpu_custom_call.1} parent=5 // pred_check_branch
        %509 = sbr.rel (%p506) target = $region12
      $region11: #{tpu_custom_call.1} parent=5 // pred_region
        %s510 = ssub.s32 %s40, 1
        // Predicated region
        $region13: #{tpu_custom_call.1} parent=11 // pred_check
          %p511 = pneg %p113
        $region14: #{tpu_custom_call.1} parent=11 // pred_check_branch
          %513 = sbr.rel (%p511) target = $region16
        $region15: #{tpu_custom_call.1} parent=11 // pred_region
          %515 = vsyncadd [#allocation6], 0
          %s516 = sshll.u32 %s2, 4
          %s517 = int_to_ptr.hbm [resolvable:$true] %s516
          %s518 = sshll.u32 [#allocation7], 4
          %s519 = int_to_ptr.vmem [resolvable:$true] %s518
          %524 = dma.hbm_to_vmem [thread:$0]  %s517, 1024, %s519, [#allocation6], 64, 64, 4
        $region16: #{tpu_custom_call.1} parent=11 // pred_fallthru
          _
        // Predicated region
        $region17: #{tpu_custom_call.1} parent=11 // pred_check
          %p525 = pneg %p134
        $region18: #{tpu_custom_call.1} parent=11 // pred_check_branch
          %527 = sbr.rel (%p525) target = $region20
        $region19: #{tpu_custom_call.1} parent=11 // pred_region
          _
        $region20: #{tpu_custom_call.1} parent=11 // pred_fallthru
          _
        // Predicated region
        $region21: #{tpu_custom_call.1} parent=11 // pred_check
          %p528 = pneg %p155
        $region22: #{tpu_custom_call.1} parent=11 // pred_check_branch
          %530 = sbr.rel (%p528) target = $region24
        $region23: #{tpu_custom_call.1} parent=11 // pred_region
          %532 = vsyncadd [#allocation9], 0
          %s533 = sshll.u32 %s4, 4
          %s534 = int_to_ptr.hbm [resolvable:$true] %s533
          %s535 = sshll.u32 [#allocation8], 4
          %s536 = int_to_ptr.vmem [resolvable:$true] %s535
          %541 = dma.hbm_to_vmem [thread:$0]  %s534, 1024, %s536, [#allocation9], 64, 64, 4
        $region24: #{tpu_custom_call.1} parent=11 // pred_fallthru
          _
        // Predicated region
        $region25: #{tpu_custom_call.1} parent=11 // pred_check
          %p542 = pneg %p176
        $region26: #{tpu_custom_call.1} parent=11 // pred_check_branch
          %544 = sbr.rel (%p542) target = $region28
        $region27: #{tpu_custom_call.1} parent=11 // pred_region
          %546 = vsyncadd [#allocation9], 0
          %s547 = sshll.u32 %s5, 4
          %s548 = int_to_ptr.hbm [resolvable:$true] %s547
          %s549 = sshll.u32 [#allocation10], 4
          %s550 = int_to_ptr.vmem [resolvable:$true] %s549
          %555 = dma.hbm_to_vmem [thread:$0]  %s548, 1024, %s550, [#allocation9], 64, 64, 4
        $region28: #{tpu_custom_call.1} parent=11 // pred_fallthru
          _
        // Predicated region
        $region29: #{tpu_custom_call.1} parent=11 // pred_check
          %p556 = pneg %p197
        $region30: #{tpu_custom_call.1} parent=11 // pred_check_branch
          %558 = sbr.rel (%p556) target = $region32
        $region31: #{tpu_custom_call.1} parent=11 // pred_region
          _
        $region32: #{tpu_custom_call.1} parent=11 // pred_fallthru
          _
        // Predicated region
        $region33: #{tpu_custom_call.1} parent=11 // pred_check
          %p559 = pneg %p218
        $region34: #{tpu_custom_call.1} parent=11 // pred_check_branch
          %561 = sbr.rel (%p559) target = $region36
        $region35: #{tpu_custom_call.1} parent=11 // pred_region
          %563 = vsyncadd [#allocation12], 0
          %s564 = sshll.u32 %s7, 4
          %s565 = int_to_ptr.hbm [resolvable:$true] %s564
          %s566 = sshll.u32 [#allocation11], 4
          %s567 = int_to_ptr.vmem [resolvable:$true] %s566
          %572 = dma.hbm_to_vmem [thread:$0]  %s565, 1024, %s567, [#allocation12], 64, 64, 4
        $region36: #{tpu_custom_call.1} parent=11 // pred_fallthru
          _
        // Predicated region
        $region37: #{tpu_custom_call.1} parent=11 // pred_check
          %p573 = pneg %p239
        $region38: #{tpu_custom_call.1} parent=11 // pred_check_branch
          %575 = sbr.rel (%p573) target = $region40
        $region39: #{tpu_custom_call.1} parent=11 // pred_region
          %577 = vsyncadd [#allocation12], 0
          %s578 = sshll.u32 %s8, 4
          %s579 = int_to_ptr.hbm [resolvable:$true] %s578
          %s580 = sshll.u32 [#allocation13], 4
          %s581 = int_to_ptr.vmem [resolvable:$true] %s580
          %586 = dma.hbm_to_vmem [thread:$0]  %s579, 1024, %s581, [#allocation12], 64, 64, 4
        $region40: #{tpu_custom_call.1} parent=11 // pred_fallthru
          _
        // Predicated region
        $region41: #{tpu_custom_call.1} parent=11 // pred_check
          %p587 = pneg %p260
        $region42: #{tpu_custom_call.1} parent=11 // pred_check_branch
          %589 = sbr.rel (%p587) target = $region44
        $region43: #{tpu_custom_call.1} parent=11 // pred_region
          _
        $region44: #{tpu_custom_call.1} parent=11 // pred_fallthru
          _
        // Predicated region
        $region45: #{tpu_custom_call.1} parent=11 // pred_check
          %p590 = pneg %p281
        $region46: #{tpu_custom_call.1} parent=11 // pred_check_branch
          %592 = sbr.rel (%p590) target = $region48
        $region47: #{tpu_custom_call.1} parent=11 // pred_region
          %594 = vsyncadd [#allocation15], 0
          %s595 = sshll.u32 %s10, 4
          %s596 = int_to_ptr.hbm [resolvable:$true] %s595
          %s597 = sshll.u32 [#allocation14], 4
          %s598 = int_to_ptr.vmem [resolvable:$true] %s597
          %603 = dma.hbm_to_vmem [thread:$0]  %s596, 2048, %s598, [#allocation15], 128, 128, 8
        $region48: #{tpu_custom_call.1} parent=11 // pred_fallthru
          _
        // Predicated region
        $region49: #{tpu_custom_call.1} parent=11 // pred_check
          %p604 = pneg %p302
        $region50: #{tpu_custom_call.1} parent=11 // pred_check_branch
          %606 = sbr.rel (%p604) target = $region52
        $region51: #{tpu_custom_call.1} parent=11 // pred_region
          %608 = vsyncadd [#allocation15], 0
          %s609 = sshll.u32 %s11, 4
          %s610 = int_to_ptr.hbm [resolvable:$true] %s609
          %s611 = sshll.u32 [#allocation16], 4
          %s612 = int_to_ptr.vmem [resolvable:$true] %s611
          %617 = dma.hbm_to_vmem [thread:$0]  %s610, 2048, %s612, [#allocation15], 128, 128, 8
        $region52: #{tpu_custom_call.1} parent=11 // pred_fallthru
          _
        // Predicated region
        $region53: #{tpu_custom_call.1} parent=11 // pred_check
          %p618 = pneg %p323
        $region54: #{tpu_custom_call.1} parent=11 // pred_check_branch
          %620 = sbr.rel (%p618) target = $region56
        $region55: #{tpu_custom_call.1} parent=11 // pred_region
          _
        $region56: #{tpu_custom_call.1} parent=11 // pred_fallthru
          _
        // Predicated region
        $region57: #{tpu_custom_call.1} parent=11 // pred_check
          %p621 = pneg %p344
        $region58: #{tpu_custom_call.1} parent=11 // pred_check_branch
          %623 = sbr.rel (%p621) target = $region60
        $region59: #{tpu_custom_call.1} parent=11 // pred_region
          %625 = vsyncadd [#allocation18], 0
          %s626 = sshll.u32 %s13, 4
          %s627 = int_to_ptr.hbm [resolvable:$true] %s626
          %s628 = sshll.u32 [#allocation17], 4
          %s629 = int_to_ptr.vmem [resolvable:$true] %s628
          %634 = dma.hbm_to_vmem [thread:$0]  %s627, 2048, %s629, [#allocation18], 64, 64, 4
        $region60: #{tpu_custom_call.1} parent=11 // pred_fallthru
          _
        // Predicated region
        $region61: #{tpu_custom_call.1} parent=11 // pred_check
          %p635 = pneg %p365
        $region62: #{tpu_custom_call.1} parent=11 // pred_check_branch
          %637 = sbr.rel (%p635) target = $region64
        $region63: #{tpu_custom_call.1} parent=11 // pred_region
          %639 = vsyncadd [#allocation18], 0
          %s640 = sshll.u32 %s14, 4
          %s641 = int_to_ptr.hbm [resolvable:$true] %s640
          %s642 = sshll.u32 [#allocation19], 4
          %s643 = int_to_ptr.vmem [resolvable:$true] %s642
          %648 = dma.hbm_to_vmem [thread:$0]  %s641, 2048, %s643, [#allocation18], 64, 64, 4
        $region64: #{tpu_custom_call.1} parent=11 // pred_fallthru
          _
        // Predicated region
        $region65: #{tpu_custom_call.1} parent=11 // pred_check
          %p649 = pneg %p386
        $region66: #{tpu_custom_call.1} parent=11 // pred_check_branch
          %651 = sbr.rel (%p649) target = $region68
        $region67: #{tpu_custom_call.1} parent=11 // pred_region
          _
        $region68: #{tpu_custom_call.1} parent=11 // pred_fallthru
          _
        // Predicated region
        $region69: #{tpu_custom_call.1} parent=11 // pred_check
          %p652 = pneg %p407
        $region70: #{tpu_custom_call.1} parent=11 // pred_check_branch
          %654 = sbr.rel (%p652) target = $region72
        $region71: #{tpu_custom_call.1} parent=11 // pred_region
          %656 = vsyncadd [#allocation21], 0
          %s657 = sshll.u32 %s16, 4
          %s658 = int_to_ptr.hbm [resolvable:$true] %s657
          %s659 = sshll.u32 [#allocation20], 4
          %s660 = int_to_ptr.vmem [resolvable:$true] %s659
          %665 = dma.hbm_to_vmem [thread:$0]  %s658, 1024, %s660, [#allocation21], 64, 64, 4
        $region72: #{tpu_custom_call.1} parent=11 // pred_fallthru
          _
        // Predicated region
        $region73: #{tpu_custom_call.1} parent=11 // pred_check
          %p666 = pneg %p428
        $region74: #{tpu_custom_call.1} parent=11 // pred_check_branch
          %668 = sbr.rel (%p666) target = $region76
        $region75: #{tpu_custom_call.1} parent=11 // pred_region
          _
        $region76: #{tpu_custom_call.1} parent=11 // pred_fallthru
          _
        // Predicated region
        $region77: #{tpu_custom_call.1} parent=11 // pred_check
          %p669 = pneg %p449
        $region78: #{tpu_custom_call.1} parent=11 // pred_check_branch
          %671 = sbr.rel (%p669) target = $region80
        $region79: #{tpu_custom_call.1} parent=11 // pred_region
          %673 = vsyncadd [#allocation21], 0
          %s674 = sshll.u32 %s18, 4
          %s675 = int_to_ptr.hbm [resolvable:$true] %s674
          %s676 = sshll.u32 [#allocation22], 4
          %s677 = int_to_ptr.vmem [resolvable:$true] %s676
          %682 = dma.hbm_to_vmem [thread:$0]  %s675, 1024, %s677, [#allocation21], 64, 64, 4
        $region80: #{tpu_custom_call.1} parent=11 // pred_fallthru
          _
        // Predicated region
        $region81: #{tpu_custom_call.1} parent=11 // pred_check
          %p683 = pneg %p470
        $region82: #{tpu_custom_call.1} parent=11 // pred_check_branch
          %685 = sbr.rel (%p683) target = $region84
        $region83: #{tpu_custom_call.1} parent=11 // pred_region
          _
        $region84: #{tpu_custom_call.1} parent=11 // pred_fallthru
          _
      $region12: #{tpu_custom_call.1} parent=5 // pred_fallthru
        _
      %p686 = scmp.lt.s32.totalorder %s40, 2
      // Predicated region
      $region85: #{tpu_custom_call.1} parent=5 // pred_check
        %p687 = pneg %p686
      $region86: #{tpu_custom_call.1} parent=5 // pred_check_branch
        %689 = sbr.rel (%p687) target = $region88
      $region87: #{tpu_custom_call.1} parent=5 // pred_region
        // Predicated region
        $region89: #{tpu_custom_call.1} parent=87 // pred_check
          %p690 = pneg %p60
        $region90: #{tpu_custom_call.1} parent=87 // pred_check_branch
          %692 = sbr.rel (%p690) target = $region92
        $region91: #{tpu_custom_call.1} parent=87 // pred_region
          %s693 = sand.u32 %s50, 1
          %s694 = scalar_lea.sflag [#allocation3], %s693
          %s695 = sand.u32 %s50, 1
          %s696 = smul.addr %s695, 32
          %s697 = scalar_lea.vmem [#allocation2], %s696
          %699 = vsyncadd %s694, 0
          %s700 = smul.addr %s40, 8
          %s701 = smul.addr %s700, 4
          %s702 = scalar_lea.hbm %s0, %s701
          %s703 = sshll.u32 %s702, 4
          %s704 = int_to_ptr.hbm [resolvable:$true] %s703
          %s705 = sshll.u32 %s697, 4
          %s706 = int_to_ptr.vmem [resolvable:$true] %s705
          %711 = dma.hbm_to_vmem [thread:$0]  %s704, 512, %s706, %s694, 64, 64, 4
        $region92: #{tpu_custom_call.1} parent=87 // pred_fallthru
          _
        // Predicated region
        $region93: #{tpu_custom_call.1} parent=87 // pred_check
          %p712 = pneg %p86
        $region94: #{tpu_custom_call.1} parent=87 // pred_check_branch
          %714 = sbr.rel (%p712) target = $region96
        $region95: #{tpu_custom_call.1} parent=87 // pred_region
          %s715 = sand.u32 %s40, 1
          %s716 = scalar_lea.sflag [#allocation6], %s715
          %s717 = sand.u32 %s76, 1
          %s718 = smul.addr %s717, 32
          %s719 = scalar_lea.vmem [#allocation5], %s718
          %721 = vsyncadd %s716, 0
          %s722 = smul.addr %s40, 8
          %s723 = smul.addr %s722, 4
          %s724 = scalar_lea.hbm %s1, %s723
          %s725 = sshll.u32 %s724, 4
          %s726 = int_to_ptr.hbm [resolvable:$true] %s725
          %s727 = sshll.u32 %s719, 4
          %s728 = int_to_ptr.vmem [resolvable:$true] %s727
          %733 = dma.hbm_to_vmem [thread:$0]  %s726, 512, %s728, %s716, 64, 64, 4
        $region96: #{tpu_custom_call.1} parent=87 // pred_fallthru
          _
      $region88: #{tpu_custom_call.1} parent=5 // pred_fallthru
        _
      %p734 = scmp.le.s32.totalorder 1, %s40
      %p735 = scmp.lt.s32.totalorder %s40, 3
      %p736 = pnand %p734, %p735
      %p737 = pneg %p736
      // Predicated region
      $region97: #{tpu_custom_call.1} parent=5 // pred_check
        _
      $region98: #{tpu_custom_call.1} parent=5 // pred_check_branch
        %739 = sbr.rel (%p736) target = $region100
      $region99: #{tpu_custom_call.1} parent=5 // pred_region
        %s740 = ssub.s32 %s40, 1
        %s741 = sand.u32 %s53, 1
        %s742 = scalar_lea.sflag [#allocation3], %s741
        %s743 = sand.u32 %s53, 1
        %s744 = smul.addr %s743, 32
        %s745 = scalar_lea.vmem [#allocation2], %s744
        // Predicated region
        $region101: #{tpu_custom_call.1} parent=99 // pred_check
          %p746 = pneg %p66
        $region102: #{tpu_custom_call.1} parent=99 // pred_check_branch
          %748 = sbr.rel (%p746) target = $region104
        $region103: #{tpu_custom_call.1} parent=99 // pred_region
          %750 = dma.done %s742, 512
        $region104: #{tpu_custom_call.1} parent=99 // pred_fallthru
          _
        %s751 = sand.u32 %s45, 1
        %s752 = scalar_lea.sflag [#allocation6], %s751
        %s753 = sand.u32 %s79, 1
        %s754 = smul.addr %s753, 32
        %s755 = scalar_lea.vmem [#allocation5], %s754
        // Predicated region
        $region105: #{tpu_custom_call.1} parent=99 // pred_check
          %p756 = pneg %p92
        $region106: #{tpu_custom_call.1} parent=99 // pred_check_branch
          %758 = sbr.rel (%p756) target = $region108
        $region107: #{tpu_custom_call.1} parent=99 // pred_region
          %760 = dma.done %s752, 512
        $region108: #{tpu_custom_call.1} parent=99 // pred_fallthru
          _
        // Predicated region
        $region109: #{tpu_custom_call.1} parent=99 // pred_check
          %p761 = pneg %p113
        $region110: #{tpu_custom_call.1} parent=99 // pred_check_branch
          %763 = sbr.rel (%p761) target = $region112
        $region111: #{tpu_custom_call.1} parent=99 // pred_region
          %765 = dma.done [#allocation6], 1024
        $region112: #{tpu_custom_call.1} parent=99 // pred_fallthru
          _
        // Predicated region
        $region113: #{tpu_custom_call.1} parent=99 // pred_check
          %p766 = pneg %p155
        $region114: #{tpu_custom_call.1} parent=99 // pred_check_branch
          %768 = sbr.rel (%p766) target = $region116
        $region115: #{tpu_custom_call.1} parent=99 // pred_region
          %770 = dma.done [#allocation9], 1024
        $region116: #{tpu_custom_call.1} parent=99 // pred_fallthru
          _
        // Predicated region
        $region117: #{tpu_custom_call.1} parent=99 // pred_check
          %p771 = pneg %p176
        $region118: #{tpu_custom_call.1} parent=99 // pred_check_branch
          %773 = sbr.rel (%p771) target = $region120
        $region119: #{tpu_custom_call.1} parent=99 // pred_region
          %775 = dma.done [#allocation9], 1024
        $region120: #{tpu_custom_call.1} parent=99 // pred_fallthru
          _
        // Predicated region
        $region121: #{tpu_custom_call.1} parent=99 // pred_check
          %p776 = pneg %p218
        $region122: #{tpu_custom_call.1} parent=99 // pred_check_branch
          %778 = sbr.rel (%p776) target = $region124
        $region123: #{tpu_custom_call.1} parent=99 // pred_region
          %780 = dma.done [#allocation12], 1024
        $region124: #{tpu_custom_call.1} parent=99 // pred_fallthru
          _
        // Predicated region
        $region125: #{tpu_custom_call.1} parent=99 // pred_check
          %p781 = pneg %p239
        $region126: #{tpu_custom_call.1} parent=99 // pred_check_branch
          %783 = sbr.rel (%p781) target = $region128
        $region127: #{tpu_custom_call.1} parent=99 // pred_region
          %785 = dma.done [#allocation12], 1024
        $region128: #{tpu_custom_call.1} parent=99 // pred_fallthru
          _
        // Predicated region
        $region129: #{tpu_custom_call.1} parent=99 // pred_check
          %p786 = pneg %p281
        $region130: #{tpu_custom_call.1} parent=99 // pred_check_branch
          %788 = sbr.rel (%p786) target = $region132
        $region131: #{tpu_custom_call.1} parent=99 // pred_region
          %790 = dma.done [#allocation15], 2048
        $region132: #{tpu_custom_call.1} parent=99 // pred_fallthru
          _
        // Predicated region
        $region133: #{tpu_custom_call.1} parent=99 // pred_check
          %p791 = pneg %p302
        $region134: #{tpu_custom_call.1} parent=99 // pred_check_branch
          %793 = sbr.rel (%p791) target = $region136
        $region135: #{tpu_custom_call.1} parent=99 // pred_region
          %795 = dma.done [#allocation15], 2048
        $region136: #{tpu_custom_call.1} parent=99 // pred_fallthru
          _
        // Predicated region
        $region137: #{tpu_custom_call.1} parent=99 // pred_check
          %p796 = pneg %p344
        $region138: #{tpu_custom_call.1} parent=99 // pred_check_branch
          %798 = sbr.rel (%p796) target = $region140
        $region139: #{tpu_custom_call.1} parent=99 // pred_region
          %800 = dma.done [#allocation18], 2048
        $region140: #{tpu_custom_call.1} parent=99 // pred_fallthru
          _
        // Predicated region
        $region141: #{tpu_custom_call.1} parent=99 // pred_check
          %p801 = pneg %p365
        $region142: #{tpu_custom_call.1} parent=99 // pred_check_branch
          %803 = sbr.rel (%p801) target = $region144
        $region143: #{tpu_custom_call.1} parent=99 // pred_region
          %805 = dma.done [#allocation18], 2048
        $region144: #{tpu_custom_call.1} parent=99 // pred_fallthru
          _
        // Predicated region
        $region145: #{tpu_custom_call.1} parent=99 // pred_check
          %p806 = pneg %p407
        $region146: #{tpu_custom_call.1} parent=99 // pred_check_branch
          %808 = sbr.rel (%p806) target = $region148
        $region147: #{tpu_custom_call.1} parent=99 // pred_region
          %810 = dma.done [#allocation21], 1024
        $region148: #{tpu_custom_call.1} parent=99 // pred_fallthru
          _
        // Predicated region
        $region149: #{tpu_custom_call.1} parent=99 // pred_check
          %p811 = pneg %p449
        $region150: #{tpu_custom_call.1} parent=99 // pred_check_branch
          %813 = sbr.rel (%p811) target = $region152
        $region151: #{tpu_custom_call.1} parent=99 // pred_region
          %815 = dma.done [#allocation21], 1024
        $region152: #{tpu_custom_call.1} parent=99 // pred_fallthru
          _
        %s816 = sand.u32 %s53, 1
        %s817 = scalar_lea.sflag [#allocation3], %s816
        %s818 = sand.u32 %s53, 1
        %s819 = smul.addr %s818, 32
        %s820 = scalar_lea.vmem [#allocation2], %s819
        %p821 = pneg %p66
        %p822 = pneg %p63
        %s823 = sand.u32 %s45, 1
        %s824 = scalar_lea.sflag [#allocation6], %s823
        %s825 = sand.u32 %s79, 1
        %s826 = smul.addr %s825, 32
        %s827 = scalar_lea.vmem [#allocation5], %s826
        %p828 = pneg %p92
        %p829 = pneg %p89
        %p830 = pneg %p113
        %p831 = pneg %p110
        %p832 = pneg %p134
        %p833 = pneg %p131
        %p834 = pneg %p155
        %p835 = pneg %p152
        %p836 = pneg %p176
        %p837 = pneg %p173
        %p838 = pneg %p197
        %p839 = pneg %p194
        %p840 = pneg %p218
        %p841 = pneg %p215
        %p842 = pneg %p239
        %p843 = pneg %p236
        %p844 = pneg %p260
        %p845 = pneg %p257
        %p846 = pneg %p281
        %p847 = pneg %p278
        %p848 = pneg %p302
        %p849 = pneg %p299
        %p850 = pneg %p323
        %p851 = pneg %p320
        %p852 = pneg %p344
        %p853 = pneg %p341
        %p854 = pneg %p365
        %p855 = pneg %p362
        %p856 = pneg %p386
        %p857 = pneg %p383
        %p858 = pneg %p407
        %p859 = pneg %p404
        %p860 = pneg %p428
        %p861 = pneg %p425
        %p862 = pneg %p449
        %p863 = pneg %p446
        %p864 = pneg %p470
        %p865 = pneg %p467
        %p866 = pneg %p496
        %p867 = pneg %p493
        %s868 = sand.u32 %s483, 1
        %s869 = scalar_lea.sflag [#allocation4], %s868
        %s870 = sand.u32 %s483, 1
        %s871 = smul.addr %s870, 4
        %s872 = scalar_lea.vmem [#allocation23], %s871
        %v874 = vld [vmem:[%s755] sm:$0xf]
        %v875 = vld [vmem:[%s755 + $0x4] sm:$0xf]
        %v876 = vld [vmem:[%s755 + $0x8] sm:$0xf]
        %v877 = vld [vmem:[%s755 + $0xc] sm:$0xf]
        %v878 = vld [vmem:[%s755 + $0x10] sm:$0xf]
        %v879 = vld [vmem:[%s755 + $0x14] sm:$0xf]
        %v880 = vld [vmem:[%s755 + $0x18] sm:$0xf]
        %v881 = vld [vmem:[%s755 + $0x1c] sm:$0xf]
        %v882 = vld [vmem:[%s745] sm:$0xf]
        %v883 = vld [vmem:[%s745 + $0x4] sm:$0xf]
        %v884 = vld [vmem:[%s745 + $0x8] sm:$0xf]
        %v885 = vld [vmem:[%s745 + $0xc] sm:$0xf]
        %v886 = vld [vmem:[%s745 + $0x10] sm:$0xf]
        %v887 = vld [vmem:[%s745 + $0x14] sm:$0xf]
        %v888 = vld [vmem:[%s745 + $0x18] sm:$0xf]
        %v889 = vld [vmem:[%s745 + $0x1c] sm:$0xf]
        %v890 = vld [vmem:[#allocation7] sm:$0xf]
        %v891 = vld [vmem:[#allocation7 + $0x4] sm:$0xf]
        %v892 = vld [vmem:[#allocation7 + $0x8] sm:$0xf]
        %v893 = vld [vmem:[#allocation7 + $0xc] sm:$0xf]
        %v894 = vld [vmem:[#allocation7 + $0x10] sm:$0xf]
        %v895 = vld [vmem:[#allocation7 + $0x14] sm:$0xf]
        %v896 = vld [vmem:[#allocation7 + $0x18] sm:$0xf]
        %v897 = vld [vmem:[#allocation7 + $0x1c] sm:$0xf]
        %v898 = vld [vmem:[#allocation7 + $0x20] sm:$0xf]
        %v899 = vld [vmem:[#allocation7 + $0x24] sm:$0xf]
        %v900 = vld [vmem:[#allocation7 + $0x28] sm:$0xf]
        %v901 = vld [vmem:[#allocation7 + $0x2c] sm:$0xf]
        %v902 = vld [vmem:[#allocation7 + $0x30] sm:$0xf]
        %v903 = vld [vmem:[#allocation7 + $0x34] sm:$0xf]
        %v904 = vld [vmem:[#allocation7 + $0x38] sm:$0xf]
        %v905 = vld [vmem:[#allocation7 + $0x3c] sm:$0xf]
        %v914 = vunpack.c.l.b16 %v882
        %v915 = vunpack.c.l.b16 %v883
        %v916 = vunpack.c.l.b16 %v884
        %v917 = vunpack.c.l.b16 %v885
        %v918 = vunpack.c.l.b16 %v886
        %v919 = vunpack.c.l.b16 %v887
        %v920 = vunpack.c.l.b16 %v888
        %v921 = vunpack.c.l.b16 %v889
        %v922 = vpack.c.b16 %v915, %v914
        %v923 = vpack.c.b16 %v917, %v916
        %v924 = vpack.c.b16 %v919, %v918
        %v925 = vpack.c.b16 %v921, %v920
        %v946 = vunpack.c.l.b16 %v890
        %v947 = vunpack.c.l.b16 %v891
        %v948 = vunpack.c.l.b16 %v892
        %v949 = vunpack.c.l.b16 %v893
        %v950 = vunpack.c.l.b16 %v894
        %v951 = vunpack.c.l.b16 %v895
        %v952 = vunpack.c.l.b16 %v896
        %v953 = vunpack.c.l.b16 %v897
        %v954 = vunpack.c.l.b16 %v898
        %v955 = vunpack.c.l.b16 %v899
        %v956 = vunpack.c.l.b16 %v900
        %v957 = vunpack.c.l.b16 %v901
        %v958 = vunpack.c.l.b16 %v902
        %v959 = vunpack.c.l.b16 %v903
        %v960 = vunpack.c.l.b16 %v904
        %v961 = vunpack.c.l.b16 %v905
        %v962 = vpack.c.b16 %v947, %v946
        %v963 = vpack.c.b16 %v949, %v948
        %v964 = vpack.c.b16 %v951, %v950
        %v965 = vpack.c.b16 %v953, %v952
        %v966 = vpack.c.b16 %v955, %v954
        %v967 = vpack.c.b16 %v957, %v956
        %v968 = vpack.c.b16 %v959, %v958
        %v969 = vpack.c.b16 %v961, %v960
        %978 = vmatpush.bf16.msra.mxu0 %v969
        %979 = vmatpush.bf16.msra.mxu0 %v968
        %980 = vmatpush.bf16.msra.mxu0 %v967
        %981 = vmatpush.bf16.msra.mxu0 %v966
        %982 = vmatpush.bf16.msra.mxu0 %v965
        %983 = vmatpush.bf16.msra.mxu0 %v964
        %984 = vmatpush.bf16.msra.mxu0 %v963
        %985 = vmatpush.bf16.msra.mxu0 %v962
        %986 = vmatmul.bf16.gmra.mxu0 %v922
        %v987 = vpop.f32.mrf.mxu0
        %v988 = vadd.f32 0.0, %v987
        %v989 = vpop.f32.mrf.mxu0
        %v990 = vadd.f32 0.0, %v989
        %991 = vmatmul.bf16.gmra.mxu0 %v923
        %v992 = vpop.f32.mrf.mxu0
        %v993 = vadd.f32 0.0, %v992
        %v994 = vpop.f32.mrf.mxu0
        %v995 = vadd.f32 0.0, %v994
        %996 = vmatmul.bf16.gmra.mxu0 %v924
        %v997 = vpop.f32.mrf.mxu0
        %v998 = vadd.f32 0.0, %v997
        %v999 = vpop.f32.mrf.mxu0
        %v1000 = vadd.f32 0.0, %v999
        %1001 = vmatmul.bf16.gmra.mxu0 %v925
        %v1002 = vpop.f32.mrf.mxu0
        %v1003 = vadd.f32 0.0, %v1002
        %v1004 = vpop.f32.mrf.mxu0
        %v1005 = vadd.f32 0.0, %v1004
        %1006 = vdwg.mxu0
        %v1007 = vpack.c.bf16 %v990, %v988
        %v1008 = vpack.c.bf16 %v995, %v993
        %v1009 = vpack.c.bf16 %v1000, %v998
        %v1010 = vpack.c.bf16 %v1005, %v1003
        %v1011 = vld [vmem:[%s3] sm:$0x1]
        %v1013 = vperm.slane %v1011, 0
        %v1023 = vunpack.c.l.b16 %v874
        %v1024 = vunpack.c.l.b16 %v875
        %v1025 = vunpack.c.l.b16 %v876
        %v1026 = vunpack.c.l.b16 %v877
        %v1027 = vunpack.c.l.b16 %v878
        %v1028 = vunpack.c.l.b16 %v879
        %v1029 = vunpack.c.l.b16 %v880
        %v1030 = vunpack.c.l.b16 %v881
        %v1031 = vpack.c.b16 %v1024, %v1023
        %v1032 = vpack.c.b16 %v1026, %v1025
        %v1033 = vpack.c.b16 %v1028, %v1027
        %v1034 = vpack.c.b16 %v1030, %v1029
        %vm1035 = vcmask 523264
        %v1037 = vsel %vm1035, %v1031, 0
        %v1040 = vsel %vm1035, %v1032, 0
        %v1043 = vsel %vm1035, %v1033, 0
        %v1046 = vsel %vm1035, %v1034, 0
        %1048 = vmatpush.bf16.msra.mxu0 0
        %1049 = vmatpush.bf16.msra.mxu0 0
        %1050 = vmatpush.bf16.msra.mxu0 0
        %1051 = vmatpush.bf16.msra.mxu0 0
        %1052 = vmatpush.bf16.msra.mxu0 %v1010
        %1053 = vmatpush.bf16.msra.mxu0 %v1009
        %1054 = vmatpush.bf16.msra.mxu0 %v1008
        %1055 = vmatpush.bf16.msra.mxu0 %v1007
        %1056 = vmatmul.bf16.gmra.mxu0 %v1037
        %v1057 = vpop.f32.mrf.mxu0
        %v1058 = vadd.f32 %v1013, %v1057
        %v1059 = vpop.f32.mrf.mxu0
        %v1060 = vadd.f32 %v1013, %v1059
        %1061 = vmatmul.bf16.gmra.mxu0 %v1040
        %v1062 = vpop.f32.mrf.mxu0
        %v1063 = vadd.f32 %v1013, %v1062
        %v1064 = vpop.f32.mrf.mxu0
        %v1065 = vadd.f32 %v1013, %v1064
        %1066 = vmatmul.bf16.gmra.mxu0 %v1043
        %v1067 = vpop.f32.mrf.mxu0
        %v1068 = vadd.f32 %v1013, %v1067
        %v1069 = vpop.f32.mrf.mxu0
        %v1070 = vadd.f32 %v1013, %v1069
        %1071 = vmatmul.bf16.gmra.mxu0 %v1046
        %v1072 = vpop.f32.mrf.mxu0
        %v1073 = vadd.f32 %v1013, %v1072
        %v1074 = vpop.f32.mrf.mxu0
        %v1075 = vadd.f32 %v1013, %v1074
        %1076 = vdwg.mxu0
        %v1077 = vmax.f32 %v1058, 0.0
        %v1078 = vmax.f32 %v1060, 0.0
        %v1079 = vmax.f32 %v1063, 0.0
        %v1080 = vmax.f32 %v1065, 0.0
        %v1081 = vmax.f32 %v1068, 0.0
        %v1082 = vmax.f32 %v1070, 0.0
        %v1083 = vmax.f32 %v1073, 0.0
        %v1084 = vmax.f32 %v1075, 0.0
        %v1085 = vpack.c.bf16 %v1077, %v1077
        %v1086 = vpack.c.bf16 %v1078, %v1078
        %v1087 = vpack.c.bf16 %v1079, %v1079
        %v1088 = vpack.c.bf16 %v1080, %v1080
        %v1089 = vpack.c.bf16 %v1081, %v1081
        %v1090 = vpack.c.bf16 %v1082, %v1082
        %v1091 = vpack.c.bf16 %v1083, %v1083
        %v1092 = vpack.c.bf16 %v1084, %v1084
        %v1093 = vunpack.c.l.bf16 %v1085
        %v1094 = vunpack.c.l.bf16 %v1086
        %v1095 = vunpack.c.l.bf16 %v1087
        %v1096 = vunpack.c.l.bf16 %v1088
        %v1097 = vunpack.c.l.bf16 %v1089
        %v1098 = vunpack.c.l.bf16 %v1090
        %v1099 = vunpack.c.l.bf16 %v1091
        %v1100 = vunpack.c.l.bf16 %v1092
        %v1101 = vmax.f32 %v1093, %v1094
        %v1102 = vrot.slane %v1101, 4
        %v1103 = vmax.f32 %v1101, %v1102
        %v1104 = vrot.slane %v1103, 2
        %v1105 = vmax.f32 %v1103, %v1104
        %v1106 = vrot.slane %v1105, 1
        %v1107 = vmax.f32 %v1105, %v1106
        %v1108 = vmax.f32 %v1095, %v1096
        %v1109 = vrot.slane %v1108, 4
        %v1110 = vmax.f32 %v1108, %v1109
        %v1111 = vrot.slane %v1110, 2
        %v1112 = vmax.f32 %v1110, %v1111
        %v1113 = vrot.slane %v1112, 1
        %v1114 = vmax.f32 %v1112, %v1113
        %v1115 = vmax.f32 %v1097, %v1098
        %v1116 = vrot.slane %v1115, 4
        %v1117 = vmax.f32 %v1115, %v1116
        %v1118 = vrot.slane %v1117, 2
        %v1119 = vmax.f32 %v1117, %v1118
        %v1120 = vrot.slane %v1119, 1
        %v1121 = vmax.f32 %v1119, %v1120
        %v1122 = vmax.f32 %v1099, %v1100
        %v1123 = vrot.slane %v1122, 4
        %v1124 = vmax.f32 %v1122, %v1123
        %v1125 = vrot.slane %v1124, 2
        %v1126 = vmax.f32 %v1124, %v1125
        %v1127 = vrot.slane %v1126, 1
        %v1128 = vmax.f32 %v1126, %v1127
        %v1129 = vpack.c.bf16 %v1107, %v1107
        %v1130 = vpack.c.bf16 %v1114, %v1114
        %v1131 = vpack.c.bf16 %v1121, %v1121
        %v1132 = vpack.c.bf16 %v1128, %v1128
        %v1133 = vld [vmem:[#allocation8] sm:$0xf]
        %v1134 = vld [vmem:[#allocation8 + $0x4] sm:$0xf]
        %v1135 = vld [vmem:[#allocation8 + $0x8] sm:$0xf]
        %v1136 = vld [vmem:[#allocation8 + $0xc] sm:$0xf]
        %v1137 = vld [vmem:[#allocation8 + $0x10] sm:$0xf]
        %v1138 = vld [vmem:[#allocation8 + $0x14] sm:$0xf]
        %v1139 = vld [vmem:[#allocation8 + $0x18] sm:$0xf]
        %v1140 = vld [vmem:[#allocation8 + $0x1c] sm:$0xf]
        %v1141 = vld [vmem:[#allocation8 + $0x20] sm:$0xf]
        %v1142 = vld [vmem:[#allocation8 + $0x24] sm:$0xf]
        %v1143 = vld [vmem:[#allocation8 + $0x28] sm:$0xf]
        %v1144 = vld [vmem:[#allocation8 + $0x2c] sm:$0xf]
        %v1145 = vld [vmem:[#allocation8 + $0x30] sm:$0xf]
        %v1146 = vld [vmem:[#allocation8 + $0x34] sm:$0xf]
        %v1147 = vld [vmem:[#allocation8 + $0x38] sm:$0xf]
        %v1148 = vld [vmem:[#allocation8 + $0x3c] sm:$0xf]
        %v1157 = vunpack.c.l.b16 %v1085
        %v1158 = vunpack.c.l.b16 %v1086
        %v1159 = vunpack.c.l.b16 %v1087
        %v1160 = vunpack.c.l.b16 %v1088
        %v1161 = vunpack.c.l.b16 %v1089
        %v1162 = vunpack.c.l.b16 %v1090
        %v1163 = vunpack.c.l.b16 %v1091
        %v1164 = vunpack.c.l.b16 %v1092
        %v1165 = vpack.c.b16 %v1158, %v1157
        %v1166 = vpack.c.b16 %v1160, %v1159
        %v1167 = vpack.c.b16 %v1162, %v1161
        %v1168 = vpack.c.b16 %v1164, %v1163
        %v1189 = vunpack.c.l.b16 %v1133
        %v1190 = vunpack.c.l.b16 %v1134
        %v1191 = vunpack.c.l.b16 %v1135
        %v1192 = vunpack.c.l.b16 %v1136
        %v1193 = vunpack.c.l.b16 %v1137
        %v1194 = vunpack.c.l.b16 %v1138
        %v1195 = vunpack.c.l.b16 %v1139
        %v1196 = vunpack.c.l.b16 %v1140
        %v1197 = vunpack.c.l.b16 %v1141
        %v1198 = vunpack.c.l.b16 %v1142
        %v1199 = vunpack.c.l.b16 %v1143
        %v1200 = vunpack.c.l.b16 %v1144
        %v1201 = vunpack.c.l.b16 %v1145
        %v1202 = vunpack.c.l.b16 %v1146
        %v1203 = vunpack.c.l.b16 %v1147
        %v1204 = vunpack.c.l.b16 %v1148
        %v1205 = vpack.c.b16 %v1190, %v1189
        %v1206 = vpack.c.b16 %v1192, %v1191
        %v1207 = vpack.c.b16 %v1194, %v1193
        %v1208 = vpack.c.b16 %v1196, %v1195
        %v1209 = vpack.c.b16 %v1198, %v1197
        %v1210 = vpack.c.b16 %v1200, %v1199
        %v1211 = vpack.c.b16 %v1202, %v1201
        %v1212 = vpack.c.b16 %v1204, %v1203
        %1221 = vmatpush.bf16.msra.mxu0 %v1212
        %1222 = vmatpush.bf16.msra.mxu0 %v1211
        %1223 = vmatpush.bf16.msra.mxu0 %v1210
        %1224 = vmatpush.bf16.msra.mxu0 %v1209
        %1225 = vmatpush.bf16.msra.mxu0 %v1208
        %1226 = vmatpush.bf16.msra.mxu0 %v1207
        %1227 = vmatpush.bf16.msra.mxu0 %v1206
        %1228 = vmatpush.bf16.msra.mxu0 %v1205
        %1229 = vmatmul.bf16.gmra.mxu0 %v1165
        %v1230 = vpop.f32.mrf.mxu0
        %v1231 = vadd.f32 0.0, %v1230
        %v1232 = vpop.f32.mrf.mxu0
        %v1233 = vadd.f32 0.0, %v1232
        %1234 = vmatmul.bf16.gmra.mxu0 %v1166
        %v1235 = vpop.f32.mrf.mxu0
        %v1236 = vadd.f32 0.0, %v1235
        %v1237 = vpop.f32.mrf.mxu0
        %v1238 = vadd.f32 0.0, %v1237
        %1239 = vmatmul.bf16.gmra.mxu0 %v1167
        %v1240 = vpop.f32.mrf.mxu0
        %v1241 = vadd.f32 0.0, %v1240
        %v1242 = vpop.f32.mrf.mxu0
        %v1243 = vadd.f32 0.0, %v1242
        %1244 = vmatmul.bf16.gmra.mxu0 %v1168
        %v1245 = vpop.f32.mrf.mxu0
        %v1246 = vadd.f32 0.0, %v1245
        %v1247 = vpop.f32.mrf.mxu0
        %v1248 = vadd.f32 0.0, %v1247
        %1249 = vdwg.mxu0
        %v1250 = vld [vmem:[#allocation10] sm:$0xf]
        %v1251 = vld [vmem:[#allocation10 + $0x4] sm:$0xf]
        %v1252 = vld [vmem:[#allocation10 + $0x8] sm:$0xf]
        %v1253 = vld [vmem:[#allocation10 + $0xc] sm:$0xf]
        %v1254 = vld [vmem:[#allocation10 + $0x10] sm:$0xf]
        %v1255 = vld [vmem:[#allocation10 + $0x14] sm:$0xf]
        %v1256 = vld [vmem:[#allocation10 + $0x18] sm:$0xf]
        %v1257 = vld [vmem:[#allocation10 + $0x1c] sm:$0xf]
        %v1258 = vld [vmem:[#allocation10 + $0x20] sm:$0xf]
        %v1259 = vld [vmem:[#allocation10 + $0x24] sm:$0xf]
        %v1260 = vld [vmem:[#allocation10 + $0x28] sm:$0xf]
        %v1261 = vld [vmem:[#allocation10 + $0x2c] sm:$0xf]
        %v1262 = vld [vmem:[#allocation10 + $0x30] sm:$0xf]
        %v1263 = vld [vmem:[#allocation10 + $0x34] sm:$0xf]
        %v1264 = vld [vmem:[#allocation10 + $0x38] sm:$0xf]
        %v1265 = vld [vmem:[#allocation10 + $0x3c] sm:$0xf]
        %v1270 = vunpack.c.l.b16 %v1129
        %v1271 = vunpack.c.l.b16 %v1130
        %v1272 = vunpack.c.l.b16 %v1131
        %v1273 = vunpack.c.l.b16 %v1132
        %vm1274 = vcmask 1041409
        %v1275 = vsel %vm1274, %v1271, %v1270
        %vm1276 = vcmask 1042434
        %v1277 = vsel %vm1276, %v1272, %v1275
        %vm1278 = vcmask 1043459
        %v1279 = vsel %vm1278, %v1273, %v1277
        %v1280 = vpack.c.b16 %v1279, %v1279
        %v1298 = vunpack.c.l.b16 %v1250
        %v1299 = vunpack.c.l.b16 %v1251
        %v1300 = vunpack.c.l.b16 %v1252
        %v1301 = vunpack.c.l.b16 %v1253
        %v1302 = vunpack.c.l.b16 %v1254
        %v1303 = vunpack.c.l.b16 %v1255
        %v1304 = vunpack.c.l.b16 %v1256
        %v1305 = vunpack.c.l.b16 %v1257
        %v1306 = vunpack.c.l.b16 %v1258
        %v1307 = vunpack.c.l.b16 %v1259
        %v1308 = vunpack.c.l.b16 %v1260
        %v1309 = vunpack.c.l.b16 %v1261
        %v1310 = vunpack.c.l.b16 %v1262
        %v1311 = vunpack.c.l.b16 %v1263
        %v1312 = vunpack.c.l.b16 %v1264
        %v1313 = vunpack.c.l.b16 %v1265
        %v1314 = vpack.c.b16 %v1299, %v1298
        %v1315 = vpack.c.b16 %v1301, %v1300
        %v1316 = vpack.c.b16 %v1303, %v1302
        %v1317 = vpack.c.b16 %v1305, %v1304
        %v1318 = vpack.c.b16 %v1307, %v1306
        %v1319 = vpack.c.b16 %v1309, %v1308
        %v1320 = vpack.c.b16 %v1311, %v1310
        %v1321 = vpack.c.b16 %v1313, %v1312
        %1330 = vmatpush.bf16.msra.mxu0 %v1321
        %1331 = vmatpush.bf16.msra.mxu0 %v1320
        %1332 = vmatpush.bf16.msra.mxu0 %v1319
        %1333 = vmatpush.bf16.msra.mxu0 %v1318
        %1334 = vmatpush.bf16.msra.mxu0 %v1317
        %1335 = vmatpush.bf16.msra.mxu0 %v1316
        %1336 = vmatpush.bf16.msra.mxu0 %v1315
        %1337 = vmatpush.bf16.msra.mxu0 %v1314
        %1338 = vmatmul.bf16.gmra.mxu0 %v1280
        %v1339 = vpop.f32.mrf.mxu0
        %v1340 = vadd.f32 0.0, %v1339
        %v1341 = vpop.f32.mrf.mxu0
        %1342 = vdwg.mxu0
        %v1344 = vrot.slane %v1340, 1
        %v1345 = vrot.slane %v1340, 2
        %v1346 = vrot.slane %v1340, 3
        %v1347 = vperm.slane %v1340, 0
        %v1348 = vperm.slane %v1344, 0
        %v1349 = vperm.slane %v1345, 0
        %v1350 = vperm.slane %v1346, 0
        %v1355 = vadd.f32 %v1231, %v1347
        %v1356 = vadd.f32 %v1233, %v1347
        %v1357 = vadd.f32 %v1236, %v1348
        %v1358 = vadd.f32 %v1238, %v1348
        %v1359 = vadd.f32 %v1241, %v1349
        %v1360 = vadd.f32 %v1243, %v1349
        %v1361 = vadd.f32 %v1246, %v1350
        %v1362 = vadd.f32 %v1248, %v1350
        %v1363 = vpack.c.bf16 %v1356, %v1355
        %v1364 = vpack.c.bf16 %v1358, %v1357
        %v1365 = vpack.c.bf16 %v1360, %v1359
        %v1366 = vpack.c.bf16 %v1362, %v1361
        %v1367 = vld [vmem:[%s6] sm:$0x1]
        %v1369 = vperm.slane %v1367, 0
        %1371 = vmatpush.bf16.msra.mxu0 0
        %1372 = vmatpush.bf16.msra.mxu0 0
        %1373 = vmatpush.bf16.msra.mxu0 0
        %1374 = vmatpush.bf16.msra.mxu0 0
        %1375 = vmatpush.bf16.msra.mxu0 %v1366
        %1376 = vmatpush.bf16.msra.mxu0 %v1365
        %1377 = vmatpush.bf16.msra.mxu0 %v1364
        %1378 = vmatpush.bf16.msra.mxu0 %v1363
        %1379 = vmatmul.bf16.gmra.mxu0 %v1037
        %v1380 = vpop.f32.mrf.mxu0
        %v1381 = vadd.f32 %v1369, %v1380
        %v1382 = vpop.f32.mrf.mxu0
        %v1383 = vadd.f32 %v1369, %v1382
        %1384 = vmatmul.bf16.gmra.mxu0 %v1040
        %v1385 = vpop.f32.mrf.mxu0
        %v1386 = vadd.f32 %v1369, %v1385
        %v1387 = vpop.f32.mrf.mxu0
        %v1388 = vadd.f32 %v1369, %v1387
        %1389 = vmatmul.bf16.gmra.mxu0 %v1043
        %v1390 = vpop.f32.mrf.mxu0
        %v1391 = vadd.f32 %v1369, %v1390
        %v1392 = vpop.f32.mrf.mxu0
        %v1393 = vadd.f32 %v1369, %v1392
        %1394 = vmatmul.bf16.gmra.mxu0 %v1046
        %v1395 = vpop.f32.mrf.mxu0
        %v1396 = vadd.f32 %v1369, %v1395
        %v1397 = vpop.f32.mrf.mxu0
        %v1398 = vadd.f32 %v1369, %v1397
        %1399 = vdwg.mxu0
        %v1400 = vmax.f32 %v1381, 0.0
        %v1401 = vmax.f32 %v1383, 0.0
        %v1402 = vmax.f32 %v1386, 0.0
        %v1403 = vmax.f32 %v1388, 0.0
        %v1404 = vmax.f32 %v1391, 0.0
        %v1405 = vmax.f32 %v1393, 0.0
        %v1406 = vmax.f32 %v1396, 0.0
        %v1407 = vmax.f32 %v1398, 0.0
        %v1408 = vpack.c.bf16 %v1400, %v1400
        %v1409 = vpack.c.bf16 %v1401, %v1401
        %v1410 = vpack.c.bf16 %v1402, %v1402
        %v1411 = vpack.c.bf16 %v1403, %v1403
        %v1412 = vpack.c.bf16 %v1404, %v1404
        %v1413 = vpack.c.bf16 %v1405, %v1405
        %v1414 = vpack.c.bf16 %v1406, %v1406
        %v1415 = vpack.c.bf16 %v1407, %v1407
        %v1416 = vunpack.c.l.bf16 %v1408
        %v1417 = vunpack.c.l.bf16 %v1409
        %v1418 = vunpack.c.l.bf16 %v1410
        %v1419 = vunpack.c.l.bf16 %v1411
        %v1420 = vunpack.c.l.bf16 %v1412
        %v1421 = vunpack.c.l.bf16 %v1413
        %v1422 = vunpack.c.l.bf16 %v1414
        %v1423 = vunpack.c.l.bf16 %v1415
        %v1424 = vmax.f32 %v1416, %v1417
        %v1425 = vrot.slane %v1424, 4
        %v1426 = vmax.f32 %v1424, %v1425
        %v1427 = vrot.slane %v1426, 2
        %v1428 = vmax.f32 %v1426, %v1427
        %v1429 = vrot.slane %v1428, 1
        %v1430 = vmax.f32 %v1428, %v1429
        %v1431 = vmax.f32 %v1418, %v1419
        %v1432 = vrot.slane %v1431, 4
        %v1433 = vmax.f32 %v1431, %v1432
        %v1434 = vrot.slane %v1433, 2
        %v1435 = vmax.f32 %v1433, %v1434
        %v1436 = vrot.slane %v1435, 1
        %v1437 = vmax.f32 %v1435, %v1436
        %v1438 = vmax.f32 %v1420, %v1421
        %v1439 = vrot.slane %v1438, 4
        %v1440 = vmax.f32 %v1438, %v1439
        %v1441 = vrot.slane %v1440, 2
        %v1442 = vmax.f32 %v1440, %v1441
        %v1443 = vrot.slane %v1442, 1
        %v1444 = vmax.f32 %v1442, %v1443
        %v1445 = vmax.f32 %v1422, %v1423
        %v1446 = vrot.slane %v1445, 4
        %v1447 = vmax.f32 %v1445, %v1446
        %v1448 = vrot.slane %v1447, 2
        %v1449 = vmax.f32 %v1447, %v1448
        %v1450 = vrot.slane %v1449, 1
        %v1451 = vmax.f32 %v1449, %v1450
        %v1452 = vpack.c.bf16 %v1430, %v1430
        %v1453 = vpack.c.bf16 %v1437, %v1437
        %v1454 = vpack.c.bf16 %v1444, %v1444
        %v1455 = vpack.c.bf16 %v1451, %v1451
        %v1456 = vld [vmem:[#allocation11] sm:$0xf]
        %v1457 = vld [vmem:[#allocation11 + $0x4] sm:$0xf]
        %v1458 = vld [vmem:[#allocation11 + $0x8] sm:$0xf]
        %v1459 = vld [vmem:[#allocation11 + $0xc] sm:$0xf]
        %v1460 = vld [vmem:[#allocation11 + $0x10] sm:$0xf]
        %v1461 = vld [vmem:[#allocation11 + $0x14] sm:$0xf]
        %v1462 = vld [vmem:[#allocation11 + $0x18] sm:$0xf]
        %v1463 = vld [vmem:[#allocation11 + $0x1c] sm:$0xf]
        %v1464 = vld [vmem:[#allocation11 + $0x20] sm:$0xf]
        %v1465 = vld [vmem:[#allocation11 + $0x24] sm:$0xf]
        %v1466 = vld [vmem:[#allocation11 + $0x28] sm:$0xf]
        %v1467 = vld [vmem:[#allocation11 + $0x2c] sm:$0xf]
        %v1468 = vld [vmem:[#allocation11 + $0x30] sm:$0xf]
        %v1469 = vld [vmem:[#allocation11 + $0x34] sm:$0xf]
        %v1470 = vld [vmem:[#allocation11 + $0x38] sm:$0xf]
        %v1471 = vld [vmem:[#allocation11 + $0x3c] sm:$0xf]
        %v1480 = vunpack.c.l.b16 %v1408
        %v1481 = vunpack.c.l.b16 %v1409
        %v1482 = vunpack.c.l.b16 %v1410
        %v1483 = vunpack.c.l.b16 %v1411
        %v1484 = vunpack.c.l.b16 %v1412
        %v1485 = vunpack.c.l.b16 %v1413
        %v1486 = vunpack.c.l.b16 %v1414
        %v1487 = vunpack.c.l.b16 %v1415
        %v1488 = vpack.c.b16 %v1481, %v1480
        %v1489 = vpack.c.b16 %v1483, %v1482
        %v1490 = vpack.c.b16 %v1485, %v1484
        %v1491 = vpack.c.b16 %v1487, %v1486
        %v1512 = vunpack.c.l.b16 %v1456
        %v1513 = vunpack.c.l.b16 %v1457
        %v1514 = vunpack.c.l.b16 %v1458
        %v1515 = vunpack.c.l.b16 %v1459
        %v1516 = vunpack.c.l.b16 %v1460
        %v1517 = vunpack.c.l.b16 %v1461
        %v1518 = vunpack.c.l.b16 %v1462
        %v1519 = vunpack.c.l.b16 %v1463
        %v1520 = vunpack.c.l.b16 %v1464
        %v1521 = vunpack.c.l.b16 %v1465
        %v1522 = vunpack.c.l.b16 %v1466
        %v1523 = vunpack.c.l.b16 %v1467
        %v1524 = vunpack.c.l.b16 %v1468
        %v1525 = vunpack.c.l.b16 %v1469
        %v1526 = vunpack.c.l.b16 %v1470
        %v1527 = vunpack.c.l.b16 %v1471
        %v1528 = vpack.c.b16 %v1513, %v1512
        %v1529 = vpack.c.b16 %v1515, %v1514
        %v1530 = vpack.c.b16 %v1517, %v1516
        %v1531 = vpack.c.b16 %v1519, %v1518
        %v1532 = vpack.c.b16 %v1521, %v1520
        %v1533 = vpack.c.b16 %v1523, %v1522
        %v1534 = vpack.c.b16 %v1525, %v1524
        %v1535 = vpack.c.b16 %v1527, %v1526
        %1544 = vmatpush.bf16.msra.mxu0 %v1535
        %1545 = vmatpush.bf16.msra.mxu0 %v1534
        %1546 = vmatpush.bf16.msra.mxu0 %v1533
        %1547 = vmatpush.bf16.msra.mxu0 %v1532
        %1548 = vmatpush.bf16.msra.mxu0 %v1531
        %1549 = vmatpush.bf16.msra.mxu0 %v1530
        %1550 = vmatpush.bf16.msra.mxu0 %v1529
        %1551 = vmatpush.bf16.msra.mxu0 %v1528
        %1552 = vmatmul.bf16.gmra.mxu0 %v1488
        %v1553 = vpop.f32.mrf.mxu0
        %v1554 = vadd.f32 0.0, %v1553
        %v1555 = vpop.f32.mrf.mxu0
        %v1556 = vadd.f32 0.0, %v1555
        %1557 = vmatmul.bf16.gmra.mxu0 %v1489
        %v1558 = vpop.f32.mrf.mxu0
        %v1559 = vadd.f32 0.0, %v1558
        %v1560 = vpop.f32.mrf.mxu0
        %v1561 = vadd.f32 0.0, %v1560
        %1562 = vmatmul.bf16.gmra.mxu0 %v1490
        %v1563 = vpop.f32.mrf.mxu0
        %v1564 = vadd.f32 0.0, %v1563
        %v1565 = vpop.f32.mrf.mxu0
        %v1566 = vadd.f32 0.0, %v1565
        %1567 = vmatmul.bf16.gmra.mxu0 %v1491
        %v1568 = vpop.f32.mrf.mxu0
        %v1569 = vadd.f32 0.0, %v1568
        %v1570 = vpop.f32.mrf.mxu0
        %v1571 = vadd.f32 0.0, %v1570
        %1572 = vdwg.mxu0
        %v1573 = vld [vmem:[#allocation13] sm:$0xf]
        %v1574 = vld [vmem:[#allocation13 + $0x4] sm:$0xf]
        %v1575 = vld [vmem:[#allocation13 + $0x8] sm:$0xf]
        %v1576 = vld [vmem:[#allocation13 + $0xc] sm:$0xf]
        %v1577 = vld [vmem:[#allocation13 + $0x10] sm:$0xf]
        %v1578 = vld [vmem:[#allocation13 + $0x14] sm:$0xf]
        %v1579 = vld [vmem:[#allocation13 + $0x18] sm:$0xf]
        %v1580 = vld [vmem:[#allocation13 + $0x1c] sm:$0xf]
        %v1581 = vld [vmem:[#allocation13 + $0x20] sm:$0xf]
        %v1582 = vld [vmem:[#allocation13 + $0x24] sm:$0xf]
        %v1583 = vld [vmem:[#allocation13 + $0x28] sm:$0xf]
        %v1584 = vld [vmem:[#allocation13 + $0x2c] sm:$0xf]
        %v1585 = vld [vmem:[#allocation13 + $0x30] sm:$0xf]
        %v1586 = vld [vmem:[#allocation13 + $0x34] sm:$0xf]
        %v1587 = vld [vmem:[#allocation13 + $0x38] sm:$0xf]
        %v1588 = vld [vmem:[#allocation13 + $0x3c] sm:$0xf]
        %v1593 = vunpack.c.l.b16 %v1452
        %v1594 = vunpack.c.l.b16 %v1453
        %v1595 = vunpack.c.l.b16 %v1454
        %v1596 = vunpack.c.l.b16 %v1455
        %v1597 = vsel %vm1274, %v1594, %v1593
        %v1598 = vsel %vm1276, %v1595, %v1597
        %v1599 = vsel %vm1278, %v1596, %v1598
        %v1600 = vpack.c.b16 %v1599, %v1599
        %v1618 = vunpack.c.l.b16 %v1573
        %v1619 = vunpack.c.l.b16 %v1574
        %v1620 = vunpack.c.l.b16 %v1575
        %v1621 = vunpack.c.l.b16 %v1576
        %v1622 = vunpack.c.l.b16 %v1577
        %v1623 = vunpack.c.l.b16 %v1578
        %v1624 = vunpack.c.l.b16 %v1579
        %v1625 = vunpack.c.l.b16 %v1580
        %v1626 = vunpack.c.l.b16 %v1581
        %v1627 = vunpack.c.l.b16 %v1582
        %v1628 = vunpack.c.l.b16 %v1583
        %v1629 = vunpack.c.l.b16 %v1584
        %v1630 = vunpack.c.l.b16 %v1585
        %v1631 = vunpack.c.l.b16 %v1586
        %v1632 = vunpack.c.l.b16 %v1587
        %v1633 = vunpack.c.l.b16 %v1588
        %v1634 = vpack.c.b16 %v1619, %v1618
        %v1635 = vpack.c.b16 %v1621, %v1620
        %v1636 = vpack.c.b16 %v1623, %v1622
        %v1637 = vpack.c.b16 %v1625, %v1624
        %v1638 = vpack.c.b16 %v1627, %v1626
        %v1639 = vpack.c.b16 %v1629, %v1628
        %v1640 = vpack.c.b16 %v1631, %v1630
        %v1641 = vpack.c.b16 %v1633, %v1632
        %1650 = vmatpush.bf16.msra.mxu0 %v1641
        %1651 = vmatpush.bf16.msra.mxu0 %v1640
        %1652 = vmatpush.bf16.msra.mxu0 %v1639
        %1653 = vmatpush.bf16.msra.mxu0 %v1638
        %1654 = vmatpush.bf16.msra.mxu0 %v1637
        %1655 = vmatpush.bf16.msra.mxu0 %v1636
        %1656 = vmatpush.bf16.msra.mxu0 %v1635
        %1657 = vmatpush.bf16.msra.mxu0 %v1634
        %1658 = vmatmul.bf16.gmra.mxu0 %v1600
        %v1659 = vpop.f32.mrf.mxu0
        %v1660 = vadd.f32 0.0, %v1659
        %v1661 = vpop.f32.mrf.mxu0
        %1662 = vdwg.mxu0
        %v1664 = vrot.slane %v1660, 1
        %v1665 = vrot.slane %v1660, 2
        %v1666 = vrot.slane %v1660, 3
        %v1667 = vperm.slane %v1660, 0
        %v1668 = vperm.slane %v1664, 0
        %v1669 = vperm.slane %v1665, 0
        %v1670 = vperm.slane %v1666, 0
        %v1675 = vadd.f32 %v1554, %v1667
        %v1676 = vadd.f32 %v1556, %v1667
        %v1677 = vadd.f32 %v1559, %v1668
        %v1678 = vadd.f32 %v1561, %v1668
        %v1679 = vadd.f32 %v1564, %v1669
        %v1680 = vadd.f32 %v1566, %v1669
        %v1681 = vadd.f32 %v1569, %v1670
        %v1682 = vadd.f32 %v1571, %v1670
        %v1683 = vpack.c.bf16 %v1676, %v1675
        %v1684 = vpack.c.bf16 %v1678, %v1677
        %v1685 = vpack.c.bf16 %v1680, %v1679
        %v1686 = vpack.c.bf16 %v1682, %v1681
        %v1687 = vld [vmem:[%s9] sm:$0x1]
        %v1689 = vperm.slane %v1687, 0
        %1691 = vmatpush.bf16.msra.mxu0 0
        %1692 = vmatpush.bf16.msra.mxu0 0
        %1693 = vmatpush.bf16.msra.mxu0 0
        %1694 = vmatpush.bf16.msra.mxu0 0
        %1695 = vmatpush.bf16.msra.mxu0 %v1686
        %1696 = vmatpush.bf16.msra.mxu0 %v1685
        %1697 = vmatpush.bf16.msra.mxu0 %v1684
        %1698 = vmatpush.bf16.msra.mxu0 %v1683
        %1699 = vmatmul.bf16.gmra.mxu0 %v1037
        %v1700 = vpop.f32.mrf.mxu0
        %v1701 = vadd.f32 %v1689, %v1700
        %v1702 = vpop.f32.mrf.mxu0
        %v1703 = vadd.f32 %v1689, %v1702
        %1704 = vmatmul.bf16.gmra.mxu0 %v1040
        %v1705 = vpop.f32.mrf.mxu0
        %v1706 = vadd.f32 %v1689, %v1705
        %v1707 = vpop.f32.mrf.mxu0
        %v1708 = vadd.f32 %v1689, %v1707
        %1709 = vmatmul.bf16.gmra.mxu0 %v1043
        %v1710 = vpop.f32.mrf.mxu0
        %v1711 = vadd.f32 %v1689, %v1710
        %v1712 = vpop.f32.mrf.mxu0
        %v1713 = vadd.f32 %v1689, %v1712
        %1714 = vmatmul.bf16.gmra.mxu0 %v1046
        %v1715 = vpop.f32.mrf.mxu0
        %v1716 = vadd.f32 %v1689, %v1715
        %v1717 = vpop.f32.mrf.mxu0
        %v1718 = vadd.f32 %v1689, %v1717
        %1719 = vdwg.mxu0
        %v1720 = vmax.f32 %v1701, 0.0
        %v1721 = vmax.f32 %v1703, 0.0
        %v1722 = vmax.f32 %v1706, 0.0
        %v1723 = vmax.f32 %v1708, 0.0
        %v1724 = vmax.f32 %v1711, 0.0
        %v1725 = vmax.f32 %v1713, 0.0
        %v1726 = vmax.f32 %v1716, 0.0
        %v1727 = vmax.f32 %v1718, 0.0
        %v1728 = vpack.c.bf16 %v1720, %v1720
        %v1729 = vpack.c.bf16 %v1721, %v1721
        %v1730 = vpack.c.bf16 %v1722, %v1722
        %v1731 = vpack.c.bf16 %v1723, %v1723
        %v1732 = vpack.c.bf16 %v1724, %v1724
        %v1733 = vpack.c.bf16 %v1725, %v1725
        %v1734 = vpack.c.bf16 %v1726, %v1726
        %v1735 = vpack.c.bf16 %v1727, %v1727
        %v1736 = vunpack.c.l.bf16 %v1728
        %v1737 = vunpack.c.l.bf16 %v1729
        %v1738 = vunpack.c.l.bf16 %v1730
        %v1739 = vunpack.c.l.bf16 %v1731
        %v1740 = vunpack.c.l.bf16 %v1732
        %v1741 = vunpack.c.l.bf16 %v1733
        %v1742 = vunpack.c.l.bf16 %v1734
        %v1743 = vunpack.c.l.bf16 %v1735
        %v1744 = vmax.f32 %v1736, %v1737
        %v1745 = vrot.slane %v1744, 4
        %v1746 = vmax.f32 %v1744, %v1745
        %v1747 = vrot.slane %v1746, 2
        %v1748 = vmax.f32 %v1746, %v1747
        %v1749 = vrot.slane %v1748, 1
        %v1750 = vmax.f32 %v1748, %v1749
        %v1751 = vmax.f32 %v1738, %v1739
        %v1752 = vrot.slane %v1751, 4
        %v1753 = vmax.f32 %v1751, %v1752
        %v1754 = vrot.slane %v1753, 2
        %v1755 = vmax.f32 %v1753, %v1754
        %v1756 = vrot.slane %v1755, 1
        %v1757 = vmax.f32 %v1755, %v1756
        %v1758 = vmax.f32 %v1740, %v1741
        %v1759 = vrot.slane %v1758, 4
        %v1760 = vmax.f32 %v1758, %v1759
        %v1761 = vrot.slane %v1760, 2
        %v1762 = vmax.f32 %v1760, %v1761
        %v1763 = vrot.slane %v1762, 1
        %v1764 = vmax.f32 %v1762, %v1763
        %v1765 = vmax.f32 %v1742, %v1743
        %v1766 = vrot.slane %v1765, 4
        %v1767 = vmax.f32 %v1765, %v1766
        %v1768 = vrot.slane %v1767, 2
        %v1769 = vmax.f32 %v1767, %v1768
        %v1770 = vrot.slane %v1769, 1
        %v1771 = vmax.f32 %v1769, %v1770
        %v1772 = vpack.c.bf16 %v1750, %v1750
        %v1773 = vpack.c.bf16 %v1757, %v1757
        %v1774 = vpack.c.bf16 %v1764, %v1764
        %v1775 = vpack.c.bf16 %v1771, %v1771
        %v1776 = vld [vmem:[#allocation14] sm:$0xff]
        %v1777 = vld [vmem:[#allocation14 + $0x8] sm:$0xff]
        %v1778 = vld [vmem:[#allocation14 + $0x10] sm:$0xff]
        %v1779 = vld [vmem:[#allocation14 + $0x18] sm:$0xff]
        %v1780 = vld [vmem:[#allocation14 + $0x20] sm:$0xff]
        %v1781 = vld [vmem:[#allocation14 + $0x28] sm:$0xff]
        %v1782 = vld [vmem:[#allocation14 + $0x30] sm:$0xff]
        %v1783 = vld [vmem:[#allocation14 + $0x38] sm:$0xff]
        %v1784 = vld [vmem:[#allocation14 + $0x40] sm:$0xff]
        %v1785 = vld [vmem:[#allocation14 + $0x48] sm:$0xff]
        %v1786 = vld [vmem:[#allocation14 + $0x50] sm:$0xff]
        %v1787 = vld [vmem:[#allocation14 + $0x58] sm:$0xff]
        %v1788 = vld [vmem:[#allocation14 + $0x60] sm:$0xff]
        %v1789 = vld [vmem:[#allocation14 + $0x68] sm:$0xff]
        %v1790 = vld [vmem:[#allocation14 + $0x70] sm:$0xff]
        %v1791 = vld [vmem:[#allocation14 + $0x78] sm:$0xff]
        %v1800 = vunpack.c.l.b16 %v1728
        %v1801 = vunpack.c.l.b16 %v1729
        %v1802 = vunpack.c.l.b16 %v1730
        %v1803 = vunpack.c.l.b16 %v1731
        %v1804 = vunpack.c.l.b16 %v1732
        %v1805 = vunpack.c.l.b16 %v1733
        %v1806 = vunpack.c.l.b16 %v1734
        %v1807 = vunpack.c.l.b16 %v1735
        %v1808 = vpack.c.b16 %v1801, %v1800
        %v1809 = vpack.c.b16 %v1803, %v1802
        %v1810 = vpack.c.b16 %v1805, %v1804
        %v1811 = vpack.c.b16 %v1807, %v1806
        %v1832 = vunpack.c.l.b16 %v1776
        %v1833 = vunpack.c.h.b16 %v1776
        %v1834 = vunpack.c.l.b16 %v1777
        %v1835 = vunpack.c.h.b16 %v1777
        %v1836 = vunpack.c.l.b16 %v1778
        %v1837 = vunpack.c.h.b16 %v1778
        %v1838 = vunpack.c.l.b16 %v1779
        %v1839 = vunpack.c.h.b16 %v1779
        %v1840 = vunpack.c.l.b16 %v1780
        %v1841 = vunpack.c.h.b16 %v1780
        %v1842 = vunpack.c.l.b16 %v1781
        %v1843 = vunpack.c.h.b16 %v1781
        %v1844 = vunpack.c.l.b16 %v1782
        %v1845 = vunpack.c.h.b16 %v1782
        %v1846 = vunpack.c.l.b16 %v1783
        %v1847 = vunpack.c.h.b16 %v1783
        %v1848 = vunpack.c.l.b16 %v1784
        %v1849 = vunpack.c.h.b16 %v1784
        %v1850 = vunpack.c.l.b16 %v1785
        %v1851 = vunpack.c.h.b16 %v1785
        %v1852 = vunpack.c.l.b16 %v1786
        %v1853 = vunpack.c.h.b16 %v1786
        %v1854 = vunpack.c.l.b16 %v1787
        %v1855 = vunpack.c.h.b16 %v1787
        %v1856 = vunpack.c.l.b16 %v1788
        %v1857 = vunpack.c.h.b16 %v1788
        %v1858 = vunpack.c.l.b16 %v1789
        %v1859 = vunpack.c.h.b16 %v1789
        %v1860 = vunpack.c.l.b16 %v1790
        %v1861 = vunpack.c.h.b16 %v1790
        %v1862 = vunpack.c.l.b16 %v1791
        %v1863 = vunpack.c.h.b16 %v1791
        %v1864 = vpack.c.b16 %v1834, %v1832
        %v1865 = vpack.c.b16 %v1835, %v1833
        %v1866 = vpack.c.b16 %v1838, %v1836
        %v1867 = vpack.c.b16 %v1839, %v1837
        %v1868 = vpack.c.b16 %v1842, %v1840
        %v1869 = vpack.c.b16 %v1843, %v1841
        %v1870 = vpack.c.b16 %v1846, %v1844
        %v1871 = vpack.c.b16 %v1847, %v1845
        %v1872 = vpack.c.b16 %v1850, %v1848
        %v1873 = vpack.c.b16 %v1851, %v1849
        %v1874 = vpack.c.b16 %v1854, %v1852
        %v1875 = vpack.c.b16 %v1855, %v1853
        %v1876 = vpack.c.b16 %v1858, %v1856
        %v1877 = vpack.c.b16 %v1859, %v1857
        %v1878 = vpack.c.b16 %v1862, %v1860
        %v1879 = vpack.c.b16 %v1863, %v1861
        %1896 = vmatpush.bf16.msra.mxu0 %v1878
        %1897 = vmatpush.bf16.msra.mxu0 %v1876
        %1898 = vmatpush.bf16.msra.mxu0 %v1874
        %1899 = vmatpush.bf16.msra.mxu0 %v1872
        %1900 = vmatpush.bf16.msra.mxu0 %v1870
        %1901 = vmatpush.bf16.msra.mxu0 %v1868
        %1902 = vmatpush.bf16.msra.mxu0 %v1866
        %1903 = vmatpush.bf16.msra.mxu0 %v1864
        %1904 = vmatmul.bf16.gmra.mxu0 %v1808
        %v1905 = vpop.f32.mrf.mxu0
        %v1906 = vadd.f32 0.0, %v1905
        %v1907 = vpop.f32.mrf.mxu0
        %v1908 = vadd.f32 0.0, %v1907
        %1909 = vmatmul.bf16.gmra.mxu0 %v1809
        %v1910 = vpop.f32.mrf.mxu0
        %v1911 = vadd.f32 0.0, %v1910
        %v1912 = vpop.f32.mrf.mxu0
        %v1913 = vadd.f32 0.0, %v1912
        %1914 = vmatmul.bf16.gmra.mxu0 %v1810
        %v1915 = vpop.f32.mrf.mxu0
        %v1916 = vadd.f32 0.0, %v1915
        %v1917 = vpop.f32.mrf.mxu0
        %v1918 = vadd.f32 0.0, %v1917
        %1919 = vmatmul.bf16.gmra.mxu0 %v1811
        %v1920 = vpop.f32.mrf.mxu0
        %v1921 = vadd.f32 0.0, %v1920
        %v1922 = vpop.f32.mrf.mxu0
        %v1923 = vadd.f32 0.0, %v1922
        %1924 = vdwg.mxu0
        %1925 = vmatpush.bf16.msra.mxu0 %v1879
        %1926 = vmatpush.bf16.msra.mxu0 %v1877
        %1927 = vmatpush.bf16.msra.mxu0 %v1875
        %1928 = vmatpush.bf16.msra.mxu0 %v1873
        %1929 = vmatpush.bf16.msra.mxu0 %v1871
        %1930 = vmatpush.bf16.msra.mxu0 %v1869
        %1931 = vmatpush.bf16.msra.mxu0 %v1867
        %1932 = vmatpush.bf16.msra.mxu0 %v1865
        %1933 = vmatmul.bf16.gmra.mxu0 %v1808
        %v1934 = vpop.f32.mrf.mxu0
        %v1935 = vadd.f32 0.0, %v1934
        %v1936 = vpop.f32.mrf.mxu0
        %v1937 = vadd.f32 0.0, %v1936
        %1938 = vmatmul.bf16.gmra.mxu0 %v1809
        %v1939 = vpop.f32.mrf.mxu0
        %v1940 = vadd.f32 0.0, %v1939
        %v1941 = vpop.f32.mrf.mxu0
        %v1942 = vadd.f32 0.0, %v1941
        %1943 = vmatmul.bf16.gmra.mxu0 %v1810
        %v1944 = vpop.f32.mrf.mxu0
        %v1945 = vadd.f32 0.0, %v1944
        %v1946 = vpop.f32.mrf.mxu0
        %v1947 = vadd.f32 0.0, %v1946
        %1948 = vmatmul.bf16.gmra.mxu0 %v1811
        %v1949 = vpop.f32.mrf.mxu0
        %v1950 = vadd.f32 0.0, %v1949
        %v1951 = vpop.f32.mrf.mxu0
        %v1952 = vadd.f32 0.0, %v1951
        %1953 = vdwg.mxu0
        %v1954 = vld [vmem:[#allocation16] sm:$0xff]
        %v1955 = vld [vmem:[#allocation16 + $0x8] sm:$0xff]
        %v1956 = vld [vmem:[#allocation16 + $0x10] sm:$0xff]
        %v1957 = vld [vmem:[#allocation16 + $0x18] sm:$0xff]
        %v1958 = vld [vmem:[#allocation16 + $0x20] sm:$0xff]
        %v1959 = vld [vmem:[#allocation16 + $0x28] sm:$0xff]
        %v1960 = vld [vmem:[#allocation16 + $0x30] sm:$0xff]
        %v1961 = vld [vmem:[#allocation16 + $0x38] sm:$0xff]
        %v1962 = vld [vmem:[#allocation16 + $0x40] sm:$0xff]
        %v1963 = vld [vmem:[#allocation16 + $0x48] sm:$0xff]
        %v1964 = vld [vmem:[#allocation16 + $0x50] sm:$0xff]
        %v1965 = vld [vmem:[#allocation16 + $0x58] sm:$0xff]
        %v1966 = vld [vmem:[#allocation16 + $0x60] sm:$0xff]
        %v1967 = vld [vmem:[#allocation16 + $0x68] sm:$0xff]
        %v1968 = vld [vmem:[#allocation16 + $0x70] sm:$0xff]
        %v1969 = vld [vmem:[#allocation16 + $0x78] sm:$0xff]
        %v1974 = vunpack.c.l.b16 %v1772
        %v1975 = vunpack.c.l.b16 %v1773
        %v1976 = vunpack.c.l.b16 %v1774
        %v1977 = vunpack.c.l.b16 %v1775
        %v1978 = vsel %vm1274, %v1975, %v1974
        %v1979 = vsel %vm1276, %v1976, %v1978
        %v1980 = vsel %vm1278, %v1977, %v1979
        %v1981 = vpack.c.b16 %v1980, %v1980
        %v1999 = vunpack.c.l.b16 %v1954
        %v2000 = vunpack.c.h.b16 %v1954
        %v2001 = vunpack.c.l.b16 %v1955
        %v2002 = vunpack.c.h.b16 %v1955
        %v2003 = vunpack.c.l.b16 %v1956
        %v2004 = vunpack.c.h.b16 %v1956
        %v2005 = vunpack.c.l.b16 %v1957
        %v2006 = vunpack.c.h.b16 %v1957
        %v2007 = vunpack.c.l.b16 %v1958
        %v2008 = vunpack.c.h.b16 %v1958
        %v2009 = vunpack.c.l.b16 %v1959
        %v2010 = vunpack.c.h.b16 %v1959
        %v2011 = vunpack.c.l.b16 %v1960
        %v2012 = vunpack.c.h.b16 %v1960
        %v2013 = vunpack.c.l.b16 %v1961
        %v2014 = vunpack.c.h.b16 %v1961
        %v2015 = vunpack.c.l.b16 %v1962
        %v2016 = vunpack.c.h.b16 %v1962
        %v2017 = vunpack.c.l.b16 %v1963
        %v2018 = vunpack.c.h.b16 %v1963
        %v2019 = vunpack.c.l.b16 %v1964
        %v2020 = vunpack.c.h.b16 %v1964
        %v2021 = vunpack.c.l.b16 %v1965
        %v2022 = vunpack.c.h.b16 %v1965
        %v2023 = vunpack.c.l.b16 %v1966
        %v2024 = vunpack.c.h.b16 %v1966
        %v2025 = vunpack.c.l.b16 %v1967
        %v2026 = vunpack.c.h.b16 %v1967
        %v2027 = vunpack.c.l.b16 %v1968
        %v2028 = vunpack.c.h.b16 %v1968
        %v2029 = vunpack.c.l.b16 %v1969
        %v2030 = vunpack.c.h.b16 %v1969
        %v2031 = vpack.c.b16 %v2001, %v1999
        %v2032 = vpack.c.b16 %v2002, %v2000
        %v2033 = vpack.c.b16 %v2005, %v2003
        %v2034 = vpack.c.b16 %v2006, %v2004
        %v2035 = vpack.c.b16 %v2009, %v2007
        %v2036 = vpack.c.b16 %v2010, %v2008
        %v2037 = vpack.c.b16 %v2013, %v2011
        %v2038 = vpack.c.b16 %v2014, %v2012
        %v2039 = vpack.c.b16 %v2017, %v2015
        %v2040 = vpack.c.b16 %v2018, %v2016
        %v2041 = vpack.c.b16 %v2021, %v2019
        %v2042 = vpack.c.b16 %v2022, %v2020
        %v2043 = vpack.c.b16 %v2025, %v2023
        %v2044 = vpack.c.b16 %v2026, %v2024
        %v2045 = vpack.c.b16 %v2029, %v2027
        %v2046 = vpack.c.b16 %v2030, %v2028
        %2063 = vmatpush.bf16.msra.mxu0 %v2045
        %2064 = vmatpush.bf16.msra.mxu0 %v2043
        %2065 = vmatpush.bf16.msra.mxu0 %v2041
        %2066 = vmatpush.bf16.msra.mxu0 %v2039
        %2067 = vmatpush.bf16.msra.mxu0 %v2037
        %2068 = vmatpush.bf16.msra.mxu0 %v2035
        %2069 = vmatpush.bf16.msra.mxu0 %v2033
        %2070 = vmatpush.bf16.msra.mxu0 %v2031
        %2071 = vmatmul.bf16.gmra.mxu0 %v1981
        %v2072 = vpop.f32.mrf.mxu0
        %v2073 = vadd.f32 0.0, %v2072
        %v2074 = vpop.f32.mrf.mxu0
        %2075 = vdwg.mxu0
        %2076 = vmatpush.bf16.msra.mxu0 %v2046
        %2077 = vmatpush.bf16.msra.mxu0 %v2044
        %2078 = vmatpush.bf16.msra.mxu0 %v2042
        %2079 = vmatpush.bf16.msra.mxu0 %v2040
        %2080 = vmatpush.bf16.msra.mxu0 %v2038
        %2081 = vmatpush.bf16.msra.mxu0 %v2036
        %2082 = vmatpush.bf16.msra.mxu0 %v2034
        %2083 = vmatpush.bf16.msra.mxu0 %v2032
        %2084 = vmatmul.bf16.gmra.mxu0 %v1981
        %v2085 = vpop.f32.mrf.mxu0
        %v2086 = vadd.f32 0.0, %v2085
        %v2087 = vpop.f32.mrf.mxu0
        %2088 = vdwg.mxu0
        %v2091 = vrot.slane %v2086, 7
        %vm2092 = vcmask 1040384
        %v2093 = vsel %vm2092, %v2073, %v2091
        %v2094 = vsel %vm1274, %v2073, %v2091
        %v2095 = vrot.slane %v2094, 1
        %v2096 = vsel %vm1276, %v2073, %v2091
        %v2097 = vrot.slane %v2096, 2
        %v2098 = vsel %vm1278, %v2073, %v2091
        %v2099 = vrot.slane %v2098, 3
        %v2100 = vperm.slane %v2093, 0
        %v2101 = vperm.slane %v2093, 1
        %v2102 = vperm.slane %v2095, 0
        %v2103 = vperm.slane %v2095, 1
        %v2104 = vperm.slane %v2097, 0
        %v2105 = vperm.slane %v2097, 1
        %v2106 = vperm.slane %v2099, 0
        %v2107 = vperm.slane %v2099, 1
        %v2116 = vadd.f32 %v1906, %v2100
        %v2117 = vadd.f32 %v1935, %v2101
        %v2118 = vadd.f32 %v1908, %v2100
        %v2119 = vadd.f32 %v1937, %v2101
        %v2120 = vadd.f32 %v1911, %v2102
        %v2121 = vadd.f32 %v1940, %v2103
        %v2122 = vadd.f32 %v1913, %v2102
        %v2123 = vadd.f32 %v1942, %v2103
        %v2124 = vadd.f32 %v1916, %v2104
        %v2125 = vadd.f32 %v1945, %v2105
        %v2126 = vadd.f32 %v1918, %v2104
        %v2127 = vadd.f32 %v1947, %v2105
        %v2128 = vadd.f32 %v1921, %v2106
        %v2129 = vadd.f32 %v1950, %v2107
        %v2130 = vadd.f32 %v1923, %v2106
        %v2131 = vadd.f32 %v1952, %v2107
        %v2132 = vpack.c.bf16 %v2118, %v2116
        %v2133 = vpack.c.bf16 %v2119, %v2117
        %v2134 = vpack.c.bf16 %v2122, %v2120
        %v2135 = vpack.c.bf16 %v2123, %v2121
        %v2136 = vpack.c.bf16 %v2126, %v2124
        %v2137 = vpack.c.bf16 %v2127, %v2125
        %v2138 = vpack.c.bf16 %v2130, %v2128
        %v2139 = vpack.c.bf16 %v2131, %v2129
        %v2140 = vld [vmem:[%s12] sm:$0x3]
        %v2142 = vperm.slane %v2140, 0
        %v2143 = vperm.slane %v2140, 1
        %2146 = vmatpush.bf16.msra.mxu0 0
        %2147 = vmatpush.bf16.msra.mxu0 0
        %2148 = vmatpush.bf16.msra.mxu0 0
        %2149 = vmatpush.bf16.msra.mxu0 0
        %2150 = vmatpush.bf16.msra.mxu0 %v2138
        %2151 = vmatpush.bf16.msra.mxu0 %v2136
        %2152 = vmatpush.bf16.msra.mxu0 %v2134
        %2153 = vmatpush.bf16.msra.mxu0 %v2132
        %2154 = vmatmul.bf16.gmra.mxu0 %v1037
        %v2155 = vpop.f32.mrf.mxu0
        %v2156 = vadd.f32 %v2142, %v2155
        %v2157 = vpop.f32.mrf.mxu0
        %v2158 = vadd.f32 %v2142, %v2157
        %2159 = vmatmul.bf16.gmra.mxu0 %v1040
        %v2160 = vpop.f32.mrf.mxu0
        %v2161 = vadd.f32 %v2142, %v2160
        %v2162 = vpop.f32.mrf.mxu0
        %v2163 = vadd.f32 %v2142, %v2162
        %2164 = vmatmul.bf16.gmra.mxu0 %v1043
        %v2165 = vpop.f32.mrf.mxu0
        %v2166 = vadd.f32 %v2142, %v2165
        %v2167 = vpop.f32.mrf.mxu0
        %v2168 = vadd.f32 %v2142, %v2167
        %2169 = vmatmul.bf16.gmra.mxu0 %v1046
        %v2170 = vpop.f32.mrf.mxu0
        %v2171 = vadd.f32 %v2142, %v2170
        %v2172 = vpop.f32.mrf.mxu0
        %v2173 = vadd.f32 %v2142, %v2172
        %2174 = vdwg.mxu0
        %2175 = vmatpush.bf16.msra.mxu0 0
        %2176 = vmatpush.bf16.msra.mxu0 0
        %2177 = vmatpush.bf16.msra.mxu0 0
        %2178 = vmatpush.bf16.msra.mxu0 0
        %2179 = vmatpush.bf16.msra.mxu0 %v2139
        %2180 = vmatpush.bf16.msra.mxu0 %v2137
        %2181 = vmatpush.bf16.msra.mxu0 %v2135
        %2182 = vmatpush.bf16.msra.mxu0 %v2133
        %2183 = vmatmul.bf16.gmra.mxu0 %v1037
        %v2184 = vpop.f32.mrf.mxu0
        %v2185 = vadd.f32 %v2143, %v2184
        %v2186 = vpop.f32.mrf.mxu0
        %v2187 = vadd.f32 %v2143, %v2186
        %2188 = vmatmul.bf16.gmra.mxu0 %v1040
        %v2189 = vpop.f32.mrf.mxu0
        %v2190 = vadd.f32 %v2143, %v2189
        %v2191 = vpop.f32.mrf.mxu0
        %v2192 = vadd.f32 %v2143, %v2191
        %2193 = vmatmul.bf16.gmra.mxu0 %v1043
        %v2194 = vpop.f32.mrf.mxu0
        %v2195 = vadd.f32 %v2143, %v2194
        %v2196 = vpop.f32.mrf.mxu0
        %v2197 = vadd.f32 %v2143, %v2196
        %2198 = vmatmul.bf16.gmra.mxu0 %v1046
        %v2199 = vpop.f32.mrf.mxu0
        %v2200 = vadd.f32 %v2143, %v2199
        %v2201 = vpop.f32.mrf.mxu0
        %v2202 = vadd.f32 %v2143, %v2201
        %2203 = vdwg.mxu0
        %v2204 = vmax.f32 %v2156, 0.0
        %v2205 = vmax.f32 %v2185, 0.0
        %v2206 = vmax.f32 %v2158, 0.0
        %v2207 = vmax.f32 %v2187, 0.0
        %v2208 = vmax.f32 %v2161, 0.0
        %v2209 = vmax.f32 %v2190, 0.0
        %v2210 = vmax.f32 %v2163, 0.0
        %v2211 = vmax.f32 %v2192, 0.0
        %v2212 = vmax.f32 %v2166, 0.0
        %v2213 = vmax.f32 %v2195, 0.0
        %v2214 = vmax.f32 %v2168, 0.0
        %v2215 = vmax.f32 %v2197, 0.0
        %v2216 = vmax.f32 %v2171, 0.0
        %v2217 = vmax.f32 %v2200, 0.0
        %v2218 = vmax.f32 %v2173, 0.0
        %v2219 = vmax.f32 %v2202, 0.0
        %v2220 = vpack.c.bf16 %v2205, %v2204
        %v2221 = vpack.c.bf16 %v2207, %v2206
        %v2222 = vpack.c.bf16 %v2209, %v2208
        %v2223 = vpack.c.bf16 %v2211, %v2210
        %v2224 = vpack.c.bf16 %v2213, %v2212
        %v2225 = vpack.c.bf16 %v2215, %v2214
        %v2226 = vpack.c.bf16 %v2217, %v2216
        %v2227 = vpack.c.bf16 %v2219, %v2218
        %v2228 = vunpack.c.l.bf16 %v2220
        %v2229 = vunpack.c.h.bf16 %v2220
        %v2230 = vunpack.c.l.bf16 %v2221
        %v2231 = vunpack.c.h.bf16 %v2221
        %v2232 = vunpack.c.l.bf16 %v2222
        %v2233 = vunpack.c.h.bf16 %v2222
        %v2234 = vunpack.c.l.bf16 %v2223
        %v2235 = vunpack.c.h.bf16 %v2223
        %v2236 = vunpack.c.l.bf16 %v2224
        %v2237 = vunpack.c.h.bf16 %v2224
        %v2238 = vunpack.c.l.bf16 %v2225
        %v2239 = vunpack.c.h.bf16 %v2225
        %v2240 = vunpack.c.l.bf16 %v2226
        %v2241 = vunpack.c.h.bf16 %v2226
        %v2242 = vunpack.c.l.bf16 %v2227
        %v2243 = vunpack.c.h.bf16 %v2227
        %v2244 = vadd.f32 %v2228, %v2230
        %v2245 = vrot.slane %v2244, 4
        %v2246 = vadd.f32 %v2244, %v2245
        %v2247 = vrot.slane %v2246, 2
        %v2248 = vadd.f32 %v2246, %v2247
        %v2249 = vrot.slane %v2248, 1
        %v2250 = vadd.f32 %v2248, %v2249
        %v2251 = vadd.f32 %v2229, %v2231
        %v2252 = vrot.slane %v2251, 4
        %v2253 = vadd.f32 %v2251, %v2252
        %v2254 = vrot.slane %v2253, 2
        %v2255 = vadd.f32 %v2253, %v2254
        %v2256 = vrot.slane %v2255, 1
        %v2257 = vadd.f32 %v2255, %v2256
        %v2258 = vadd.f32 %v2232, %v2234
        %v2259 = vrot.slane %v2258, 4
        %v2260 = vadd.f32 %v2258, %v2259
        %v2261 = vrot.slane %v2260, 2
        %v2262 = vadd.f32 %v2260, %v2261
        %v2263 = vrot.slane %v2262, 1
        %v2264 = vadd.f32 %v2262, %v2263
        %v2265 = vadd.f32 %v2233, %v2235
        %v2266 = vrot.slane %v2265, 4
        %v2267 = vadd.f32 %v2265, %v2266
        %v2268 = vrot.slane %v2267, 2
        %v2269 = vadd.f32 %v2267, %v2268
        %v2270 = vrot.slane %v2269, 1
        %v2271 = vadd.f32 %v2269, %v2270
        %v2272 = vadd.f32 %v2236, %v2238
        %v2273 = vrot.slane %v2272, 4
        %v2274 = vadd.f32 %v2272, %v2273
        %v2275 = vrot.slane %v2274, 2
        %v2276 = vadd.f32 %v2274, %v2275
        %v2277 = vrot.slane %v2276, 1
        %v2278 = vadd.f32 %v2276, %v2277
        %v2279 = vadd.f32 %v2237, %v2239
        %v2280 = vrot.slane %v2279, 4
        %v2281 = vadd.f32 %v2279, %v2280
        %v2282 = vrot.slane %v2281, 2
        %v2283 = vadd.f32 %v2281, %v2282
        %v2284 = vrot.slane %v2283, 1
        %v2285 = vadd.f32 %v2283, %v2284
        %v2286 = vadd.f32 %v2240, %v2242
        %v2287 = vrot.slane %v2286, 4
        %v2288 = vadd.f32 %v2286, %v2287
        %v2289 = vrot.slane %v2288, 2
        %v2290 = vadd.f32 %v2288, %v2289
        %v2291 = vrot.slane %v2290, 1
        %v2292 = vadd.f32 %v2290, %v2291
        %v2293 = vadd.f32 %v2241, %v2243
        %v2294 = vrot.slane %v2293, 4
        %v2295 = vadd.f32 %v2293, %v2294
        %v2296 = vrot.slane %v2295, 2
        %v2297 = vadd.f32 %v2295, %v2296
        %v2298 = vrot.slane %v2297, 1
        %v2299 = vadd.f32 %v2297, %v2298
        %v2300 = vrcp.pop 16.0
        %v2301 = vmul.f32 16.0, %v2300
        %v2302 = vsub.f32 1.0, %v2301
        %v2303 = vmul.f32 %v2300, %v2302
        %v2304 = vadd.f32 %v2300, %v2303
        %vm2305 = vweird.f32 %v2300
        %v2306 = vsel %vm2305, %v2300, %v2304
        %v2307 = vmul.f32 %v2250, %v2306
        %v2308 = vmul.f32 %v2257, %v2306
        %v2309 = vmul.f32 %v2264, %v2306
        %v2310 = vmul.f32 %v2271, %v2306
        %v2311 = vmul.f32 %v2278, %v2306
        %v2312 = vmul.f32 %v2285, %v2306
        %v2313 = vmul.f32 %v2292, %v2306
        %v2314 = vmul.f32 %v2299, %v2306
        %v2315 = vpack.c.bf16 %v2307, %v2307
        %v2316 = vpack.c.bf16 %v2308, %v2308
        %v2317 = vpack.c.bf16 %v2309, %v2309
        %v2318 = vpack.c.bf16 %v2310, %v2310
        %v2319 = vpack.c.bf16 %v2311, %v2311
        %v2320 = vpack.c.bf16 %v2312, %v2312
        %v2321 = vpack.c.bf16 %v2313, %v2313
        %v2322 = vpack.c.bf16 %v2314, %v2314
        %v2323 = vmax.f32 %v2228, %v2230
        %v2324 = vrot.slane %v2323, 4
        %v2325 = vmax.f32 %v2323, %v2324
        %v2326 = vrot.slane %v2325, 2
        %v2327 = vmax.f32 %v2325, %v2326
        %v2328 = vrot.slane %v2327, 1
        %v2329 = vmax.f32 %v2327, %v2328
        %v2330 = vmax.f32 %v2229, %v2231
        %v2331 = vrot.slane %v2330, 4
        %v2332 = vmax.f32 %v2330, %v2331
        %v2333 = vrot.slane %v2332, 2
        %v2334 = vmax.f32 %v2332, %v2333
        %v2335 = vrot.slane %v2334, 1
        %v2336 = vmax.f32 %v2334, %v2335
        %v2337 = vmax.f32 %v2232, %v2234
        %v2338 = vrot.slane %v2337, 4
        %v2339 = vmax.f32 %v2337, %v2338
        %v2340 = vrot.slane %v2339, 2
        %v2341 = vmax.f32 %v2339, %v2340
        %v2342 = vrot.slane %v2341, 1
        %v2343 = vmax.f32 %v2341, %v2342
        %v2344 = vmax.f32 %v2233, %v2235
        %v2345 = vrot.slane %v2344, 4
        %v2346 = vmax.f32 %v2344, %v2345
        %v2347 = vrot.slane %v2346, 2
        %v2348 = vmax.f32 %v2346, %v2347
        %v2349 = vrot.slane %v2348, 1
        %v2350 = vmax.f32 %v2348, %v2349
        %v2351 = vmax.f32 %v2236, %v2238
        %v2352 = vrot.slane %v2351, 4
        %v2353 = vmax.f32 %v2351, %v2352
        %v2354 = vrot.slane %v2353, 2
        %v2355 = vmax.f32 %v2353, %v2354
        %v2356 = vrot.slane %v2355, 1
        %v2357 = vmax.f32 %v2355, %v2356
        %v2358 = vmax.f32 %v2237, %v2239
        %v2359 = vrot.slane %v2358, 4
        %v2360 = vmax.f32 %v2358, %v2359
        %v2361 = vrot.slane %v2360, 2
        %v2362 = vmax.f32 %v2360, %v2361
        %v2363 = vrot.slane %v2362, 1
        %v2364 = vmax.f32 %v2362, %v2363
        %v2365 = vmax.f32 %v2240, %v2242
        %v2366 = vrot.slane %v2365, 4
        %v2367 = vmax.f32 %v2365, %v2366
        %v2368 = vrot.slane %v2367, 2
        %v2369 = vmax.f32 %v2367, %v2368
        %v2370 = vrot.slane %v2369, 1
        %v2371 = vmax.f32 %v2369, %v2370
        %v2372 = vmax.f32 %v2241, %v2243
        %v2373 = vrot.slane %v2372, 4
        %v2374 = vmax.f32 %v2372, %v2373
        %v2375 = vrot.slane %v2374, 2
        %v2376 = vmax.f32 %v2374, %v2375
        %v2377 = vrot.slane %v2376, 1
        %v2378 = vmax.f32 %v2376, %v2377
        %v2379 = vpack.c.bf16 %v2329, %v2329
        %v2380 = vpack.c.bf16 %v2336, %v2336
        %v2381 = vpack.c.bf16 %v2343, %v2343
        %v2382 = vpack.c.bf16 %v2350, %v2350
        %v2383 = vpack.c.bf16 %v2357, %v2357
        %v2384 = vpack.c.bf16 %v2364, %v2364
        %v2385 = vpack.c.bf16 %v2371, %v2371
        %v2386 = vpack.c.bf16 %v2378, %v2378
        %v2387 = vld [vmem:[#allocation17] sm:$0xf]
        %v2388 = vld [vmem:[#allocation17 + $0x4] sm:$0xf]
        %v2389 = vld [vmem:[#allocation17 + $0x8] sm:$0xf]
        %v2390 = vld [vmem:[#allocation17 + $0xc] sm:$0xf]
        %v2391 = vld [vmem:[#allocation17 + $0x10] sm:$0xf]
        %v2392 = vld [vmem:[#allocation17 + $0x14] sm:$0xf]
        %v2393 = vld [vmem:[#allocation17 + $0x18] sm:$0xf]
        %v2394 = vld [vmem:[#allocation17 + $0x1c] sm:$0xf]
        %v2395 = vld [vmem:[#allocation17 + $0x20] sm:$0xf]
        %v2396 = vld [vmem:[#allocation17 + $0x24] sm:$0xf]
        %v2397 = vld [vmem:[#allocation17 + $0x28] sm:$0xf]
        %v2398 = vld [vmem:[#allocation17 + $0x2c] sm:$0xf]
        %v2399 = vld [vmem:[#allocation17 + $0x30] sm:$0xf]
        %v2400 = vld [vmem:[#allocation17 + $0x34] sm:$0xf]
        %v2401 = vld [vmem:[#allocation17 + $0x38] sm:$0xf]
        %v2402 = vld [vmem:[#allocation17 + $0x3c] sm:$0xf]
        %v2403 = vld [vmem:[#allocation17 + $0x40] sm:$0xf]
        %v2404 = vld [vmem:[#allocation17 + $0x44] sm:$0xf]
        %v2405 = vld [vmem:[#allocation17 + $0x48] sm:$0xf]
        %v2406 = vld [vmem:[#allocation17 + $0x4c] sm:$0xf]
        %v2407 = vld [vmem:[#allocation17 + $0x50] sm:$0xf]
        %v2408 = vld [vmem:[#allocation17 + $0x54] sm:$0xf]
        %v2409 = vld [vmem:[#allocation17 + $0x58] sm:$0xf]
        %v2410 = vld [vmem:[#allocation17 + $0x5c] sm:$0xf]
        %v2411 = vld [vmem:[#allocation17 + $0x60] sm:$0xf]
        %v2412 = vld [vmem:[#allocation17 + $0x64] sm:$0xf]
        %v2413 = vld [vmem:[#allocation17 + $0x68] sm:$0xf]
        %v2414 = vld [vmem:[#allocation17 + $0x6c] sm:$0xf]
        %v2415 = vld [vmem:[#allocation17 + $0x70] sm:$0xf]
        %v2416 = vld [vmem:[#allocation17 + $0x74] sm:$0xf]
        %v2417 = vld [vmem:[#allocation17 + $0x78] sm:$0xf]
        %v2418 = vld [vmem:[#allocation17 + $0x7c] sm:$0xf]
        %v2419 = vld [vmem:[#allocation19] sm:$0xf]
        %v2420 = vld [vmem:[#allocation19 + $0x4] sm:$0xf]
        %v2421 = vld [vmem:[#allocation19 + $0x8] sm:$0xf]
        %v2422 = vld [vmem:[#allocation19 + $0xc] sm:$0xf]
        %v2423 = vld [vmem:[#allocation19 + $0x10] sm:$0xf]
        %v2424 = vld [vmem:[#allocation19 + $0x14] sm:$0xf]
        %v2425 = vld [vmem:[#allocation19 + $0x18] sm:$0xf]
        %v2426 = vld [vmem:[#allocation19 + $0x1c] sm:$0xf]
        %v2427 = vld [vmem:[#allocation19 + $0x20] sm:$0xf]
        %v2428 = vld [vmem:[#allocation19 + $0x24] sm:$0xf]
        %v2429 = vld [vmem:[#allocation19 + $0x28] sm:$0xf]
        %v2430 = vld [vmem:[#allocation19 + $0x2c] sm:$0xf]
        %v2431 = vld [vmem:[#allocation19 + $0x30] sm:$0xf]
        %v2432 = vld [vmem:[#allocation19 + $0x34] sm:$0xf]
        %v2433 = vld [vmem:[#allocation19 + $0x38] sm:$0xf]
        %v2434 = vld [vmem:[#allocation19 + $0x3c] sm:$0xf]
        %v2435 = vld [vmem:[#allocation19 + $0x40] sm:$0xf]
        %v2436 = vld [vmem:[#allocation19 + $0x44] sm:$0xf]
        %v2437 = vld [vmem:[#allocation19 + $0x48] sm:$0xf]
        %v2438 = vld [vmem:[#allocation19 + $0x4c] sm:$0xf]
        %v2439 = vld [vmem:[#allocation19 + $0x50] sm:$0xf]
        %v2440 = vld [vmem:[#allocation19 + $0x54] sm:$0xf]
        %v2441 = vld [vmem:[#allocation19 + $0x58] sm:$0xf]
        %v2442 = vld [vmem:[#allocation19 + $0x5c] sm:$0xf]
        %v2443 = vld [vmem:[#allocation19 + $0x60] sm:$0xf]
        %v2444 = vld [vmem:[#allocation19 + $0x64] sm:$0xf]
        %v2445 = vld [vmem:[#allocation19 + $0x68] sm:$0xf]
        %v2446 = vld [vmem:[#allocation19 + $0x6c] sm:$0xf]
        %v2447 = vld [vmem:[#allocation19 + $0x70] sm:$0xf]
        %v2448 = vld [vmem:[#allocation19 + $0x74] sm:$0xf]
        %v2449 = vld [vmem:[#allocation19 + $0x78] sm:$0xf]
        %v2450 = vld [vmem:[#allocation19 + $0x7c] sm:$0xf]
        %v2459 = vunpack.c.l.b16 %v2379
        %v2460 = vunpack.c.l.b16 %v2380
        %v2461 = vunpack.c.l.b16 %v2381
        %v2462 = vunpack.c.l.b16 %v2382
        %v2463 = vunpack.c.l.b16 %v2383
        %v2464 = vunpack.c.l.b16 %v2384
        %v2465 = vunpack.c.l.b16 %v2385
        %v2466 = vunpack.c.l.b16 %v2386
        %v2467 = vsel %vm1274, %v2461, %v2459
        %v2468 = vsel %vm1276, %v2463, %v2467
        %v2469 = vsel %vm1278, %v2465, %v2468
        %v2470 = vsel %vm1274, %v2462, %v2460
        %v2471 = vsel %vm1276, %v2464, %v2470
        %v2472 = vsel %vm1278, %v2466, %v2471
        %v2473 = vpack.c.b16 %v2469, %v2469
        %v2474 = vpack.c.b16 %v2472, %v2472
        %v2509 = vunpack.c.l.b16 %v2419
        %v2510 = vunpack.c.l.b16 %v2420
        %v2511 = vunpack.c.l.b16 %v2421
        %v2512 = vunpack.c.l.b16 %v2422
        %v2513 = vunpack.c.l.b16 %v2423
        %v2514 = vunpack.c.l.b16 %v2424
        %v2515 = vunpack.c.l.b16 %v2425
        %v2516 = vunpack.c.l.b16 %v2426
        %v2517 = vunpack.c.l.b16 %v2427
        %v2518 = vunpack.c.l.b16 %v2428
        %v2519 = vunpack.c.l.b16 %v2429
        %v2520 = vunpack.c.l.b16 %v2430
        %v2521 = vunpack.c.l.b16 %v2431
        %v2522 = vunpack.c.l.b16 %v2432
        %v2523 = vunpack.c.l.b16 %v2433
        %v2524 = vunpack.c.l.b16 %v2434
        %v2525 = vunpack.c.l.b16 %v2435
        %v2526 = vunpack.c.l.b16 %v2436
        %v2527 = vunpack.c.l.b16 %v2437
        %v2528 = vunpack.c.l.b16 %v2438
        %v2529 = vunpack.c.l.b16 %v2439
        %v2530 = vunpack.c.l.b16 %v2440
        %v2531 = vunpack.c.l.b16 %v2441
        %v2532 = vunpack.c.l.b16 %v2442
        %v2533 = vunpack.c.l.b16 %v2443
        %v2534 = vunpack.c.l.b16 %v2444
        %v2535 = vunpack.c.l.b16 %v2445
        %v2536 = vunpack.c.l.b16 %v2446
        %v2537 = vunpack.c.l.b16 %v2447
        %v2538 = vunpack.c.l.b16 %v2448
        %v2539 = vunpack.c.l.b16 %v2449
        %v2540 = vunpack.c.l.b16 %v2450
        %v2541 = vpack.c.b16 %v2510, %v2509
        %v2542 = vpack.c.b16 %v2512, %v2511
        %v2543 = vpack.c.b16 %v2514, %v2513
        %v2544 = vpack.c.b16 %v2516, %v2515
        %v2545 = vpack.c.b16 %v2518, %v2517
        %v2546 = vpack.c.b16 %v2520, %v2519
        %v2547 = vpack.c.b16 %v2522, %v2521
        %v2548 = vpack.c.b16 %v2524, %v2523
        %v2549 = vpack.c.b16 %v2526, %v2525
        %v2550 = vpack.c.b16 %v2528, %v2527
        %v2551 = vpack.c.b16 %v2530, %v2529
        %v2552 = vpack.c.b16 %v2532, %v2531
        %v2553 = vpack.c.b16 %v2534, %v2533
        %v2554 = vpack.c.b16 %v2536, %v2535
        %v2555 = vpack.c.b16 %v2538, %v2537
        %v2556 = vpack.c.b16 %v2540, %v2539
        %2573 = vmatpush.bf16.msra.mxu0 %v2548
        %2574 = vmatpush.bf16.msra.mxu0 %v2547
        %2575 = vmatpush.bf16.msra.mxu0 %v2546
        %2576 = vmatpush.bf16.msra.mxu0 %v2545
        %2577 = vmatpush.bf16.msra.mxu0 %v2544
        %2578 = vmatpush.bf16.msra.mxu0 %v2543
        %2579 = vmatpush.bf16.msra.mxu0 %v2542
        %2580 = vmatpush.bf16.msra.mxu0 %v2541
        %2581 = vmatmul.bf16.gmra.mxu0 %v2473
        %v2582 = vpop.f32.mrf.mxu0
        %v2583 = vadd.f32 0.0, %v2582
        %v2584 = vpop.f32.mrf.mxu0
        %2585 = vdwg.mxu0
        %2586 = vmatpush.bf16.msra.mxu0 %v2556
        %2587 = vmatpush.bf16.msra.mxu0 %v2555
        %2588 = vmatpush.bf16.msra.mxu0 %v2554
        %2589 = vmatpush.bf16.msra.mxu0 %v2553
        %2590 = vmatpush.bf16.msra.mxu0 %v2552
        %2591 = vmatpush.bf16.msra.mxu0 %v2551
        %2592 = vmatpush.bf16.msra.mxu0 %v2550
        %2593 = vmatpush.bf16.msra.mxu0 %v2549
        %2594 = vmatmul.bf16.gmra.mxu0 %v2474
        %v2595 = vpop.f32.mrf.mxu0
        %v2596 = vadd.f32 %v2583, %v2595
        %v2597 = vpop.f32.mrf.mxu0
        %2598 = vdwg.mxu0
        %v2607 = vunpack.c.l.b16 %v2315
        %v2608 = vunpack.c.l.b16 %v2316
        %v2609 = vunpack.c.l.b16 %v2317
        %v2610 = vunpack.c.l.b16 %v2318
        %v2611 = vunpack.c.l.b16 %v2319
        %v2612 = vunpack.c.l.b16 %v2320
        %v2613 = vunpack.c.l.b16 %v2321
        %v2614 = vunpack.c.l.b16 %v2322
        %v2615 = vsel %vm1274, %v2609, %v2607
        %v2616 = vsel %vm1276, %v2611, %v2615
        %v2617 = vsel %vm1278, %v2613, %v2616
        %v2618 = vsel %vm1274, %v2610, %v2608
        %v2619 = vsel %vm1276, %v2612, %v2618
        %v2620 = vsel %vm1278, %v2614, %v2619
        %v2621 = vpack.c.b16 %v2617, %v2617
        %v2622 = vpack.c.b16 %v2620, %v2620
        %v2657 = vunpack.c.l.b16 %v2387
        %v2658 = vunpack.c.l.b16 %v2388
        %v2659 = vunpack.c.l.b16 %v2389
        %v2660 = vunpack.c.l.b16 %v2390
        %v2661 = vunpack.c.l.b16 %v2391
        %v2662 = vunpack.c.l.b16 %v2392
        %v2663 = vunpack.c.l.b16 %v2393
        %v2664 = vunpack.c.l.b16 %v2394
        %v2665 = vunpack.c.l.b16 %v2395
        %v2666 = vunpack.c.l.b16 %v2396
        %v2667 = vunpack.c.l.b16 %v2397
        %v2668 = vunpack.c.l.b16 %v2398
        %v2669 = vunpack.c.l.b16 %v2399
        %v2670 = vunpack.c.l.b16 %v2400
        %v2671 = vunpack.c.l.b16 %v2401
        %v2672 = vunpack.c.l.b16 %v2402
        %v2673 = vunpack.c.l.b16 %v2403
        %v2674 = vunpack.c.l.b16 %v2404
        %v2675 = vunpack.c.l.b16 %v2405
        %v2676 = vunpack.c.l.b16 %v2406
        %v2677 = vunpack.c.l.b16 %v2407
        %v2678 = vunpack.c.l.b16 %v2408
        %v2679 = vunpack.c.l.b16 %v2409
        %v2680 = vunpack.c.l.b16 %v2410
        %v2681 = vunpack.c.l.b16 %v2411
        %v2682 = vunpack.c.l.b16 %v2412
        %v2683 = vunpack.c.l.b16 %v2413
        %v2684 = vunpack.c.l.b16 %v2414
        %v2685 = vunpack.c.l.b16 %v2415
        %v2686 = vunpack.c.l.b16 %v2416
        %v2687 = vunpack.c.l.b16 %v2417
        %v2688 = vunpack.c.l.b16 %v2418
        %v2689 = vpack.c.b16 %v2658, %v2657
        %v2690 = vpack.c.b16 %v2660, %v2659
        %v2691 = vpack.c.b16 %v2662, %v2661
        %v2692 = vpack.c.b16 %v2664, %v2663
        %v2693 = vpack.c.b16 %v2666, %v2665
        %v2694 = vpack.c.b16 %v2668, %v2667
        %v2695 = vpack.c.b16 %v2670, %v2669
        %v2696 = vpack.c.b16 %v2672, %v2671
        %v2697 = vpack.c.b16 %v2674, %v2673
        %v2698 = vpack.c.b16 %v2676, %v2675
        %v2699 = vpack.c.b16 %v2678, %v2677
        %v2700 = vpack.c.b16 %v2680, %v2679
        %v2701 = vpack.c.b16 %v2682, %v2681
        %v2702 = vpack.c.b16 %v2684, %v2683
        %v2703 = vpack.c.b16 %v2686, %v2685
        %v2704 = vpack.c.b16 %v2688, %v2687
        %2721 = vmatpush.bf16.msra.mxu0 %v2696
        %2722 = vmatpush.bf16.msra.mxu0 %v2695
        %2723 = vmatpush.bf16.msra.mxu0 %v2694
        %2724 = vmatpush.bf16.msra.mxu0 %v2693
        %2725 = vmatpush.bf16.msra.mxu0 %v2692
        %2726 = vmatpush.bf16.msra.mxu0 %v2691
        %2727 = vmatpush.bf16.msra.mxu0 %v2690
        %2728 = vmatpush.bf16.msra.mxu0 %v2689
        %2729 = vmatmul.bf16.gmra.mxu0 %v2621
        %v2730 = vpop.f32.mrf.mxu0
        %v2731 = vadd.f32 %v2596, %v2730
        %v2732 = vpop.f32.mrf.mxu0
        %2733 = vdwg.mxu0
        %2734 = vmatpush.bf16.msra.mxu0 %v2704
        %2735 = vmatpush.bf16.msra.mxu0 %v2703
        %2736 = vmatpush.bf16.msra.mxu0 %v2702
        %2737 = vmatpush.bf16.msra.mxu0 %v2701
        %2738 = vmatpush.bf16.msra.mxu0 %v2700
        %2739 = vmatpush.bf16.msra.mxu0 %v2699
        %2740 = vmatpush.bf16.msra.mxu0 %v2698
        %2741 = vmatpush.bf16.msra.mxu0 %v2697
        %2742 = vmatmul.bf16.gmra.mxu0 %v2622
        %v2743 = vpop.f32.mrf.mxu0
        %v2744 = vadd.f32 %v2731, %v2743
        %v2745 = vpop.f32.mrf.mxu0
        %2746 = vdwg.mxu0
        %v2747 = vld [vmem:[%s15] sm:$0x1]
        %v2749 = vperm.slane %v2747, 0
        %v2751 = vadd.f32 %v2744, %v2749
        %v2752 = vmax.f32 %v2751, 0.0
        %v2753 = vpack.c.bf16 %v2752, %v2752
        %v2754 = vld [vmem:[#allocation20] sm:$0xf]
        %v2755 = vld [vmem:[#allocation20 + $0x4] sm:$0xf]
        %v2756 = vld [vmem:[#allocation20 + $0x8] sm:$0xf]
        %v2757 = vld [vmem:[#allocation20 + $0xc] sm:$0xf]
        %v2758 = vld [vmem:[#allocation20 + $0x10] sm:$0xf]
        %v2759 = vld [vmem:[#allocation20 + $0x14] sm:$0xf]
        %v2760 = vld [vmem:[#allocation20 + $0x18] sm:$0xf]
        %v2761 = vld [vmem:[#allocation20 + $0x1c] sm:$0xf]
        %v2762 = vld [vmem:[#allocation20 + $0x20] sm:$0xf]
        %v2763 = vld [vmem:[#allocation20 + $0x24] sm:$0xf]
        %v2764 = vld [vmem:[#allocation20 + $0x28] sm:$0xf]
        %v2765 = vld [vmem:[#allocation20 + $0x2c] sm:$0xf]
        %v2766 = vld [vmem:[#allocation20 + $0x30] sm:$0xf]
        %v2767 = vld [vmem:[#allocation20 + $0x34] sm:$0xf]
        %v2768 = vld [vmem:[#allocation20 + $0x38] sm:$0xf]
        %v2769 = vld [vmem:[#allocation20 + $0x3c] sm:$0xf]
        %v2770 = vld [vmem:[%s17] sm:$0x1]
        %v2772 = vperm.slane %v2770, 0
        %v2790 = vunpack.c.l.b16 %v2754
        %v2791 = vunpack.c.l.b16 %v2755
        %v2792 = vunpack.c.l.b16 %v2756
        %v2793 = vunpack.c.l.b16 %v2757
        %v2794 = vunpack.c.l.b16 %v2758
        %v2795 = vunpack.c.l.b16 %v2759
        %v2796 = vunpack.c.l.b16 %v2760
        %v2797 = vunpack.c.l.b16 %v2761
        %v2798 = vunpack.c.l.b16 %v2762
        %v2799 = vunpack.c.l.b16 %v2763
        %v2800 = vunpack.c.l.b16 %v2764
        %v2801 = vunpack.c.l.b16 %v2765
        %v2802 = vunpack.c.l.b16 %v2766
        %v2803 = vunpack.c.l.b16 %v2767
        %v2804 = vunpack.c.l.b16 %v2768
        %v2805 = vunpack.c.l.b16 %v2769
        %v2806 = vpack.c.b16 %v2791, %v2790
        %v2807 = vpack.c.b16 %v2793, %v2792
        %v2808 = vpack.c.b16 %v2795, %v2794
        %v2809 = vpack.c.b16 %v2797, %v2796
        %v2810 = vpack.c.b16 %v2799, %v2798
        %v2811 = vpack.c.b16 %v2801, %v2800
        %v2812 = vpack.c.b16 %v2803, %v2802
        %v2813 = vpack.c.b16 %v2805, %v2804
        %2822 = vmatpush.bf16.msra.mxu0 %v2813
        %2823 = vmatpush.bf16.msra.mxu0 %v2812
        %2824 = vmatpush.bf16.msra.mxu0 %v2811
        %2825 = vmatpush.bf16.msra.mxu0 %v2810
        %2826 = vmatpush.bf16.msra.mxu0 %v2809
        %2827 = vmatpush.bf16.msra.mxu0 %v2808
        %2828 = vmatpush.bf16.msra.mxu0 %v2807
        %2829 = vmatpush.bf16.msra.mxu0 %v2806
        %2830 = vmatmul.bf16.gmra.mxu0 %v2753
        %v2831 = vpop.f32.mrf.mxu0
        %v2832 = vadd.f32 %v2772, %v2831
        %v2833 = vpop.f32.mrf.mxu0
        %2834 = vdwg.mxu0
        %v2835 = vmax.f32 %v2832, 0.0
        %v2836 = vpack.c.bf16 %v2835, %v2835
        %v2837 = vld [vmem:[#allocation22] sm:$0xf]
        %v2838 = vld [vmem:[#allocation22 + $0x4] sm:$0xf]
        %v2839 = vld [vmem:[#allocation22 + $0x8] sm:$0xf]
        %v2840 = vld [vmem:[#allocation22 + $0xc] sm:$0xf]
        %v2841 = vld [vmem:[#allocation22 + $0x10] sm:$0xf]
        %v2842 = vld [vmem:[#allocation22 + $0x14] sm:$0xf]
        %v2843 = vld [vmem:[#allocation22 + $0x18] sm:$0xf]
        %v2844 = vld [vmem:[#allocation22 + $0x1c] sm:$0xf]
        %v2845 = vld [vmem:[#allocation22 + $0x20] sm:$0xf]
        %v2846 = vld [vmem:[#allocation22 + $0x24] sm:$0xf]
        %v2847 = vld [vmem:[#allocation22 + $0x28] sm:$0xf]
        %v2848 = vld [vmem:[#allocation22 + $0x2c] sm:$0xf]
        %v2849 = vld [vmem:[#allocation22 + $0x30] sm:$0xf]
        %v2850 = vld [vmem:[#allocation22 + $0x34] sm:$0xf]
        %v2851 = vld [vmem:[#allocation22 + $0x38] sm:$0xf]
        %v2852 = vld [vmem:[#allocation22 + $0x3c] sm:$0xf]
        %v2853 = vld [vmem:[%s19] sm:$0x1]
        %v2855 = vperm.slane %v2853, 0
        %v2873 = vunpack.c.l.b16 %v2837
        %v2874 = vunpack.c.l.b16 %v2838
        %v2875 = vunpack.c.l.b16 %v2839
        %v2876 = vunpack.c.l.b16 %v2840
        %v2877 = vunpack.c.l.b16 %v2841
        %v2878 = vunpack.c.l.b16 %v2842
        %v2879 = vunpack.c.l.b16 %v2843
        %v2880 = vunpack.c.l.b16 %v2844
        %v2881 = vunpack.c.l.b16 %v2845
        %v2882 = vunpack.c.l.b16 %v2846
        %v2883 = vunpack.c.l.b16 %v2847
        %v2884 = vunpack.c.l.b16 %v2848
        %v2885 = vunpack.c.l.b16 %v2849
        %v2886 = vunpack.c.l.b16 %v2850
        %v2887 = vunpack.c.l.b16 %v2851
        %v2888 = vunpack.c.l.b16 %v2852
        %v2889 = vpack.c.b16 %v2874, %v2873
        %v2890 = vpack.c.b16 %v2876, %v2875
        %v2891 = vpack.c.b16 %v2878, %v2877
        %v2892 = vpack.c.b16 %v2880, %v2879
        %v2893 = vpack.c.b16 %v2882, %v2881
        %v2894 = vpack.c.b16 %v2884, %v2883
        %v2895 = vpack.c.b16 %v2886, %v2885
        %v2896 = vpack.c.b16 %v2888, %v2887
        %2905 = vmatpush.bf16.msra.mxu0 %v2896
        %2906 = vmatpush.bf16.msra.mxu0 %v2895
        %2907 = vmatpush.bf16.msra.mxu0 %v2894
        %2908 = vmatpush.bf16.msra.mxu0 %v2893
        %2909 = vmatpush.bf16.msra.mxu0 %v2892
        %2910 = vmatpush.bf16.msra.mxu0 %v2891
        %2911 = vmatpush.bf16.msra.mxu0 %v2890
        %2912 = vmatpush.bf16.msra.mxu0 %v2889
        %2913 = vmatmul.bf16.gmra.mxu0 %v2836
        %v2914 = vpop.f32.mrf.mxu0
        %v2915 = vadd.f32 %v2855, %v2914
        %v2916 = vpop.f32.mrf.mxu0
        %2917 = vdwg.mxu0
        %vm2918 = vcmask 1043456
        %v2919 = vsel %vm2918, %v2915, -inf
        %2920 = vmax.xlane.f32.xlu0 %v2919
        %v2921 = vpop.xlane.xlu0 %2920
        %v2922 = vsub.f32 %v2915, %v2921
        %v2923 = vmul.f32 %v2922, 1.442695
        %v2924 = vpow.pop %v2923
        %v2925 = vsel %vm2918, %v2924, 0.0
        %2926 = vadd.xlane.f32.xlu0 %v2925
        %v2927 = vpop.xlane.xlu0 %2926
        %v2928 = vlog2.pop %v2927
        %v2929 = vmul.f32 %v2928, 0.6931472
        %v2930 = vadd.f32 %v2929, %v2921
        %v2931 = vsub.f32 %v2915, %v2930
        %2932 = vst [vmem:[%s872] sm:$0xf] %v2931
        %s2933 = sand.u32 %s483, 1
        %s2934 = scalar_lea.sflag [#allocation4], %s2933
        %s2935 = sand.u32 %s483, 1
        %s2936 = smul.addr %s2935, 4
        %s2937 = scalar_lea.vmem [#allocation23], %s2936
        // Predicated region
        $region153: #{tpu_custom_call.1} parent=99 // pred_check
          %p2938 = pneg %p493
        $region154: #{tpu_custom_call.1} parent=99 // pred_check_branch
          %2940 = sbr.rel (%p2938) target = $region156
        $region155: #{tpu_custom_call.1} parent=99 // pred_region
          %2942 = vsyncadd %s2934, 0
          %s2943 = smul.addr %s45, 4
          %s2944 = scalar_lea.hbm %s20, %s2943
          %s2946 = sshll.u32 %s2937, 4
          %s2947 = int_to_ptr.vmem [resolvable:$true] %s2946
          %s2948 = sshll.u32 %s2944, 4
          %s2949 = int_to_ptr.hbm [resolvable:$true] %s2948
          %2951 = dma.vmem_to_hbm [thread:$0]  %s2947, 64, %s2949, %s2934
        $region156: #{tpu_custom_call.1} parent=99 // pred_fallthru
          _
      $region100: #{tpu_custom_call.1} parent=5 // pred_fallthru
        _
      %p2952 = scmp.le.s32.totalorder 2, %s40
      // Predicated region
      $region157: #{tpu_custom_call.1} parent=5 // pred_check
        %p2953 = pneg %p2952
      $region158: #{tpu_custom_call.1} parent=5 // pred_check_branch
        %2955 = sbr.rel (%p2953) target = $region160
      $region159: #{tpu_custom_call.1} parent=5 // pred_region
        %s2956 = ssub.s32 %s40, 2
        // Predicated region
        $region161: #{tpu_custom_call.1} parent=159 // pred_check
          %p2957 = pneg %p499
        $region162: #{tpu_custom_call.1} parent=159 // pred_check_branch
          %2959 = sbr.rel (%p2957) target = $region164
        $region163: #{tpu_custom_call.1} parent=159 // pred_region
          %s2960 = sand.u32 %s484, 1
          %s2961 = scalar_lea.sflag [#allocation4], %s2960
          %s2962 = sand.u32 %s484, 1
          %s2963 = smul.addr %s2962, 4
          %s2964 = scalar_lea.vmem [#allocation23], %s2963
          %2966 = dma.done %s2961, 64
        $region164: #{tpu_custom_call.1} parent=159 // pred_fallthru
          _
      $region160: #{tpu_custom_call.1} parent=5 // pred_fallthru
        _
    $region6: #{tpu_custom_call.1} parent=1 // loop_footer
      %s44 = sadd.s32 1, %s40
    $region7: #{tpu_custom_call.1} parent=1 // loop_footer_branch
      %39 = sbr.rel target = $region3
    $region8: #{tpu_custom_call.1} parent=1 // loop_exit
      _
    %2967 = vsyncpa [#allocation3], 1
    %s2968 = scalar_lea.sflag [#allocation3], 1
    %2969 = vsyncpa %s2968, 1
    %2970 = vsyncpa [#allocation6], 1
    %s2971 = scalar_lea.sflag [#allocation6], 1
    %2972 = vsyncpa %s2971, 1
    %2973 = vsyncpa [#allocation9], 1
    %2974 = vsyncpa [#allocation12], 1
    %2975 = vsyncpa [#allocation15], 1
    %2976 = vsyncpa [#allocation18], 1
    %2977 = vsyncpa [#allocation21], 1
    %2978 = vsyncpa [#allocation4], 1
    %s2979 = scalar_lea.sflag [#allocation4], 1
    %2980 = vsyncpa %s2979, 1

</llo_original>
